<compile_context>
chip_gen: v5e
topology: v5e:2x2
jax: 0.10.0
libtpu: 0.0.40
codegen_flags: <defaults>
</compile_context>

<pallas_src>
import jax
import jax.numpy as jnp
from jax import lax
from jax.experimental import pallas as pl
from jax.experimental.pallas import tpu as pltpu


def _round_up(n, m):
    return ((n + m - 1) // m) * m


# --------------------- fused conv + bias + ReLU + maxpool -------------------

def _conv_pool_kernel(p_ref, w_ref, b_ref, o_ref):
    # p_ref: (1, 4, Kp, S2) bf16   w_ref: (Cout, Kp) bf16   b_ref: (Cout, 1) f32
    w = w_ref[...]
    acc = jnp.dot(w, p_ref[0, 0], preferred_element_type=jnp.float32)
    for ph in range(1, 4):                       # pool = max of 4 phase GEMMs
        acc = jnp.maximum(
            acc, jnp.dot(w, p_ref[0, ph], preferred_element_type=jnp.float32))
    acc = acc + b_ref[...]                       # (Cout, S2) + (Cout, 1)
    o_ref[0] = jnp.maximum(acc, 0.0).astype(o_ref.dtype)


def conv_relu_pool(x_nchw, w_oikk, b, pad):
    """maxpool2x2(relu(conv2d(x, w, stride=1, padding=pad) + b)).

    Returns (B, Cout, H2*W2) bf16 laid out in PyTorch NCHW row-major order.
    """
    B, C, H, W = x_nchw.shape
    Cout, Cin, k, _ = w_oikk.shape
    assert Cin == C
    Ho, Wo = H + 2 * pad - k + 1, W + 2 * pad - k + 1
    H2, W2 = Ho // 2, Wo // 2
    S2 = H2 * W2
    K = C * k * k
    Kp = _round_up(K, 128)

    # Host glue: pool-phase im2col patches built directly in the final
    # (B, 4, Kp, S2) bf16 layout (no transpose of the 25x-expanded tensor).
    xb = x_nchw.astype(jnp.bfloat16)
    xp = jnp.pad(xb, ((0, 0), (0, 0), (pad, pad), (pad, pad)))
    phases = []
    for wh in (0, 1):
        for ww in (0, 1):
            cols = []
            for kh in range(k):
                for kw in range(k):
                    sh, sw = wh + kh, ww + kw
                    cols.append(
                        xp[:, :, sh:sh + 2 * H2 - 1:2, sw:sw + 2 * W2 - 1:2])
            phs = jnp.stack(cols, axis=2)        # (B, C, k*k, H2, W2)
            phases.append(phs.reshape(B, K, S2))
    p = jnp.stack(phases, axis=1)                # (B, 4, K, S2)
    p = jnp.pad(p, ((0, 0), (0, 0), (0, Kp - K), (0, 0)))

    wm = jnp.pad(w_oikk.reshape(Cout, K),
                 ((0, 0), (0, Kp - K))).astype(jnp.bfloat16)
    bm = b.reshape(Cout, 1).astype(jnp.float32)

    out = pl.pallas_call(
        _conv_pool_kernel,
        out_shape=jax.ShapeDtypeStruct((B, Cout, S2), jnp.bfloat16),
        grid=(B,),
        in_specs=[
            pl.BlockSpec((1, 4, Kp, S2), lambda i: (i, 0, 0, 0)),
            pl.BlockSpec((Cout, Kp), lambda i: (0, 0)),
            pl.BlockSpec((Cout, 1), lambda i: (0, 0)),
        ],
        out_specs=pl.BlockSpec((1, Cout, S2), lambda i: (i, 0, 0)),
        compiler_params=pltpu.CompilerParams(
            dimension_semantics=("parallel",)),
    )(p, wm, bm)
    return out, H2, W2


# ----------------------------- fused FC chain -------------------------------

def _fc_chain_kernel(x_ref, w1_ref, b1_ref, w2_ref, b2_ref, w3_ref, b3_ref,
                     o_ref):
    h = jnp.dot(x_ref[...], w1_ref[...], preferred_element_type=jnp.float32)
    h = jnp.maximum(h + b1_ref[...], 0.0).astype(jnp.bfloat16)
    h = jnp.dot(h, w2_ref[...], preferred_element_type=jnp.float32)
    h = jnp.maximum(h + b2_ref[...], 0.0).astype(jnp.bfloat16)
    h = jnp.dot(h, w3_ref[...], preferred_element_type=jnp.float32)
    o_ref[...] = (h + b3_ref[...]).astype(o_ref.dtype)


def fc_chain(x, w1, b1, w2, b2, w3, b3):
    """relu(x@w1+b1) -> relu(@w2+b2) -> @w3+b3, one pallas_call, VMEM-resident."""
    B, D = x.shape
    N1, N2, N3 = w1.shape[1], w2.shape[1], w3.shape[1]
    return pl.pallas_call(
        _fc_chain_kernel,
        out_shape=jax.ShapeDtypeStruct((B, N3), jnp.float32),
        grid=(1,),
        in_specs=[
            pl.BlockSpec((B, D), lambda i: (0, 0)),
            pl.BlockSpec((D, N1), lambda i: (0, 0)),
            pl.BlockSpec((1, N1), lambda i: (0, 0)),
            pl.BlockSpec((N1, N2), lambda i: (0, 0)),
            pl.BlockSpec((1, N2), lambda i: (0, 0)),
            pl.BlockSpec((N2, N3), lambda i: (0, 0)),
            pl.BlockSpec((1, N3), lambda i: (0, 0)),
        ],
        out_specs=pl.BlockSpec((B, N3), lambda i: (0, 0)),
        compiler_params=pltpu.CompilerParams(
            dimension_semantics=("arbitrary",)),
    )(x.astype(jnp.bfloat16),
      w1.astype(jnp.bfloat16), b1.reshape(1, N1).astype(jnp.float32),
      w2.astype(jnp.bfloat16), b2.reshape(1, N2).astype(jnp.float32),
      w3.astype(jnp.bfloat16), b3.reshape(1, N3).astype(jnp.float32))


# ------------------------------- forward ------------------------------------

def lenet5_forward(x, params):
    # x: (B, 3, 64, 64) NCHW
    h, H2, W2 = conv_relu_pool(x, params["conv1_w"], params["conv1_b"], pad=2)
    h = h.reshape(h.shape[0], params["conv1_w"].shape[0], H2, W2)   # (B,6,32,32)
    h, H2, W2 = conv_relu_pool(h, params["conv2_w"], params["conv2_b"], pad=0)
    # flatten == PyTorch x.view(-1, 16*14*14): layout is already (b,c,h,w)
    h = h.reshape(h.shape[0], params["conv2_w"].shape[0] * H2 * W2)
    return fc_chain(h, params["fc1_w"], params["fc1_b"],
                    params["fc2_w"], params["fc2_b"],
                    params["fc3_w"], params["fc3_b"])                # (B, 2)


# --------------------------- reference & params ------------------------------

def lenet5_reference(x, params):
    """Plain-JAX f32 reference of the same forward pass (for sanity check)."""
    dn = ("NCHW", "OIHW", "NCHW")
    y = lax.conv_general_dilated(x, params["conv1_w"], (1, 1),
                                 ((2, 2), (2, 2)), dimension_numbers=dn)
    y = jnp.maximum(y + params["conv1_b"].reshape(1, -1, 1, 1), 0.0)
    y = lax.reduce_window(y, -jnp.inf, lax.max, (1, 1, 2, 2), (1, 1, 2, 2),
                          "VALID")
    y = lax.conv_general_dilated(y, params["conv2_w"], (1, 1),
                                 ((0, 0), (0, 0)), dimension_numbers=dn)
    y = jnp.maximum(y + params["conv2_b"].reshape(1, -1, 1, 1), 0.0)
    y = lax.reduce_window(y, -jnp.inf, lax.max, (1, 1, 2, 2), (1, 1, 2, 2),
                          "VALID")
    y = y.reshape(y.shape[0], -1)
    y = jnp.maximum(y @ params["fc1_w"] + params["fc1_b"], 0.0)
    y = jnp.maximum(y @ params["fc2_w"] + params["fc2_b"], 0.0)
    return y @ params["fc3_w"] + params["fc3_b"]


def init_params(key):
    """Deterministic synthetic parameters (PyTorch-style uniform fan-in init).
    FC weights stored as (in, out) so the kernel computes x @ W + b."""
    ks = jax.random.split(key, 10)

    def u(k, shape, fan_in):
        bound = 1.0 / float(fan_in) ** 0.5
        return jax.random.uniform(k, shape, jnp.float32, -bound, bound)

    return {
        "conv1_w": u(ks[0], (6, 3, 5, 5), 3 * 25),
        "conv1_b": u(ks[1], (6,), 3 * 25),
        "conv2_w": u(ks[2], (16, 6, 5, 5), 6 * 25),
        "conv2_b": u(ks[3], (16,), 6 * 25),
        "fc1_w": u(ks[4], (16 * 14 * 14, 120), 16 * 14 * 14),
        "fc1_b": u(ks[5], (120,), 16 * 14 * 14),
        "fc2_w": u(ks[6], (120, 84), 120),
        "fc2_b": u(ks[7], (84,), 120),
        "fc3_w": u(ks[8], (84, 2), 84),
        "fc3_b": u(ks[9], (2,), 84),
    }


if __name__ == "__main__":
    key = jax.random.PRNGKey(0)
    kx, kp = jax.random.split(key)
    # fc1 expects 16*14*14 features, which forces a 3x64x64 input.
    x = jax.random.normal(kx, (2, 3, 64, 64), jnp.float32)
    params = init_params(kp)

    out = jax.block_until_ready(jax.jit(lenet5_forward)(x, params))
    assert out.shape == (2, 2) and out.dtype == jnp.float32

    # Sanity check against the f32 JAX reference (loose tol: bf16 matmuls).
    ref = jax.block_until_ready(jax.jit(lenet5_reference)(x, params))
    max_err = float(jnp.max(jnp.abs(out - ref)))
    assert max_err < 0.08, f"mismatch vs reference: max abs err {max_err}"

    print("KERNEL_OK")
</pallas_src>

<mosaic_0001>
module attributes {stable_mosaic.version = 11 : i64} {
  func.func @_conv_pool_kernel(%arg0: i32, %arg1: memref<1x4x128x1024xbf16, #tpu.memory_space<vmem>>, %arg2: memref<6x128xbf16, #tpu.memory_space<vmem>>, %arg3: memref<6x1xf32, #tpu.memory_space<vmem>>, %arg4: memref<1x6x1024xbf16, #tpu.memory_space<vmem>>) attributes {dimension_semantics = [#tpu.dimension_semantics<parallel>], iteration_bounds = array<i64: 2>, scalar_prefetch = 0 : i64, scratch_operands = 0 : i64, tpu.core_type = #tpu.core_type<tc>, window_params = [{transform_indices = @transform_0, window_bounds = array<i64: 1, 4, 128, 1024>}, {pipeline_mode = #tpu.pipeline_mode<synchronous>, transform_indices = @transform_1, window_bounds = array<i64: 6, 128>}, {pipeline_mode = #tpu.pipeline_mode<synchronous>, transform_indices = @transform_2, window_bounds = array<i64: 6, 1>}, {transform_indices = @transform_3, window_bounds = array<i64: 1, 6, 1024>}]} {
    %c0 = arith.constant 0 : index
    %c0_0 = arith.constant 0 : index
    %0 = vector.load %arg2[%c0, %c0_0] : memref<6x128xbf16, #tpu.memory_space<vmem>>, vector<6x128xbf16>
    %c0_1 = arith.constant 0 : index
    %c0_2 = arith.constant 0 : index
    %c0_3 = arith.constant 0 : index
    %c0_4 = arith.constant 0 : index
    %1 = vector.load %arg1[%c0_1, %c0_2, %c0_3, %c0_4] : memref<1x4x128x1024xbf16, #tpu.memory_space<vmem>>, vector<1x1x128x1024xbf16>
    %2 = vector.shape_cast %1 : vector<1x1x128x1024xbf16> to vector<128x1024xbf16>
    %cst = arith.constant dense<0.000000e+00> : vector<6x1024xf32>
    %3 = tpu.matmul %0, %2, %cst {dimension_numbers = #tpu.dot_dimension_numbers<[1], [0], [0], [1], [0, 0, 1, 1], [], []>} : vector<6x128xbf16>, vector<128x1024xbf16>, vector<6x1024xf32> -> vector<6x1024xf32>
    %c0_5 = arith.constant 0 : index
    %c1 = arith.constant 1 : index
    %c0_6 = arith.constant 0 : index
    %c0_7 = arith.constant 0 : index
    %4 = vector.load %arg1[%c0_5, %c1, %c0_6, %c0_7] : memref<1x4x128x1024xbf16, #tpu.memory_space<vmem>>, vector<1x1x128x1024xbf16>
    %5 = vector.shape_cast %4 : vector<1x1x128x1024xbf16> to vector<128x1024xbf16>
    %cst_8 = arith.constant dense<0.000000e+00> : vector<6x1024xf32>
    %6 = tpu.matmul %0, %5, %cst_8 {dimension_numbers = #tpu.dot_dimension_numbers<[1], [0], [0], [1], [0, 0, 1, 1], [], []>} : vector<6x128xbf16>, vector<128x1024xbf16>, vector<6x1024xf32> -> vector<6x1024xf32>
    %7 = arith.maximumf %3, %6 : vector<6x1024xf32>
    %c0_9 = arith.constant 0 : index
    %c2 = arith.constant 2 : index
    %c0_10 = arith.constant 0 : index
    %c0_11 = arith.constant 0 : index
    %8 = vector.load %arg1[%c0_9, %c2, %c0_10, %c0_11] : memref<1x4x128x1024xbf16, #tpu.memory_space<vmem>>, vector<1x1x128x1024xbf16>
    %9 = vector.shape_cast %8 : vector<1x1x128x1024xbf16> to vector<128x1024xbf16>
    %cst_12 = arith.constant dense<0.000000e+00> : vector<6x1024xf32>
    %10 = tpu.matmul %0, %9, %cst_12 {dimension_numbers = #tpu.dot_dimension_numbers<[1], [0], [0], [1], [0, 0, 1, 1], [], []>} : vector<6x128xbf16>, vector<128x1024xbf16>, vector<6x1024xf32> -> vector<6x1024xf32>
    %11 = arith.maximumf %7, %10 : vector<6x1024xf32>
    %c0_13 = arith.constant 0 : index
    %c3 = arith.constant 3 : index
    %c0_14 = arith.constant 0 : index
    %c0_15 = arith.constant 0 : index
    %12 = vector.load %arg1[%c0_13, %c3, %c0_14, %c0_15] : memref<1x4x128x1024xbf16, #tpu.memory_space<vmem>>, vector<1x1x128x1024xbf16>
    %13 = vector.shape_cast %12 : vector<1x1x128x1024xbf16> to vector<128x1024xbf16>
    %cst_16 = arith.constant dense<0.000000e+00> : vector<6x1024xf32>
    %14 = tpu.matmul %0, %13, %cst_16 {dimension_numbers = #tpu.dot_dimension_numbers<[1], [0], [0], [1], [0, 0, 1, 1], [], []>} : vector<6x128xbf16>, vector<128x1024xbf16>, vector<6x1024xf32> -> vector<6x1024xf32>
    %15 = arith.maximumf %11, %14 : vector<6x1024xf32>
    %c0_17 = arith.constant 0 : index
    %c0_18 = arith.constant 0 : index
    %16 = vector.load %arg3[%c0_17, %c0_18] : memref<6x1xf32, #tpu.memory_space<vmem>>, vector<6x1xf32>
    %17 = vector.broadcast %16 : vector<6x1xf32> to vector<6x1024xf32>
    %18 = arith.addf %15, %17 : vector<6x1024xf32>
    %cst_19 = arith.constant 0.000000e+00 : f32
    %19 = vector.broadcast %cst_19 : f32 to vector<6x1024xf32>
    %20 = arith.maximumf %18, %19 : vector<6x1024xf32>
    %21 = arith.truncf %20 : vector<6x1024xf32> to vector<6x1024xbf16>
    %c0_20 = arith.constant 0 : index
    %c0_21 = arith.constant 0 : index
    %c0_22 = arith.constant 0 : index
    %22 = vector.load %arg4[%c0_20, %c0_21, %c0_22] : memref<1x6x1024xbf16, #tpu.memory_space<vmem>>, vector<1x6x1024xbf16>
    %23 = vector.shape_cast %22 : vector<1x6x1024xbf16> to vector<6x1024xbf16>
    %24 = vector.shape_cast %21 : vector<6x1024xbf16> to vector<1x6x1024xbf16>
    tpu.vector_store %arg4[%c0_20, %c0_21, %c0_22], %24 {strides = array<i32>} : memref<1x6x1024xbf16, #tpu.memory_space<vmem>>, vector<1x6x1024xbf16>,
    return
  }
  func.func @transform_0(%arg0: i32) -> (i32, i32, i32, i32) {
    %c0_i32 = arith.constant 0 : i32
    %c0_i32_0 = arith.constant 0 : i32
    %c0_i32_1 = arith.constant 0 : i32
    %c0_i32_2 = arith.constant 0 : i32
    return %arg0, %c0_i32, %c0_i32_0, %c0_i32_1 : i32, i32, i32, i32
  }
  func.func @transform_1(%arg0: i32) -> (i32, i32) {
    %c0_i32 = arith.constant 0 : i32
    %c0_i32_0 = arith.constant 0 : i32
    %c0_i32_1 = arith.constant 0 : i32
    return %c0_i32, %c0_i32_0 : i32, i32
  }
  func.func @transform_2(%arg0: i32) -> (i32, i32) {
    %c0_i32 = arith.constant 0 : i32
    %c0_i32_0 = arith.constant 0 : i32
    %c0_i32_1 = arith.constant 0 : i32
    return %c0_i32, %c0_i32_0 : i32, i32
  }
  func.func @transform_3(%arg0: i32) -> (i32, i32, i32) {
    %c0_i32 = arith.constant 0 : i32
    %c0_i32_0 = arith.constant 0 : i32
    %c0_i32_1 = arith.constant 0 : i32
    return %arg0, %c0_i32, %c0_i32_0 : i32, i32, i32
  }
}

module attributes {stable_mosaic.version = 11 : i64} {
  func.func @_conv_pool_kernel(%arg0: i32, %arg1: memref<1x4x256x196xbf16, #tpu.memory_space<vmem>>, %arg2: memref<16x256xbf16, #tpu.memory_space<vmem>>, %arg3: memref<16x1xf32, #tpu.memory_space<vmem>>, %arg4: memref<1x16x196xbf16, #tpu.memory_space<vmem>>) attributes {dimension_semantics = [#tpu.dimension_semantics<parallel>], iteration_bounds = array<i64: 2>, scalar_prefetch = 0 : i64, scratch_operands = 0 : i64, tpu.core_type = #tpu.core_type<tc>, window_params = [{transform_indices = @transform_0, window_bounds = array<i64: 1, 4, 256, 196>}, {pipeline_mode = #tpu.pipeline_mode<synchronous>, transform_indices = @transform_1, window_bounds = array<i64: 16, 256>}, {pipeline_mode = #tpu.pipeline_mode<synchronous>, transform_indices = @transform_2, window_bounds = array<i64: 16, 1>}, {transform_indices = @transform_3, window_bounds = array<i64: 1, 16, 196>}]} {
    %c0 = arith.constant 0 : index
    %c0_0 = arith.constant 0 : index
    %0 = vector.load %arg2[%c0, %c0_0] : memref<16x256xbf16, #tpu.memory_space<vmem>>, vector<16x256xbf16>
    %c0_1 = arith.constant 0 : index
    %c0_2 = arith.constant 0 : index
    %c0_3 = arith.constant 0 : index
    %c0_4 = arith.constant 0 : index
    %1 = vector.load %arg1[%c0_1, %c0_2, %c0_3, %c0_4] : memref<1x4x256x196xbf16, #tpu.memory_space<vmem>>, vector<1x1x256x196xbf16>
    %2 = vector.shape_cast %1 : vector<1x1x256x196xbf16> to vector<256x196xbf16>
    %cst = arith.constant dense<0.000000e+00> : vector<16x196xf32>
    %3 = tpu.matmul %0, %2, %cst {dimension_numbers = #tpu.dot_dimension_numbers<[1], [0], [0], [1], [0, 0, 1, 1], [], []>} : vector<16x256xbf16>, vector<256x196xbf16>, vector<16x196xf32> -> vector<16x196xf32>
    %c0_5 = arith.constant 0 : index
    %c1 = arith.constant 1 : index
    %c0_6 = arith.constant 0 : index
    %c0_7 = arith.constant 0 : index
    %4 = vector.load %arg1[%c0_5, %c1, %c0_6, %c0_7] : memref<1x4x256x196xbf16, #tpu.memory_space<vmem>>, vector<1x1x256x196xbf16>
    %5 = vector.shape_cast %4 : vector<1x1x256x196xbf16> to vector<256x196xbf16>
    %cst_8 = arith.constant dense<0.000000e+00> : vector<16x196xf32>
    %6 = tpu.matmul %0, %5, %cst_8 {dimension_numbers = #tpu.dot_dimension_numbers<[1], [0], [0], [1], [0, 0, 1, 1], [], []>} : vector<16x256xbf16>, vector<256x196xbf16>, vector<16x196xf32> -> vector<16x196xf32>
    %7 = arith.maximumf %3, %6 : vector<16x196xf32>
    %c0_9 = arith.constant 0 : index
    %c2 = arith.constant 2 : index
    %c0_10 = arith.constant 0 : index
    %c0_11 = arith.constant 0 : index
    %8 = vector.load %arg1[%c0_9, %c2, %c0_10, %c0_11] : memref<1x4x256x196xbf16, #tpu.memory_space<vmem>>, vector<1x1x256x196xbf16>
    %9 = vector.shape_cast %8 : vector<1x1x256x196xbf16> to vector<256x196xbf16>
    %cst_12 = arith.constant dense<0.000000e+00> : vector<16x196xf32>
    %10 = tpu.matmul %0, %9, %cst_12 {dimension_numbers = #tpu.dot_dimension_numbers<[1], [0], [0], [1], [0, 0, 1, 1], [], []>} : vector<16x256xbf16>, vector<256x196xbf16>, vector<16x196xf32> -> vector<16x196xf32>
    %11 = arith.maximumf %7, %10 : vector<16x196xf32>
    %c0_13 = arith.constant 0 : index
    %c3 = arith.constant 3 : index
    %c0_14 = arith.constant 0 : index
    %c0_15 = arith.constant 0 : index
    %12 = vector.load %arg1[%c0_13, %c3, %c0_14, %c0_15] : memref<1x4x256x196xbf16, #tpu.memory_space<vmem>>, vector<1x1x256x196xbf16>
    %13 = vector.shape_cast %12 : vector<1x1x256x196xbf16> to vector<256x196xbf16>
    %cst_16 = arith.constant dense<0.000000e+00> : vector<16x196xf32>
    %14 = tpu.matmul %0, %13, %cst_16 {dimension_numbers = #tpu.dot_dimension_numbers<[1], [0], [0], [1], [0, 0, 1, 1], [], []>} : vector<16x256xbf16>, vector<256x196xbf16>, vector<16x196xf32> -> vector<16x196xf32>
    %15 = arith.maximumf %11, %14 : vector<16x196xf32>
    %c0_17 = arith.constant 0 : index
    %c0_18 = arith.constant 0 : index
    %16 = vector.load %arg3[%c0_17, %c0_18] : memref<16x1xf32, #tpu.memory_space<vmem>>, vector<16x1xf32>
    %17 = vector.broadcast %16 : vector<16x1xf32> to vector<16x196xf32>
    %18 = arith.addf %15, %17 : vector<16x196xf32>
    %cst_19 = arith.constant 0.000000e+00 : f32
    %19 = vector.broadcast %cst_19 : f32 to vector<16x196xf32>
    %20 = arith.maximumf %18, %19 : vector<16x196xf32>
    %21 = arith.truncf %20 : vector<16x196xf32> to vector<16x196xbf16>
    %c0_20 = arith.constant 0 : index
    %c0_21 = arith.constant 0 : index
    %c0_22 = arith.constant 0 : index
    %22 = vector.load %arg4[%c0_20, %c0_21, %c0_22] : memref<1x16x196xbf16, #tpu.memory_space<vmem>>, vector<1x16x196xbf16>
    %23 = vector.shape_cast %22 : vector<1x16x196xbf16> to vector<16x196xbf16>
    %24 = vector.shape_cast %21 : vector<16x196xbf16> to vector<1x16x196xbf16>
    tpu.vector_store %arg4[%c0_20, %c0_21, %c0_22], %24 {strides = array<i32>} : memref<1x16x196xbf16, #tpu.memory_space<vmem>>, vector<1x16x196xbf16>,
    return
  }
  func.func @transform_0(%arg0: i32) -> (i32, i32, i32, i32) {
    %c0_i32 = arith.constant 0 : i32
    %c0_i32_0 = arith.constant 0 : i32
    %c0_i32_1 = arith.constant 0 : i32
    %c0_i32_2 = arith.constant 0 : i32
    return %arg0, %c0_i32, %c0_i32_0, %c0_i32_1 : i32, i32, i32, i32
  }
  func.func @transform_1(%arg0: i32) -> (i32, i32) {
    %c0_i32 = arith.constant 0 : i32
    %c0_i32_0 = arith.constant 0 : i32
    %c0_i32_1 = arith.constant 0 : i32
    return %c0_i32, %c0_i32_0 : i32, i32
  }
  func.func @transform_2(%arg0: i32) -> (i32, i32) {
    %c0_i32 = arith.constant 0 : i32
    %c0_i32_0 = arith.constant 0 : i32
    %c0_i32_1 = arith.constant 0 : i32
    return %c0_i32, %c0_i32_0 : i32, i32
  }
  func.func @transform_3(%arg0: i32) -> (i32, i32, i32) {
    %c0_i32 = arith.constant 0 : i32
    %c0_i32_0 = arith.constant 0 : i32
    %c0_i32_1 = arith.constant 0 : i32
    return %arg0, %c0_i32, %c0_i32_0 : i32, i32, i32
  }
}

module attributes {stable_mosaic.version = 11 : i64} {
  func.func @_fc_chain_kernel(%arg0: i32, %arg1: memref<2x3136xbf16, #tpu.memory_space<vmem>>, %arg2: memref<3136x120xbf16, #tpu.memory_space<vmem>>, %arg3: memref<1x120xf32, #tpu.memory_space<vmem>>, %arg4: memref<120x84xbf16, #tpu.memory_space<vmem>>, %arg5: memref<1x84xf32, #tpu.memory_space<vmem>>, %arg6: memref<84x2xbf16, #tpu.memory_space<vmem>>, %arg7: memref<1x2xf32, #tpu.memory_space<vmem>>, %arg8: memref<2x2xf32, #tpu.memory_space<vmem>>) attributes {dimension_semantics = [#tpu.dimension_semantics<arbitrary>], iteration_bounds = array<i64: 1>, scalar_prefetch = 0 : i64, scratch_operands = 0 : i64, tpu.core_type = #tpu.core_type<tc>, window_params = [{pipeline_mode = #tpu.pipeline_mode<synchronous>, transform_indices = @transform_0, window_bounds = array<i64: 2, 3136>}, {pipeline_mode = #tpu.pipeline_mode<synchronous>, transform_indices = @transform_1, window_bounds = array<i64: 3136, 120>}, {pipeline_mode = #tpu.pipeline_mode<synchronous>, transform_indices = @transform_2, window_bounds = array<i64: 1, 120>}, {pipeline_mode = #tpu.pipeline_mode<synchronous>, transform_indices = @transform_3, window_bounds = array<i64: 120, 84>}, {pipeline_mode = #tpu.pipeline_mode<synchronous>, transform_indices = @transform_4, window_bounds = array<i64: 1, 84>}, {pipeline_mode = #tpu.pipeline_mode<synchronous>, transform_indices = @transform_5, window_bounds = array<i64: 84, 2>}, {pipeline_mode = #tpu.pipeline_mode<synchronous>, transform_indices = @transform_6, window_bounds = array<i64: 1, 2>}, {pipeline_mode = #tpu.pipeline_mode<synchronous>, transform_indices = @transform_7, window_bounds = array<i64: 2, 2>}]} {
    %c0 = arith.constant 0 : index
    %c0_0 = arith.constant 0 : index
    %0 = vector.load %arg1[%c0, %c0_0] : memref<2x3136xbf16, #tpu.memory_space<vmem>>, vector<2x3136xbf16>
    %c0_1 = arith.constant 0 : index
    %c0_2 = arith.constant 0 : index
    %1 = vector.load %arg2[%c0_1, %c0_2] : memref<3136x120xbf16, #tpu.memory_space<vmem>>, vector<3136x120xbf16>
    %cst = arith.constant dense<0.000000e+00> : vector<2x120xf32>
    %2 = tpu.matmul %0, %1, %cst {dimension_numbers = #tpu.dot_dimension_numbers<[1], [0], [0], [1], [0, 0, 1, 1], [], []>} : vector<2x3136xbf16>, vector<3136x120xbf16>, vector<2x120xf32> -> vector<2x120xf32>
    %c0_3 = arith.constant 0 : index
    %c0_4 = arith.constant 0 : index
    %3 = vector.load %arg3[%c0_3, %c0_4] : memref<1x120xf32, #tpu.memory_space<vmem>>, vector<1x120xf32>
    %4 = vector.broadcast %3 : vector<1x120xf32> to vector<2x120xf32>
    %5 = arith.addf %2, %4 : vector<2x120xf32>
    %cst_5 = arith.constant 0.000000e+00 : f32
    %6 = vector.broadcast %cst_5 : f32 to vector<2x120xf32>
    %7 = arith.maximumf %5, %6 : vector<2x120xf32>
    %8 = arith.truncf %7 : vector<2x120xf32> to vector<2x120xbf16>
    %c0_6 = arith.constant 0 : index
    %c0_7 = arith.constant 0 : index
    %9 = vector.load %arg4[%c0_6, %c0_7] : memref<120x84xbf16, #tpu.memory_space<vmem>>, vector<120x84xbf16>
    %cst_8 = arith.constant dense<0.000000e+00> : vector<2x84xf32>
    %10 = tpu.matmul %8, %9, %cst_8 {dimension_numbers = #tpu.dot_dimension_numbers<[1], [0], [0], [1], [0, 0, 1, 1], [], []>} : vector<2x120xbf16>, vector<120x84xbf16>, vector<2x84xf32> -> vector<2x84xf32>
    %c0_9 = arith.constant 0 : index
    %c0_10 = arith.constant 0 : index
    %11 = vector.load %arg5[%c0_9, %c0_10] : memref<1x84xf32, #tpu.memory_space<vmem>>, vector<1x84xf32>
    %12 = vector.broadcast %11 : vector<1x84xf32> to vector<2x84xf32>
    %13 = arith.addf %10, %12 : vector<2x84xf32>
    %cst_11 = arith.constant 0.000000e+00 : f32
    %14 = vector.broadcast %cst_11 : f32 to vector<2x84xf32>
    %15 = arith.maximumf %13, %14 : vector<2x84xf32>
    %16 = arith.truncf %15 : vector<2x84xf32> to vector<2x84xbf16>
    %c0_12 = arith.constant 0 : index
    %c0_13 = arith.constant 0 : index
    %17 = vector.load %arg6[%c0_12, %c0_13] : memref<84x2xbf16, #tpu.memory_space<vmem>>, vector<84x2xbf16>
    %cst_14 = arith.constant dense<0.000000e+00> : vector<2x2xf32>
    %18 = tpu.matmul %16, %17, %cst_14 {dimension_numbers = #tpu.dot_dimension_numbers<[1], [0], [0], [1], [0, 0, 1, 1], [], []>} : vector<2x84xbf16>, vector<84x2xbf16>, vector<2x2xf32> -> vector<2x2xf32>
    %c0_15 = arith.constant 0 : index
    %c0_16 = arith.constant 0 : index
    %19 = vector.load %arg7[%c0_15, %c0_16] : memref<1x2xf32, #tpu.memory_space<vmem>>, vector<1x2xf32>
    %20 = vector.broadcast %19 : vector<1x2xf32> to vector<2x2xf32>
    %21 = arith.addf %18, %20 : vector<2x2xf32>
    %c0_17 = arith.constant 0 : index
    %c0_18 = arith.constant 0 : index
    %22 = vector.load %arg8[%c0_17, %c0_18] : memref<2x2xf32, #tpu.memory_space<vmem>>, vector<2x2xf32>
    tpu.vector_store %arg8[%c0_17, %c0_18], %21 {strides = array<i32>} : memref<2x2xf32, #tpu.memory_space<vmem>>, vector<2x2xf32>,
    return
  }
  func.func @transform_0(%arg0: i32) -> (i32, i32) {
    %c0_i32 = arith.constant 0 : i32
    %c0_i32_0 = arith.constant 0 : i32
    %c0_i32_1 = arith.constant 0 : i32
    return %c0_i32, %c0_i32_0 : i32, i32
  }
  func.func @transform_1(%arg0: i32) -> (i32, i32) {
    %c0_i32 = arith.constant 0 : i32
    %c0_i32_0 = arith.constant 0 : i32
    %c0_i32_1 = arith.constant 0 : i32
    return %c0_i32, %c0_i32_0 : i32, i32
  }
  func.func @transform_2(%arg0: i32) -> (i32, i32) {
    %c0_i32 = arith.constant 0 : i32
    %c0_i32_0 = arith.constant 0 : i32
    %c0_i32_1 = arith.constant 0 : i32
    return %c0_i32, %c0_i32_0 : i32, i32
  }
  func.func @transform_3(%arg0: i32) -> (i32, i32) {
    %c0_i32 = arith.constant 0 : i32
    %c0_i32_0 = arith.constant 0 : i32
    %c0_i32_1 = arith.constant 0 : i32
    return %c0_i32, %c0_i32_0 : i32, i32
  }
  func.func @transform_4(%arg0: i32) -> (i32, i32) {
    %c0_i32 = arith.constant 0 : i32
    %c0_i32_0 = arith.constant 0 : i32
    %c0_i32_1 = arith.constant 0 : i32
    return %c0_i32, %c0_i32_0 : i32, i32
  }
  func.func @transform_5(%arg0: i32) -> (i32, i32) {
    %c0_i32 = arith.constant 0 : i32
    %c0_i32_0 = arith.constant 0 : i32
    %c0_i32_1 = arith.constant 0 : i32
    return %c0_i32, %c0_i32_0 : i32, i32
  }
  func.func @transform_6(%arg0: i32) -> (i32, i32) {
    %c0_i32 = arith.constant 0 : i32
    %c0_i32_0 = arith.constant 0 : i32
    %c0_i32_1 = arith.constant 0 : i32
    return %c0_i32, %c0_i32_0 : i32, i32
  }
  func.func @transform_7(%arg0: i32) -> (i32, i32) {
    %c0_i32 = arith.constant 0 : i32
    %c0_i32_0 = arith.constant 0 : i32
    %c0_i32_1 = arith.constant 0 : i32
    return %c0_i32, %c0_i32_0 : i32, i32
  }
}

</mosaic_0001>

<llo_original>
// kernel: lenet5_forward.3
$region0: #{lenet5_forward.3}
  #allocation0 [shape = 'u32[]', space=smem, size = 0x4, offset = 0x4, fixed_abs, tag = 'smem constant byte address 0x4 - core index']
  #allocation1 [shape = 'u32[72,128]{1,0:T(1,128)}', space=vmem, size = 0x9000, scoped, tag = 'internal scratch']
  %s0 = inlined_call_operand.vmem [shape: bf16[2,4,128,1024], index: 0, kind: input, shape index: {}]
  %s1 = inlined_call_operand.vmem [shape: bf16[6,128], index: 1, kind: input, shape index: {}]
  %s2 = inlined_call_operand.vmem [shape: f32[6,1], index: 2, kind: input, shape index: {}]
  %s3 = inlined_call_operand.vmem [shape: bf16[2,6,1024], index: 3, kind: output, shape index: {}]
  %s4 = sld [smem:[#allocation0]]
  $region45: #{lenet5_forward.3} parent=0
    _
  %s6 = ssub.s32 1, %s4
  %s7 = scalar_select 0, %s6, %s4
  loop: start=0, step=1, limit=4
  $region2: #{lenet5_forward.3} parent=0 // loop_pre_header
    _
  $region3: #{lenet5_forward.3} parent=0 // loop_header
    %s9 = sphi 0, %s13
    %p10 = scmp.ge.s32.totalorder %s9, 4
    %s19 = sphi 0, %s21
    %s22 = sphi 0, %s19
    %s23 = sphi 0, %s22
    %s39 = sphi 0, %s23
    %s43 = sphi 0, %s43
    %s45 = sphi 0, %s43
    %s46 = sphi 0, %s45
    %s60 = sphi 0, %s46
    %s64 = sphi 0, %s64
    %s66 = sphi 0, %s64
    %s67 = sphi 0, %s66
    %s81 = sphi 0, %s67
    %s87 = sphi 0, %s89
    %s90 = sphi 0, %s87
    %s91 = sphi 0, %s90
    %s107 = sphi 0, %s91
  $region4: #{lenet5_forward.3} parent=0 // loop_header_branch
    %12 = sbr.rel (%p10) target = $region8
  $region5: #{lenet5_forward.3} parent=0 // loop_body
    %s14 = ssub.s32 %s9, 1
    %s15 = ssub.s32 %s9, 2
    %s16 = sadd.s32 %s9, 1
    %s17 = ssub.s32 %s9, %s16
    %p18 = scmp.eq.s32.totalorder %s17, 0
    %s20 = sadd.s32 %s19, 1
    %s21 = scalar_select %p18, %s19, %s20
    %p24 = pneg %p18
    %p25 = scmp.eq.s32.totalorder %s9, 1
    %p26 = por %p24, %p25
    %p27 = scmp.ne.s32.totalorder %s19, %s22
    %p28 = scmp.eq.s32.totalorder %s9, 0
    %p29 = por %p27, %p28
    %p30 = scmp.ne.s32.totalorder %s19, %s22
    %p31 = scmp.eq.s32.totalorder %s14, 1
    %p32 = por %p30, %p31
    %p33 = scmp.ne.s32.totalorder %s22, %s23
    %p34 = scmp.eq.s32.totalorder %s14, 0
    %p35 = por %p33, %p34
    %p36 = scmp.ne.s32.totalorder %s22, %s23
    %p37 = scmp.eq.s32.totalorder %s15, 1
    %p38 = por %p36, %p37
    %p40 = scmp.ne.s32.totalorder %s23, %s39
    %p41 = scmp.eq.s32.totalorder %s15, 0
    %p42 = por %p40, %p41
    %s44 = sadd.s32 %s43, 1
    %p47 = scmp.eq.s32.totalorder %s9, 1
    %p48 = scmp.ne.s32.totalorder %s43, %s45
    %p49 = scmp.eq.s32.totalorder %s9, 0
    %p50 = por %p48, %p49
    %p51 = scmp.ne.s32.totalorder %s43, %s45
    %p52 = scmp.eq.s32.totalorder %s14, 1
    %p53 = por %p51, %p52
    %p54 = scmp.ne.s32.totalorder %s45, %s46
    %p55 = scmp.eq.s32.totalorder %s14, 0
    %p56 = por %p54, %p55
    %p57 = scmp.ne.s32.totalorder %s45, %s46
    %p58 = scmp.eq.s32.totalorder %s15, 1
    %p59 = por %p57, %p58
    %p61 = scmp.ne.s32.totalorder %s46, %s60
    %p62 = scmp.eq.s32.totalorder %s15, 0
    %p63 = por %p61, %p62
    %s65 = sadd.s32 %s64, 1
    %p68 = scmp.eq.s32.totalorder %s9, 1
    %p69 = scmp.ne.s32.totalorder %s64, %s66
    %p70 = scmp.eq.s32.totalorder %s9, 0
    %p71 = por %p69, %p70
    %p72 = scmp.ne.s32.totalorder %s64, %s66
    %p73 = scmp.eq.s32.totalorder %s14, 1
    %p74 = por %p72, %p73
    %p75 = scmp.ne.s32.totalorder %s66, %s67
    %p76 = scmp.eq.s32.totalorder %s14, 0
    %p77 = por %p75, %p76
    %p78 = scmp.ne.s32.totalorder %s66, %s67
    %p79 = scmp.eq.s32.totalorder %s15, 1
    %p80 = por %p78, %p79
    %p82 = scmp.ne.s32.totalorder %s67, %s81
    %p83 = scmp.eq.s32.totalorder %s15, 0
    %p84 = por %p82, %p83
    %s85 = ssub.s32 %s9, %s16
    %p86 = scmp.eq.s32.totalorder %s85, 0
    %s88 = sadd.s32 %s87, 1
    %s89 = scalar_select %p86, %s87, %s88
    %p92 = pneg %p86
    %p93 = scmp.eq.s32.totalorder %s9, 1
    %p94 = por %p92, %p93
    %p95 = scmp.ne.s32.totalorder %s87, %s90
    %p96 = scmp.eq.s32.totalorder %s9, 0
    %p97 = por %p95, %p96
    %p98 = scmp.ne.s32.totalorder %s87, %s90
    %p99 = scmp.eq.s32.totalorder %s14, 1
    %p100 = por %p98, %p99
    %p101 = scmp.ne.s32.totalorder %s90, %s91
    %p102 = scmp.eq.s32.totalorder %s14, 0
    %p103 = por %p101, %p102
    %p104 = scmp.ne.s32.totalorder %s90, %s91
    %p105 = scmp.eq.s32.totalorder %s15, 1
    %p106 = por %p104, %p105
    %p108 = scmp.ne.s32.totalorder %s91, %s107
    %p109 = scmp.eq.s32.totalorder %s15, 0
    %p110 = por %p108, %p109
    %p111 = scmp.le.s32.totalorder 1, %s9
    %p112 = scmp.lt.s32.totalorder %s9, 3
    %p113 = pnand %p111, %p112
    %p114 = pneg %p113
    // Predicated region
    $region9: #{lenet5_forward.3} parent=5 // pred_check
      _
    $region10: #{lenet5_forward.3} parent=5 // pred_check_branch
      %116 = sbr.rel (%p113) target = $region12
    $region11: #{lenet5_forward.3} parent=5 // pred_region
      %s117 = ssub.s32 %s9, 1
      // Predicated region
      $region13: #{lenet5_forward.3} parent=11 // pred_check
        %p118 = pneg %p56
      $region14: #{lenet5_forward.3} parent=11 // pred_check_branch
        %120 = sbr.rel (%p118) target = $region16
      $region15: #{lenet5_forward.3} parent=11 // pred_region
        _
      $region16: #{lenet5_forward.3} parent=11 // pred_fallthru
        _
      // Predicated region
      $region17: #{lenet5_forward.3} parent=11 // pred_check
        %p121 = pneg %p77
      $region18: #{lenet5_forward.3} parent=11 // pred_check_branch
        %123 = sbr.rel (%p121) target = $region20
      $region19: #{lenet5_forward.3} parent=11 // pred_region
        _
      $region20: #{lenet5_forward.3} parent=11 // pred_fallthru
        _
    $region12: #{lenet5_forward.3} parent=5 // pred_fallthru
      _
    %p124 = scmp.lt.s32.totalorder %s9, 2
    // Predicated region
    $region21: #{lenet5_forward.3} parent=5 // pred_check
      %p125 = pneg %p124
    $region22: #{lenet5_forward.3} parent=5 // pred_check_branch
      %127 = sbr.rel (%p125) target = $region24
    $region23: #{lenet5_forward.3} parent=5 // pred_region
      // Predicated region
      $region25: #{lenet5_forward.3} parent=23 // pred_check
        %p128 = pneg %p29
      $region26: #{lenet5_forward.3} parent=23 // pred_check_branch
        %130 = sbr.rel (%p128) target = $region28
      $region27: #{lenet5_forward.3} parent=23 // pred_region
        %p131 = scmp.lt.s32.totalorder %s9, 1
        %s132 = scalar_select %p131, %s9, 1
        %s133 = smul.addr %s132, 512
        %s134 = smul.addr %s133, 4
        %s135 = scalar_lea.vmem %s0, %s134
      $region28: #{lenet5_forward.3} parent=23 // pred_fallthru
        _
    $region24: #{lenet5_forward.3} parent=5 // pred_fallthru
      _
    %p136 = scmp.le.s32.totalorder 1, %s9
    %p137 = scmp.lt.s32.totalorder %s9, 3
    %p138 = pnand %p136, %p137
    %p139 = pneg %p138
    // Predicated region
    $region29: #{lenet5_forward.3} parent=5 // pred_check
      _
    $region30: #{lenet5_forward.3} parent=5 // pred_check_branch
      %141 = sbr.rel (%p138) target = $region32
    $region31: #{lenet5_forward.3} parent=5 // pred_region
      %s142 = ssub.s32 %s9, 1
      %p143 = scmp.lt.s32.totalorder %s14, 1
      %s144 = scalar_select %p143, %s14, 1
      %s145 = smul.addr %s144, 512
      %s146 = smul.addr %s145, 4
      %s147 = scalar_lea.vmem %s0, %s146
      %p148 = pneg %p35
      %p149 = pneg %p32
      %p150 = pneg %p56
      %p151 = pneg %p53
      %p152 = pneg %p77
      %p153 = pneg %p74
      %p154 = pneg %p103
      %p155 = pneg %p100
      %p156 = scmp.lt.s32.totalorder %s14, 1
      %s157 = scalar_select %p156, %s14, 1
      %s158 = smul.addr %s157, 8
      %s159 = smul.addr %s158, 4
      %s160 = scalar_lea.vmem %s3, %s159
      %p161 = scmp.lt.s32.totalorder %s14, 1
      %s162 = scalar_select %p161, %s14, 1
      %s163 = smul.addr %s162, 512
      %s164 = smul.addr %s163, 4
      %s165 = scalar_lea.vmem %s0, %s164
      %p166 = scmp.lt.s32.totalorder %s14, 1
      %s167 = scalar_select %p166, %s14, 1
      %s168 = smul.addr %s167, 8
      %s169 = smul.addr %s168, 4
      %s170 = scalar_lea.vmem %s3, %s169
      %v171 = vld [vmem:[%s1] sm:$0x7]
      %v172 = vld [vmem:[%s165] sm:$0xff]
      %v173 = vld [vmem:[%s165 + $0x8] sm:$0xff]
      %v174 = vld [vmem:[%s165 + $0x10] sm:$0xff]
      %v175 = vld [vmem:[%s165 + $0x18] sm:$0xff]
      %v176 = vld [vmem:[%s165 + $0x20] sm:$0xff]
      %v177 = vld [vmem:[%s165 + $0x28] sm:$0xff]
      %v178 = vld [vmem:[%s165 + $0x30] sm:$0xff]
      %v179 = vld [vmem:[%s165 + $0x38] sm:$0xff]
      %v180 = vld [vmem:[%s165 + $0x40] sm:$0xff]
      %v181 = vld [vmem:[%s165 + $0x48] sm:$0xff]
      %v182 = vld [vmem:[%s165 + $0x50] sm:$0xff]
      %v183 = vld [vmem:[%s165 + $0x58] sm:$0xff]
      %v184 = vld [vmem:[%s165 + $0x60] sm:$0xff]
      %v185 = vld [vmem:[%s165 + $0x68] sm:$0xff]
      %v186 = vld [vmem:[%s165 + $0x70] sm:$0xff]
      %v187 = vld [vmem:[%s165 + $0x78] sm:$0xff]
      %v188 = vld [vmem:[%s165 + $0x80] sm:$0xff]
      %v189 = vld [vmem:[%s165 + $0x88] sm:$0xff]
      %v190 = vld [vmem:[%s165 + $0x90] sm:$0xff]
      %v191 = vld [vmem:[%s165 + $0x98] sm:$0xff]
      %v192 = vld [vmem:[%s165 + $0xa0] sm:$0xff]
      %v193 = vld [vmem:[%s165 + $0xa8] sm:$0xff]
      %v194 = vld [vmem:[%s165 + $0xb0] sm:$0xff]
      %v195 = vld [vmem:[%s165 + $0xb8] sm:$0xff]
      %v196 = vld [vmem:[%s165 + $0xc0] sm:$0xff]
      %v197 = vld [vmem:[%s165 + $0xc8] sm:$0xff]
      %v198 = vld [vmem:[%s165 + $0xd0] sm:$0xff]
      %v199 = vld [vmem:[%s165 + $0xd8] sm:$0xff]
      %v200 = vld [vmem:[%s165 + $0xe0] sm:$0xff]
      %v201 = vld [vmem:[%s165 + $0xe8] sm:$0xff]
      %v202 = vld [vmem:[%s165 + $0xf0] sm:$0xff]
      %v203 = vld [vmem:[%s165 + $0xf8] sm:$0xff]
      %v204 = vld [vmem:[%s165 + $0x100] sm:$0xff]
      %v205 = vld [vmem:[%s165 + $0x108] sm:$0xff]
      %v206 = vld [vmem:[%s165 + $0x110] sm:$0xff]
      %v207 = vld [vmem:[%s165 + $0x118] sm:$0xff]
      %v208 = vld [vmem:[%s165 + $0x120] sm:$0xff]
      %v209 = vld [vmem:[%s165 + $0x128] sm:$0xff]
      %v210 = vld [vmem:[%s165 + $0x130] sm:$0xff]
      %v211 = vld [vmem:[%s165 + $0x138] sm:$0xff]
      %v212 = vld [vmem:[%s165 + $0x140] sm:$0xff]
      %v213 = vld [vmem:[%s165 + $0x148] sm:$0xff]
      %v214 = vld [vmem:[%s165 + $0x150] sm:$0xff]
      %v215 = vld [vmem:[%s165 + $0x158] sm:$0xff]
      %v216 = vld [vmem:[%s165 + $0x160] sm:$0xff]
      %v217 = vld [vmem:[%s165 + $0x168] sm:$0xff]
      %v218 = vld [vmem:[%s165 + $0x170] sm:$0xff]
      %v219 = vld [vmem:[%s165 + $0x178] sm:$0xff]
      %v220 = vld [vmem:[%s165 + $0x180] sm:$0xff]
      %v221 = vld [vmem:[%s165 + $0x188] sm:$0xff]
      %v222 = vld [vmem:[%s165 + $0x190] sm:$0xff]
      %v223 = vld [vmem:[%s165 + $0x198] sm:$0xff]
      %v224 = vld [vmem:[%s165 + $0x1a0] sm:$0xff]
      %v225 = vld [vmem:[%s165 + $0x1a8] sm:$0xff]
      %v226 = vld [vmem:[%s165 + $0x1b0] sm:$0xff]
      %v227 = vld [vmem:[%s165 + $0x1b8] sm:$0xff]
      %v228 = vld [vmem:[%s165 + $0x1c0] sm:$0xff]
      %v229 = vld [vmem:[%s165 + $0x1c8] sm:$0xff]
      %v230 = vld [vmem:[%s165 + $0x1d0] sm:$0xff]
      %v231 = vld [vmem:[%s165 + $0x1d8] sm:$0xff]
      %v232 = vld [vmem:[%s165 + $0x1e0] sm:$0xff]
      %v233 = vld [vmem:[%s165 + $0x1e8] sm:$0xff]
      %v234 = vld [vmem:[%s165 + $0x1f0] sm:$0xff]
      %v235 = vld [vmem:[%s165 + $0x1f8] sm:$0xff]
      %v300 = vunpack.c.l.b16 %v172
      %v301 = vunpack.c.h.b16 %v172
      %v302 = vunpack.c.l.b16 %v173
      %v303 = vunpack.c.h.b16 %v173
      %v304 = vunpack.c.l.b16 %v174
      %v305 = vunpack.c.h.b16 %v174
      %v306 = vunpack.c.l.b16 %v175
      %v307 = vunpack.c.h.b16 %v175
      %v308 = vunpack.c.l.b16 %v176
      %v309 = vunpack.c.h.b16 %v176
      %v310 = vunpack.c.l.b16 %v177
      %v311 = vunpack.c.h.b16 %v177
      %v312 = vunpack.c.l.b16 %v178
      %v313 = vunpack.c.h.b16 %v178
      %v314 = vunpack.c.l.b16 %v179
      %v315 = vunpack.c.h.b16 %v179
      %v316 = vunpack.c.l.b16 %v180
      %v317 = vunpack.c.h.b16 %v180
      %v318 = vunpack.c.l.b16 %v181
      %v319 = vunpack.c.h.b16 %v181
      %v320 = vunpack.c.l.b16 %v182
      %v321 = vunpack.c.h.b16 %v182
      %v322 = vunpack.c.l.b16 %v183
      %v323 = vunpack.c.h.b16 %v183
      %v324 = vunpack.c.l.b16 %v184
      %v325 = vunpack.c.h.b16 %v184
      %v326 = vunpack.c.l.b16 %v185
      %v327 = vunpack.c.h.b16 %v185
      %v328 = vunpack.c.l.b16 %v186
      %v329 = vunpack.c.h.b16 %v186
      %v330 = vunpack.c.l.b16 %v187
      %v331 = vunpack.c.h.b16 %v187
      %v332 = vunpack.c.l.b16 %v188
      %v333 = vunpack.c.h.b16 %v188
      %v334 = vunpack.c.l.b16 %v189
      %v335 = vunpack.c.h.b16 %v189
      %v336 = vunpack.c.l.b16 %v190
      %v337 = vunpack.c.h.b16 %v190
      %v338 = vunpack.c.l.b16 %v191
      %v339 = vunpack.c.h.b16 %v191
      %v340 = vunpack.c.l.b16 %v192
      %v341 = vunpack.c.h.b16 %v192
      %v342 = vunpack.c.l.b16 %v193
      %v343 = vunpack.c.h.b16 %v193
      %v344 = vunpack.c.l.b16 %v194
      %v345 = vunpack.c.h.b16 %v194
      %v346 = vunpack.c.l.b16 %v195
      %v347 = vunpack.c.h.b16 %v195
      %v348 = vunpack.c.l.b16 %v196
      %v349 = vunpack.c.h.b16 %v196
      %v350 = vunpack.c.l.b16 %v197
      %v351 = vunpack.c.h.b16 %v197
      %v352 = vunpack.c.l.b16 %v198
      %v353 = vunpack.c.h.b16 %v198
      %v354 = vunpack.c.l.b16 %v199
      %v355 = vunpack.c.h.b16 %v199
      %v356 = vunpack.c.l.b16 %v200
      %v357 = vunpack.c.h.b16 %v200
      %v358 = vunpack.c.l.b16 %v201
      %v359 = vunpack.c.h.b16 %v201
      %v360 = vunpack.c.l.b16 %v202
      %v361 = vunpack.c.h.b16 %v202
      %v362 = vunpack.c.l.b16 %v203
      %v363 = vunpack.c.h.b16 %v203
      %v364 = vunpack.c.l.b16 %v204
      %v365 = vunpack.c.h.b16 %v204
      %v366 = vunpack.c.l.b16 %v205
      %v367 = vunpack.c.h.b16 %v205
      %v368 = vunpack.c.l.b16 %v206
      %v369 = vunpack.c.h.b16 %v206
      %v370 = vunpack.c.l.b16 %v207
      %v371 = vunpack.c.h.b16 %v207
      %v372 = vunpack.c.l.b16 %v208
      %v373 = vunpack.c.h.b16 %v208
      %v374 = vunpack.c.l.b16 %v209
      %v375 = vunpack.c.h.b16 %v209
      %v376 = vunpack.c.l.b16 %v210
      %v377 = vunpack.c.h.b16 %v210
      %v378 = vunpack.c.l.b16 %v211
      %v379 = vunpack.c.h.b16 %v211
      %v380 = vunpack.c.l.b16 %v212
      %v381 = vunpack.c.h.b16 %v212
      %v382 = vunpack.c.l.b16 %v213
      %v383 = vunpack.c.h.b16 %v213
      %v384 = vunpack.c.l.b16 %v214
      %v385 = vunpack.c.h.b16 %v214
      %v386 = vunpack.c.l.b16 %v215
      %v387 = vunpack.c.h.b16 %v215
      %v388 = vunpack.c.l.b16 %v216
      %v389 = vunpack.c.h.b16 %v216
      %v390 = vunpack.c.l.b16 %v217
      %v391 = vunpack.c.h.b16 %v217
      %v392 = vunpack.c.l.b16 %v218
      %v393 = vunpack.c.h.b16 %v218
      %v394 = vunpack.c.l.b16 %v219
      %v395 = vunpack.c.h.b16 %v219
      %v396 = vunpack.c.l.b16 %v220
      %v397 = vunpack.c.h.b16 %v220
      %v398 = vunpack.c.l.b16 %v221
      %v399 = vunpack.c.h.b16 %v221
      %v400 = vunpack.c.l.b16 %v222
      %v401 = vunpack.c.h.b16 %v222
      %v402 = vunpack.c.l.b16 %v223
      %v403 = vunpack.c.h.b16 %v223
      %v404 = vunpack.c.l.b16 %v224
      %v405 = vunpack.c.h.b16 %v224
      %v406 = vunpack.c.l.b16 %v225
      %v407 = vunpack.c.h.b16 %v225
      %v408 = vunpack.c.l.b16 %v226
      %v409 = vunpack.c.h.b16 %v226
      %v410 = vunpack.c.l.b16 %v227
      %v411 = vunpack.c.h.b16 %v227
      %v412 = vunpack.c.l.b16 %v228
      %v413 = vunpack.c.h.b16 %v228
      %v414 = vunpack.c.l.b16 %v229
      %v415 = vunpack.c.h.b16 %v229
      %v416 = vunpack.c.l.b16 %v230
      %v417 = vunpack.c.h.b16 %v230
      %v418 = vunpack.c.l.b16 %v231
      %v419 = vunpack.c.h.b16 %v231
      %v420 = vunpack.c.l.b16 %v232
      %v421 = vunpack.c.h.b16 %v232
      %v422 = vunpack.c.l.b16 %v233
      %v423 = vunpack.c.h.b16 %v233
      %v424 = vunpack.c.l.b16 %v234
      %v425 = vunpack.c.h.b16 %v234
      %v426 = vunpack.c.l.b16 %v235
      %v427 = vunpack.c.h.b16 %v235
      %v428 = vpack.c.b16 %v308, %v300
      %v429 = vpack.c.b16 %v309, %v301
      %v430 = vpack.c.b16 %v310, %v302
      %v431 = vpack.c.b16 %v311, %v303
      %v432 = vpack.c.b16 %v312, %v304
      %v433 = vpack.c.b16 %v313, %v305
      %v434 = vpack.c.b16 %v314, %v306
      %v435 = vpack.c.b16 %v315, %v307
      %v436 = vpack.c.b16 %v324, %v316
      %v437 = vpack.c.b16 %v325, %v317
      %v438 = vpack.c.b16 %v326, %v318
      %v439 = vpack.c.b16 %v327, %v319
      %v440 = vpack.c.b16 %v328, %v320
      %v441 = vpack.c.b16 %v329, %v321
      %v442 = vpack.c.b16 %v330, %v322
      %v443 = vpack.c.b16 %v331, %v323
      %v444 = vpack.c.b16 %v340, %v332
      %v445 = vpack.c.b16 %v341, %v333
      %v446 = vpack.c.b16 %v342, %v334
      %v447 = vpack.c.b16 %v343, %v335
      %v448 = vpack.c.b16 %v344, %v336
      %v449 = vpack.c.b16 %v345, %v337
      %v450 = vpack.c.b16 %v346, %v338
      %v451 = vpack.c.b16 %v347, %v339
      %v452 = vpack.c.b16 %v356, %v348
      %v453 = vpack.c.b16 %v357, %v349
      %v454 = vpack.c.b16 %v358, %v350
      %v455 = vpack.c.b16 %v359, %v351
      %v456 = vpack.c.b16 %v360, %v352
      %v457 = vpack.c.b16 %v361, %v353
      %v458 = vpack.c.b16 %v362, %v354
      %v459 = vpack.c.b16 %v363, %v355
      %v460 = vpack.c.b16 %v372, %v364
      %v461 = vpack.c.b16 %v373, %v365
      %v462 = vpack.c.b16 %v374, %v366
      %v463 = vpack.c.b16 %v375, %v367
      %v464 = vpack.c.b16 %v376, %v368
      %v465 = vpack.c.b16 %v377, %v369
      %v466 = vpack.c.b16 %v378, %v370
      %v467 = vpack.c.b16 %v379, %v371
      %v468 = vpack.c.b16 %v388, %v380
      %v469 = vpack.c.b16 %v389, %v381
      %v470 = vpack.c.b16 %v390, %v382
      %v471 = vpack.c.b16 %v391, %v383
      %v472 = vpack.c.b16 %v392, %v384
      %v473 = vpack.c.b16 %v393, %v385
      %v474 = vpack.c.b16 %v394, %v386
      %v475 = vpack.c.b16 %v395, %v387
      %v476 = vpack.c.b16 %v404, %v396
      %v477 = vpack.c.b16 %v405, %v397
      %v478 = vpack.c.b16 %v406, %v398
      %v479 = vpack.c.b16 %v407, %v399
      %v480 = vpack.c.b16 %v408, %v400
      %v481 = vpack.c.b16 %v409, %v401
      %v482 = vpack.c.b16 %v410, %v402
      %v483 = vpack.c.b16 %v411, %v403
      %v484 = vpack.c.b16 %v420, %v412
      %v485 = vpack.c.b16 %v421, %v413
      %v486 = vpack.c.b16 %v422, %v414
      %v487 = vpack.c.b16 %v423, %v415
      %v488 = vpack.c.b16 %v424, %v416
      %v489 = vpack.c.b16 %v425, %v417
      %v490 = vpack.c.b16 %v426, %v418
      %v491 = vpack.c.b16 %v427, %v419
      %556 = vmatpush.bf16.msra.mxu0 %v484
      %557 = vmatpush.bf16.msra.mxu0 %v476
      %558 = vmatpush.bf16.msra.mxu0 %v468
      %559 = vmatpush.bf16.msra.mxu0 %v460
      %560 = vmatpush.bf16.msra.mxu0 %v452
      %561 = vmatpush.bf16.msra.mxu0 %v444
      %562 = vmatpush.bf16.msra.mxu0 %v436
      %563 = vmatpush.bf16.msra.mxu0 %v428
      %564 = vmatmul.bf16.gmra.mxu0 %v171
      %v565 = vpop.f32.mrf.mxu0
      %v566 = vadd.f32 0.0, %v565
      %v567 = vpop.f32.mrf.mxu0
      %568 = vdwg.mxu0
      %569 = vmatpush.bf16.msra.mxu0 %v485
      %570 = vmatpush.bf16.msra.mxu0 %v477
      %571 = vmatpush.bf16.msra.mxu0 %v469
      %572 = vmatpush.bf16.msra.mxu0 %v461
      %573 = vmatpush.bf16.msra.mxu0 %v453
      %574 = vmatpush.bf16.msra.mxu0 %v445
      %575 = vmatpush.bf16.msra.mxu0 %v437
      %576 = vmatpush.bf16.msra.mxu0 %v429
      %577 = vmatmul.bf16.gmra.mxu0 %v171
      %v578 = vpop.f32.mrf.mxu0
      %v579 = vadd.f32 0.0, %v578
      %v580 = vpop.f32.mrf.mxu0
      %581 = vdwg.mxu0
      %582 = vmatpush.bf16.msra.mxu0 %v486
      %583 = vmatpush.bf16.msra.mxu0 %v478
      %584 = vmatpush.bf16.msra.mxu0 %v470
      %585 = vmatpush.bf16.msra.mxu0 %v462
      %586 = vmatpush.bf16.msra.mxu0 %v454
      %587 = vmatpush.bf16.msra.mxu0 %v446
      %588 = vmatpush.bf16.msra.mxu0 %v438
      %589 = vmatpush.bf16.msra.mxu0 %v430
      %590 = vmatmul.bf16.gmra.mxu0 %v171
      %v591 = vpop.f32.mrf.mxu0
      %v592 = vadd.f32 0.0, %v591
      %v593 = vpop.f32.mrf.mxu0
      %594 = vdwg.mxu0
      %595 = vmatpush.bf16.msra.mxu0 %v487
      %596 = vmatpush.bf16.msra.mxu0 %v479
      %597 = vmatpush.bf16.msra.mxu0 %v471
      %598 = vmatpush.bf16.msra.mxu0 %v463
      %599 = vmatpush.bf16.msra.mxu0 %v455
      %600 = vmatpush.bf16.msra.mxu0 %v447
      %601 = vmatpush.bf16.msra.mxu0 %v439
      %602 = vmatpush.bf16.msra.mxu0 %v431
      %603 = vmatmul.bf16.gmra.mxu0 %v171
      %v604 = vpop.f32.mrf.mxu0
      %v605 = vadd.f32 0.0, %v604
      %v606 = vpop.f32.mrf.mxu0
      %607 = vdwg.mxu0
      %608 = vmatpush.bf16.msra.mxu0 %v488
      %609 = vmatpush.bf16.msra.mxu0 %v480
      %610 = vmatpush.bf16.msra.mxu0 %v472
      %611 = vmatpush.bf16.msra.mxu0 %v464
      %612 = vmatpush.bf16.msra.mxu0 %v456
      %613 = vmatpush.bf16.msra.mxu0 %v448
      %614 = vmatpush.bf16.msra.mxu0 %v440
      %615 = vmatpush.bf16.msra.mxu0 %v432
      %616 = vmatmul.bf16.gmra.mxu0 %v171
      %v617 = vpop.f32.mrf.mxu0
      %v618 = vadd.f32 0.0, %v617
      %v619 = vpop.f32.mrf.mxu0
      %620 = vdwg.mxu0
      %621 = vmatpush.bf16.msra.mxu0 %v489
      %622 = vmatpush.bf16.msra.mxu0 %v481
      %623 = vmatpush.bf16.msra.mxu0 %v473
      %624 = vmatpush.bf16.msra.mxu0 %v465
      %625 = vmatpush.bf16.msra.mxu0 %v457
      %626 = vmatpush.bf16.msra.mxu0 %v449
      %627 = vmatpush.bf16.msra.mxu0 %v441
      %628 = vmatpush.bf16.msra.mxu0 %v433
      %629 = vmatmul.bf16.gmra.mxu0 %v171
      %v630 = vpop.f32.mrf.mxu0
      %v631 = vadd.f32 0.0, %v630
      %v632 = vpop.f32.mrf.mxu0
      %633 = vdwg.mxu0
      %634 = vmatpush.bf16.msra.mxu0 %v490
      %635 = vmatpush.bf16.msra.mxu0 %v482
      %636 = vmatpush.bf16.msra.mxu0 %v474
      %637 = vmatpush.bf16.msra.mxu0 %v466
      %638 = vmatpush.bf16.msra.mxu0 %v458
      %639 = vmatpush.bf16.msra.mxu0 %v450
      %640 = vmatpush.bf16.msra.mxu0 %v442
      %641 = vmatpush.bf16.msra.mxu0 %v434
      %642 = vmatmul.bf16.gmra.mxu0 %v171
      %v643 = vpop.f32.mrf.mxu0
      %v644 = vadd.f32 0.0, %v643
      %v645 = vpop.f32.mrf.mxu0
      %646 = vdwg.mxu0
      %647 = vmatpush.bf16.msra.mxu0 %v491
      %648 = vmatpush.bf16.msra.mxu0 %v483
      %649 = vmatpush.bf16.msra.mxu0 %v475
      %650 = vmatpush.bf16.msra.mxu0 %v467
      %651 = vmatpush.bf16.msra.mxu0 %v459
      %652 = vmatpush.bf16.msra.mxu0 %v451
      %653 = vmatpush.bf16.msra.mxu0 %v443
      %654 = vmatpush.bf16.msra.mxu0 %v435
      %655 = vmatmul.bf16.gmra.mxu0 %v171
      %v656 = vpop.f32.mrf.mxu0
      %v657 = vadd.f32 0.0, %v656
      %v658 = vpop.f32.mrf.mxu0
      %659 = vdwg.mxu0
      %s660 = scalar_lea.vmem %s165, 512
      %v661 = vld [vmem:[%s660] sm:$0xff]
      %v662 = vld [vmem:[%s660 + $0x8] sm:$0xff]
      %v663 = vld [vmem:[%s660 + $0x10] sm:$0xff]
      %v664 = vld [vmem:[%s660 + $0x18] sm:$0xff]
      %v665 = vld [vmem:[%s660 + $0x20] sm:$0xff]
      %v666 = vld [vmem:[%s660 + $0x28] sm:$0xff]
      %v667 = vld [vmem:[%s660 + $0x30] sm:$0xff]
      %v668 = vld [vmem:[%s660 + $0x38] sm:$0xff]
      %v669 = vld [vmem:[%s660 + $0x40] sm:$0xff]
      %v670 = vld [vmem:[%s660 + $0x48] sm:$0xff]
      %v671 = vld [vmem:[%s660 + $0x50] sm:$0xff]
      %v672 = vld [vmem:[%s660 + $0x58] sm:$0xff]
      %v673 = vld [vmem:[%s660 + $0x60] sm:$0xff]
      %v674 = vld [vmem:[%s660 + $0x68] sm:$0xff]
      %v675 = vld [vmem:[%s660 + $0x70] sm:$0xff]
      %v676 = vld [vmem:[%s660 + $0x78] sm:$0xff]
      %v677 = vld [vmem:[%s660 + $0x80] sm:$0xff]
      %v678 = vld [vmem:[%s660 + $0x88] sm:$0xff]
      %v679 = vld [vmem:[%s660 + $0x90] sm:$0xff]
      %v680 = vld [vmem:[%s660 + $0x98] sm:$0xff]
      %v681 = vld [vmem:[%s660 + $0xa0] sm:$0xff]
      %v682 = vld [vmem:[%s660 + $0xa8] sm:$0xff]
      %v683 = vld [vmem:[%s660 + $0xb0] sm:$0xff]
      %v684 = vld [vmem:[%s660 + $0xb8] sm:$0xff]
      %v685 = vld [vmem:[%s660 + $0xc0] sm:$0xff]
      %v686 = vld [vmem:[%s660 + $0xc8] sm:$0xff]
      %v687 = vld [vmem:[%s660 + $0xd0] sm:$0xff]
      %v688 = vld [vmem:[%s660 + $0xd8] sm:$0xff]
      %v689 = vld [vmem:[%s660 + $0xe0] sm:$0xff]
      %v690 = vld [vmem:[%s660 + $0xe8] sm:$0xff]
      %v691 = vld [vmem:[%s660 + $0xf0] sm:$0xff]
      %v692 = vld [vmem:[%s660 + $0xf8] sm:$0xff]
      %v693 = vld [vmem:[%s660 + $0x100] sm:$0xff]
      %v694 = vld [vmem:[%s660 + $0x108] sm:$0xff]
      %v695 = vld [vmem:[%s660 + $0x110] sm:$0xff]
      %v696 = vld [vmem:[%s660 + $0x118] sm:$0xff]
      %v697 = vld [vmem:[%s660 + $0x120] sm:$0xff]
      %v698 = vld [vmem:[%s660 + $0x128] sm:$0xff]
      %v699 = vld [vmem:[%s660 + $0x130] sm:$0xff]
      %v700 = vld [vmem:[%s660 + $0x138] sm:$0xff]
      %v701 = vld [vmem:[%s660 + $0x140] sm:$0xff]
      %v702 = vld [vmem:[%s660 + $0x148] sm:$0xff]
      %v703 = vld [vmem:[%s660 + $0x150] sm:$0xff]
      %v704 = vld [vmem:[%s660 + $0x158] sm:$0xff]
      %v705 = vld [vmem:[%s660 + $0x160] sm:$0xff]
      %v706 = vld [vmem:[%s660 + $0x168] sm:$0xff]
      %v707 = vld [vmem:[%s660 + $0x170] sm:$0xff]
      %v708 = vld [vmem:[%s660 + $0x178] sm:$0xff]
      %v709 = vld [vmem:[%s660 + $0x180] sm:$0xff]
      %v710 = vld [vmem:[%s660 + $0x188] sm:$0xff]
      %v711 = vld [vmem:[%s660 + $0x190] sm:$0xff]
      %v712 = vld [vmem:[%s660 + $0x198] sm:$0xff]
      %v713 = vld [vmem:[%s660 + $0x1a0] sm:$0xff]
      %v714 = vld [vmem:[%s660 + $0x1a8] sm:$0xff]
      %v715 = vld [vmem:[%s660 + $0x1b0] sm:$0xff]
      %v716 = vld [vmem:[%s660 + $0x1b8] sm:$0xff]
      %v717 = vld [vmem:[%s660 + $0x1c0] sm:$0xff]
      %v718 = vld [vmem:[%s660 + $0x1c8] sm:$0xff]
      %v719 = vld [vmem:[%s660 + $0x1d0] sm:$0xff]
      %v720 = vld [vmem:[%s660 + $0x1d8] sm:$0xff]
      %v721 = vld [vmem:[%s660 + $0x1e0] sm:$0xff]
      %v722 = vld [vmem:[%s660 + $0x1e8] sm:$0xff]
      %v723 = vld [vmem:[%s660 + $0x1f0] sm:$0xff]
      %v724 = vld [vmem:[%s660 + $0x1f8] sm:$0xff]
      %v789 = vunpack.c.l.b16 %v661
      %v790 = vunpack.c.h.b16 %v661
      %v791 = vunpack.c.l.b16 %v662
      %v792 = vunpack.c.h.b16 %v662
      %v793 = vunpack.c.l.b16 %v663
      %v794 = vunpack.c.h.b16 %v663
      %v795 = vunpack.c.l.b16 %v664
      %v796 = vunpack.c.h.b16 %v664
      %v797 = vunpack.c.l.b16 %v665
      %v798 = vunpack.c.h.b16 %v665
      %v799 = vunpack.c.l.b16 %v666
      %v800 = vunpack.c.h.b16 %v666
      %v801 = vunpack.c.l.b16 %v667
      %v802 = vunpack.c.h.b16 %v667
      %v803 = vunpack.c.l.b16 %v668
      %v804 = vunpack.c.h.b16 %v668
      %v805 = vunpack.c.l.b16 %v669
      %v806 = vunpack.c.h.b16 %v669
      %v807 = vunpack.c.l.b16 %v670
      %v808 = vunpack.c.h.b16 %v670
      %v809 = vunpack.c.l.b16 %v671
      %v810 = vunpack.c.h.b16 %v671
      %v811 = vunpack.c.l.b16 %v672
      %v812 = vunpack.c.h.b16 %v672
      %v813 = vunpack.c.l.b16 %v673
      %v814 = vunpack.c.h.b16 %v673
      %v815 = vunpack.c.l.b16 %v674
      %v816 = vunpack.c.h.b16 %v674
      %v817 = vunpack.c.l.b16 %v675
      %v818 = vunpack.c.h.b16 %v675
      %v819 = vunpack.c.l.b16 %v676
      %v820 = vunpack.c.h.b16 %v676
      %v821 = vunpack.c.l.b16 %v677
      %v822 = vunpack.c.h.b16 %v677
      %v823 = vunpack.c.l.b16 %v678
      %v824 = vunpack.c.h.b16 %v678
      %v825 = vunpack.c.l.b16 %v679
      %v826 = vunpack.c.h.b16 %v679
      %v827 = vunpack.c.l.b16 %v680
      %v828 = vunpack.c.h.b16 %v680
      %v829 = vunpack.c.l.b16 %v681
      %v830 = vunpack.c.h.b16 %v681
      %v831 = vunpack.c.l.b16 %v682
      %v832 = vunpack.c.h.b16 %v682
      %v833 = vunpack.c.l.b16 %v683
      %v834 = vunpack.c.h.b16 %v683
      %v835 = vunpack.c.l.b16 %v684
      %v836 = vunpack.c.h.b16 %v684
      %v837 = vunpack.c.l.b16 %v685
      %v838 = vunpack.c.h.b16 %v685
      %v839 = vunpack.c.l.b16 %v686
      %v840 = vunpack.c.h.b16 %v686
      %v841 = vunpack.c.l.b16 %v687
      %v842 = vunpack.c.h.b16 %v687
      %v843 = vunpack.c.l.b16 %v688
      %v844 = vunpack.c.h.b16 %v688
      %v845 = vunpack.c.l.b16 %v689
      %v846 = vunpack.c.h.b16 %v689
      %v847 = vunpack.c.l.b16 %v690
      %v848 = vunpack.c.h.b16 %v690
      %v849 = vunpack.c.l.b16 %v691
      %v850 = vunpack.c.h.b16 %v691
      %v851 = vunpack.c.l.b16 %v692
      %v852 = vunpack.c.h.b16 %v692
      %v853 = vunpack.c.l.b16 %v693
      %v854 = vunpack.c.h.b16 %v693
      %v855 = vunpack.c.l.b16 %v694
      %v856 = vunpack.c.h.b16 %v694
      %v857 = vunpack.c.l.b16 %v695
      %v858 = vunpack.c.h.b16 %v695
      %v859 = vunpack.c.l.b16 %v696
      %v860 = vunpack.c.h.b16 %v696
      %v861 = vunpack.c.l.b16 %v697
      %v862 = vunpack.c.h.b16 %v697
      %v863 = vunpack.c.l.b16 %v698
      %v864 = vunpack.c.h.b16 %v698
      %v865 = vunpack.c.l.b16 %v699
      %v866 = vunpack.c.h.b16 %v699
      %v867 = vunpack.c.l.b16 %v700
      %v868 = vunpack.c.h.b16 %v700
      %v869 = vunpack.c.l.b16 %v701
      %v870 = vunpack.c.h.b16 %v701
      %v871 = vunpack.c.l.b16 %v702
      %v872 = vunpack.c.h.b16 %v702
      %v873 = vunpack.c.l.b16 %v703
      %v874 = vunpack.c.h.b16 %v703
      %v875 = vunpack.c.l.b16 %v704
      %v876 = vunpack.c.h.b16 %v704
      %v877 = vunpack.c.l.b16 %v705
      %v878 = vunpack.c.h.b16 %v705
      %v879 = vunpack.c.l.b16 %v706
      %v880 = vunpack.c.h.b16 %v706
      %v881 = vunpack.c.l.b16 %v707
      %v882 = vunpack.c.h.b16 %v707
      %v883 = vunpack.c.l.b16 %v708
      %v884 = vunpack.c.h.b16 %v708
      %v885 = vunpack.c.l.b16 %v709
      %v886 = vunpack.c.h.b16 %v709
      %v887 = vunpack.c.l.b16 %v710
      %v888 = vunpack.c.h.b16 %v710
      %v889 = vunpack.c.l.b16 %v711
      %v890 = vunpack.c.h.b16 %v711
      %v891 = vunpack.c.l.b16 %v712
      %v892 = vunpack.c.h.b16 %v712
      %v893 = vunpack.c.l.b16 %v713
      %v894 = vunpack.c.h.b16 %v713
      %v895 = vunpack.c.l.b16 %v714
      %v896 = vunpack.c.h.b16 %v714
      %v897 = vunpack.c.l.b16 %v715
      %v898 = vunpack.c.h.b16 %v715
      %v899 = vunpack.c.l.b16 %v716
      %v900 = vunpack.c.h.b16 %v716
      %v901 = vunpack.c.l.b16 %v717
      %v902 = vunpack.c.h.b16 %v717
      %v903 = vunpack.c.l.b16 %v718
      %v904 = vunpack.c.h.b16 %v718
      %v905 = vunpack.c.l.b16 %v719
      %v906 = vunpack.c.h.b16 %v719
      %v907 = vunpack.c.l.b16 %v720
      %v908 = vunpack.c.h.b16 %v720
      %v909 = vunpack.c.l.b16 %v721
      %v910 = vunpack.c.h.b16 %v721
      %v911 = vunpack.c.l.b16 %v722
      %v912 = vunpack.c.h.b16 %v722
      %v913 = vunpack.c.l.b16 %v723
      %v914 = vunpack.c.h.b16 %v723
      %v915 = vunpack.c.l.b16 %v724
      %v916 = vunpack.c.h.b16 %v724
      %v917 = vpack.c.b16 %v797, %v789
      %v918 = vpack.c.b16 %v798, %v790
      %v919 = vpack.c.b16 %v799, %v791
      %v920 = vpack.c.b16 %v800, %v792
      %v921 = vpack.c.b16 %v801, %v793
      %v922 = vpack.c.b16 %v802, %v794
      %v923 = vpack.c.b16 %v803, %v795
      %v924 = vpack.c.b16 %v804, %v796
      %v925 = vpack.c.b16 %v813, %v805
      %v926 = vpack.c.b16 %v814, %v806
      %v927 = vpack.c.b16 %v815, %v807
      %v928 = vpack.c.b16 %v816, %v808
      %v929 = vpack.c.b16 %v817, %v809
      %v930 = vpack.c.b16 %v818, %v810
      %v931 = vpack.c.b16 %v819, %v811
      %v932 = vpack.c.b16 %v820, %v812
      %v933 = vpack.c.b16 %v829, %v821
      %v934 = vpack.c.b16 %v830, %v822
      %v935 = vpack.c.b16 %v831, %v823
      %v936 = vpack.c.b16 %v832, %v824
      %v937 = vpack.c.b16 %v833, %v825
      %v938 = vpack.c.b16 %v834, %v826
      %v939 = vpack.c.b16 %v835, %v827
      %v940 = vpack.c.b16 %v836, %v828
      %v941 = vpack.c.b16 %v845, %v837
      %v942 = vpack.c.b16 %v846, %v838
      %v943 = vpack.c.b16 %v847, %v839
      %v944 = vpack.c.b16 %v848, %v840
      %v945 = vpack.c.b16 %v849, %v841
      %v946 = vpack.c.b16 %v850, %v842
      %v947 = vpack.c.b16 %v851, %v843
      %v948 = vpack.c.b16 %v852, %v844
      %v949 = vpack.c.b16 %v861, %v853
      %v950 = vpack.c.b16 %v862, %v854
      %v951 = vpack.c.b16 %v863, %v855
      %v952 = vpack.c.b16 %v864, %v856
      %v953 = vpack.c.b16 %v865, %v857
      %v954 = vpack.c.b16 %v866, %v858
      %v955 = vpack.c.b16 %v867, %v859
      %v956 = vpack.c.b16 %v868, %v860
      %v957 = vpack.c.b16 %v877, %v869
      %v958 = vpack.c.b16 %v878, %v870
      %v959 = vpack.c.b16 %v879, %v871
      %v960 = vpack.c.b16 %v880, %v872
      %v961 = vpack.c.b16 %v881, %v873
      %v962 = vpack.c.b16 %v882, %v874
      %v963 = vpack.c.b16 %v883, %v875
      %v964 = vpack.c.b16 %v884, %v876
      %v965 = vpack.c.b16 %v893, %v885
      %v966 = vpack.c.b16 %v894, %v886
      %v967 = vpack.c.b16 %v895, %v887
      %v968 = vpack.c.b16 %v896, %v888
      %v969 = vpack.c.b16 %v897, %v889
      %v970 = vpack.c.b16 %v898, %v890
      %v971 = vpack.c.b16 %v899, %v891
      %v972 = vpack.c.b16 %v900, %v892
      %v973 = vpack.c.b16 %v909, %v901
      %v974 = vpack.c.b16 %v910, %v902
      %v975 = vpack.c.b16 %v911, %v903
      %v976 = vpack.c.b16 %v912, %v904
      %v977 = vpack.c.b16 %v913, %v905
      %v978 = vpack.c.b16 %v914, %v906
      %v979 = vpack.c.b16 %v915, %v907
      %v980 = vpack.c.b16 %v916, %v908
      %1045 = vmatpush.bf16.msra.mxu0 %v973
      %1046 = vmatpush.bf16.msra.mxu0 %v965
      %1047 = vmatpush.bf16.msra.mxu0 %v957
      %1048 = vmatpush.bf16.msra.mxu0 %v949
      %1049 = vmatpush.bf16.msra.mxu0 %v941
      %1050 = vmatpush.bf16.msra.mxu0 %v933
      %1051 = vmatpush.bf16.msra.mxu0 %v925
      %1052 = vmatpush.bf16.msra.mxu0 %v917
      %1053 = vmatmul.bf16.gmra.mxu0 %v171
      %v1054 = vpop.f32.mrf.mxu0
      %v1055 = vadd.f32 0.0, %v1054
      %v1056 = vpop.f32.mrf.mxu0
      %1057 = vdwg.mxu0
      %1058 = vmatpush.bf16.msra.mxu0 %v974
      %1059 = vmatpush.bf16.msra.mxu0 %v966
      %1060 = vmatpush.bf16.msra.mxu0 %v958
      %1061 = vmatpush.bf16.msra.mxu0 %v950
      %1062 = vmatpush.bf16.msra.mxu0 %v942
      %1063 = vmatpush.bf16.msra.mxu0 %v934
      %1064 = vmatpush.bf16.msra.mxu0 %v926
      %1065 = vmatpush.bf16.msra.mxu0 %v918
      %1066 = vmatmul.bf16.gmra.mxu0 %v171
      %v1067 = vpop.f32.mrf.mxu0
      %v1068 = vadd.f32 0.0, %v1067
      %v1069 = vpop.f32.mrf.mxu0
      %1070 = vdwg.mxu0
      %1071 = vmatpush.bf16.msra.mxu0 %v975
      %1072 = vmatpush.bf16.msra.mxu0 %v967
      %1073 = vmatpush.bf16.msra.mxu0 %v959
      %1074 = vmatpush.bf16.msra.mxu0 %v951
      %1075 = vmatpush.bf16.msra.mxu0 %v943
      %1076 = vmatpush.bf16.msra.mxu0 %v935
      %1077 = vmatpush.bf16.msra.mxu0 %v927
      %1078 = vmatpush.bf16.msra.mxu0 %v919
      %1079 = vmatmul.bf16.gmra.mxu0 %v171
      %v1080 = vpop.f32.mrf.mxu0
      %v1081 = vadd.f32 0.0, %v1080
      %v1082 = vpop.f32.mrf.mxu0
      %1083 = vdwg.mxu0
      %1084 = vmatpush.bf16.msra.mxu0 %v976
      %1085 = vmatpush.bf16.msra.mxu0 %v968
      %1086 = vmatpush.bf16.msra.mxu0 %v960
      %1087 = vmatpush.bf16.msra.mxu0 %v952
      %1088 = vmatpush.bf16.msra.mxu0 %v944
      %1089 = vmatpush.bf16.msra.mxu0 %v936
      %1090 = vmatpush.bf16.msra.mxu0 %v928
      %1091 = vmatpush.bf16.msra.mxu0 %v920
      %1092 = vmatmul.bf16.gmra.mxu0 %v171
      %v1093 = vpop.f32.mrf.mxu0
      %v1094 = vadd.f32 0.0, %v1093
      %v1095 = vpop.f32.mrf.mxu0
      %1096 = vdwg.mxu0
      %1097 = vmatpush.bf16.msra.mxu0 %v977
      %1098 = vmatpush.bf16.msra.mxu0 %v969
      %1099 = vmatpush.bf16.msra.mxu0 %v961
      %1100 = vmatpush.bf16.msra.mxu0 %v953
      %1101 = vmatpush.bf16.msra.mxu0 %v945
      %1102 = vmatpush.bf16.msra.mxu0 %v937
      %1103 = vmatpush.bf16.msra.mxu0 %v929
      %1104 = vmatpush.bf16.msra.mxu0 %v921
      %1105 = vmatmul.bf16.gmra.mxu0 %v171
      %v1106 = vpop.f32.mrf.mxu0
      %v1107 = vadd.f32 0.0, %v1106
      %v1108 = vpop.f32.mrf.mxu0
      %1109 = vdwg.mxu0
      %1110 = vmatpush.bf16.msra.mxu0 %v978
      %1111 = vmatpush.bf16.msra.mxu0 %v970
      %1112 = vmatpush.bf16.msra.mxu0 %v962
      %1113 = vmatpush.bf16.msra.mxu0 %v954
      %1114 = vmatpush.bf16.msra.mxu0 %v946
      %1115 = vmatpush.bf16.msra.mxu0 %v938
      %1116 = vmatpush.bf16.msra.mxu0 %v930
      %1117 = vmatpush.bf16.msra.mxu0 %v922
      %1118 = vmatmul.bf16.gmra.mxu0 %v171
      %v1119 = vpop.f32.mrf.mxu0
      %v1120 = vadd.f32 0.0, %v1119
      %v1121 = vpop.f32.mrf.mxu0
      %1122 = vdwg.mxu0
      %1123 = vmatpush.bf16.msra.mxu0 %v979
      %1124 = vmatpush.bf16.msra.mxu0 %v971
      %1125 = vmatpush.bf16.msra.mxu0 %v963
      %1126 = vmatpush.bf16.msra.mxu0 %v955
      %1127 = vmatpush.bf16.msra.mxu0 %v947
      %1128 = vmatpush.bf16.msra.mxu0 %v939
      %1129 = vmatpush.bf16.msra.mxu0 %v931
      %1130 = vmatpush.bf16.msra.mxu0 %v923
      %1131 = vmatmul.bf16.gmra.mxu0 %v171
      %v1132 = vpop.f32.mrf.mxu0
      %v1133 = vadd.f32 0.0, %v1132
      %v1134 = vpop.f32.mrf.mxu0
      %1135 = vdwg.mxu0
      %1136 = vmatpush.bf16.msra.mxu0 %v980
      %1137 = vmatpush.bf16.msra.mxu0 %v972
      %1138 = vmatpush.bf16.msra.mxu0 %v964
      %1139 = vmatpush.bf16.msra.mxu0 %v956
      %1140 = vmatpush.bf16.msra.mxu0 %v948
      %1141 = vmatpush.bf16.msra.mxu0 %v940
      %1142 = vmatpush.bf16.msra.mxu0 %v932
      %1143 = vmatpush.bf16.msra.mxu0 %v924
      %1144 = vmatmul.bf16.gmra.mxu0 %v171
      %v1145 = vpop.f32.mrf.mxu0
      %v1146 = vadd.f32 0.0, %v1145
      %v1147 = vpop.f32.mrf.mxu0
      %1148 = vdwg.mxu0
      %v1149 = vmax.f32 %v566, %v1055
      %v1150 = vmax.f32 %v579, %v1068
      %v1151 = vmax.f32 %v592, %v1081
      %v1152 = vmax.f32 %v605, %v1094
      %v1153 = vmax.f32 %v618, %v1107
      %v1154 = vmax.f32 %v631, %v1120
      %v1155 = vmax.f32 %v644, %v1133
      %v1156 = vmax.f32 %v657, %v1146
      %s1157 = scalar_lea.vmem %s165, 1024
      %v1158 = vld [vmem:[%s1157] sm:$0xff]
      %v1159 = vld [vmem:[%s1157 + $0x8] sm:$0xff]
      %v1160 = vld [vmem:[%s1157 + $0x10] sm:$0xff]
      %v1161 = vld [vmem:[%s1157 + $0x18] sm:$0xff]
      %v1162 = vld [vmem:[%s1157 + $0x20] sm:$0xff]
      %v1163 = vld [vmem:[%s1157 + $0x28] sm:$0xff]
      %v1164 = vld [vmem:[%s1157 + $0x30] sm:$0xff]
      %v1165 = vld [vmem:[%s1157 + $0x38] sm:$0xff]
      %v1166 = vld [vmem:[%s1157 + $0x40] sm:$0xff]
      %v1167 = vld [vmem:[%s1157 + $0x48] sm:$0xff]
      %v1168 = vld [vmem:[%s1157 + $0x50] sm:$0xff]
      %v1169 = vld [vmem:[%s1157 + $0x58] sm:$0xff]
      %v1170 = vld [vmem:[%s1157 + $0x60] sm:$0xff]
      %v1171 = vld [vmem:[%s1157 + $0x68] sm:$0xff]
      %v1172 = vld [vmem:[%s1157 + $0x70] sm:$0xff]
      %v1173 = vld [vmem:[%s1157 + $0x78] sm:$0xff]
      %v1174 = vld [vmem:[%s1157 + $0x80] sm:$0xff]
      %v1175 = vld [vmem:[%s1157 + $0x88] sm:$0xff]
      %v1176 = vld [vmem:[%s1157 + $0x90] sm:$0xff]
      %v1177 = vld [vmem:[%s1157 + $0x98] sm:$0xff]
      %v1178 = vld [vmem:[%s1157 + $0xa0] sm:$0xff]
      %v1179 = vld [vmem:[%s1157 + $0xa8] sm:$0xff]
      %v1180 = vld [vmem:[%s1157 + $0xb0] sm:$0xff]
      %v1181 = vld [vmem:[%s1157 + $0xb8] sm:$0xff]
      %v1182 = vld [vmem:[%s1157 + $0xc0] sm:$0xff]
      %v1183 = vld [vmem:[%s1157 + $0xc8] sm:$0xff]
      %v1184 = vld [vmem:[%s1157 + $0xd0] sm:$0xff]
      %v1185 = vld [vmem:[%s1157 + $0xd8] sm:$0xff]
      %v1186 = vld [vmem:[%s1157 + $0xe0] sm:$0xff]
      %v1187 = vld [vmem:[%s1157 + $0xe8] sm:$0xff]
      %v1188 = vld [vmem:[%s1157 + $0xf0] sm:$0xff]
      %v1189 = vld [vmem:[%s1157 + $0xf8] sm:$0xff]
      %v1190 = vld [vmem:[%s1157 + $0x100] sm:$0xff]
      %v1191 = vld [vmem:[%s1157 + $0x108] sm:$0xff]
      %v1192 = vld [vmem:[%s1157 + $0x110] sm:$0xff]
      %v1193 = vld [vmem:[%s1157 + $0x118] sm:$0xff]
      %v1194 = vld [vmem:[%s1157 + $0x120] sm:$0xff]
      %v1195 = vld [vmem:[%s1157 + $0x128] sm:$0xff]
      %v1196 = vld [vmem:[%s1157 + $0x130] sm:$0xff]
      %v1197 = vld [vmem:[%s1157 + $0x138] sm:$0xff]
      %v1198 = vld [vmem:[%s1157 + $0x140] sm:$0xff]
      %v1199 = vld [vmem:[%s1157 + $0x148] sm:$0xff]
      %v1200 = vld [vmem:[%s1157 + $0x150] sm:$0xff]
      %v1201 = vld [vmem:[%s1157 + $0x158] sm:$0xff]
      %v1202 = vld [vmem:[%s1157 + $0x160] sm:$0xff]
      %v1203 = vld [vmem:[%s1157 + $0x168] sm:$0xff]
      %v1204 = vld [vmem:[%s1157 + $0x170] sm:$0xff]
      %v1205 = vld [vmem:[%s1157 + $0x178] sm:$0xff]
      %v1206 = vld [vmem:[%s1157 + $0x180] sm:$0xff]
      %v1207 = vld [vmem:[%s1157 + $0x188] sm:$0xff]
      %v1208 = vld [vmem:[%s1157 + $0x190] sm:$0xff]
      %v1209 = vld [vmem:[%s1157 + $0x198] sm:$0xff]
      %v1210 = vld [vmem:[%s1157 + $0x1a0] sm:$0xff]
      %v1211 = vld [vmem:[%s1157 + $0x1a8] sm:$0xff]
      %v1212 = vld [vmem:[%s1157 + $0x1b0] sm:$0xff]
      %v1213 = vld [vmem:[%s1157 + $0x1b8] sm:$0xff]
      %v1214 = vld [vmem:[%s1157 + $0x1c0] sm:$0xff]
      %v1215 = vld [vmem:[%s1157 + $0x1c8] sm:$0xff]
      %v1216 = vld [vmem:[%s1157 + $0x1d0] sm:$0xff]
      %v1217 = vld [vmem:[%s1157 + $0x1d8] sm:$0xff]
      %v1218 = vld [vmem:[%s1157 + $0x1e0] sm:$0xff]
      %v1219 = vld [vmem:[%s1157 + $0x1e8] sm:$0xff]
      %v1220 = vld [vmem:[%s1157 + $0x1f0] sm:$0xff]
      %v1221 = vld [vmem:[%s1157 + $0x1f8] sm:$0xff]
      %v1286 = vunpack.c.l.b16 %v1158
      %v1287 = vunpack.c.h.b16 %v1158
      %v1288 = vunpack.c.l.b16 %v1159
      %v1289 = vunpack.c.h.b16 %v1159
      %v1290 = vunpack.c.l.b16 %v1160
      %v1291 = vunpack.c.h.b16 %v1160
      %v1292 = vunpack.c.l.b16 %v1161
      %v1293 = vunpack.c.h.b16 %v1161
      %v1294 = vunpack.c.l.b16 %v1162
      %v1295 = vunpack.c.h.b16 %v1162
      %v1296 = vunpack.c.l.b16 %v1163
      %v1297 = vunpack.c.h.b16 %v1163
      %v1298 = vunpack.c.l.b16 %v1164
      %v1299 = vunpack.c.h.b16 %v1164
      %v1300 = vunpack.c.l.b16 %v1165
      %v1301 = vunpack.c.h.b16 %v1165
      %v1302 = vunpack.c.l.b16 %v1166
      %v1303 = vunpack.c.h.b16 %v1166
      %v1304 = vunpack.c.l.b16 %v1167
      %v1305 = vunpack.c.h.b16 %v1167
      %v1306 = vunpack.c.l.b16 %v1168
      %v1307 = vunpack.c.h.b16 %v1168
      %v1308 = vunpack.c.l.b16 %v1169
      %v1309 = vunpack.c.h.b16 %v1169
      %v1310 = vunpack.c.l.b16 %v1170
      %v1311 = vunpack.c.h.b16 %v1170
      %v1312 = vunpack.c.l.b16 %v1171
      %v1313 = vunpack.c.h.b16 %v1171
      %v1314 = vunpack.c.l.b16 %v1172
      %v1315 = vunpack.c.h.b16 %v1172
      %v1316 = vunpack.c.l.b16 %v1173
      %v1317 = vunpack.c.h.b16 %v1173
      %v1318 = vunpack.c.l.b16 %v1174
      %v1319 = vunpack.c.h.b16 %v1174
      %v1320 = vunpack.c.l.b16 %v1175
      %v1321 = vunpack.c.h.b16 %v1175
      %v1322 = vunpack.c.l.b16 %v1176
      %v1323 = vunpack.c.h.b16 %v1176
      %v1324 = vunpack.c.l.b16 %v1177
      %v1325 = vunpack.c.h.b16 %v1177
      %v1326 = vunpack.c.l.b16 %v1178
      %v1327 = vunpack.c.h.b16 %v1178
      %v1328 = vunpack.c.l.b16 %v1179
      %v1329 = vunpack.c.h.b16 %v1179
      %v1330 = vunpack.c.l.b16 %v1180
      %v1331 = vunpack.c.h.b16 %v1180
      %v1332 = vunpack.c.l.b16 %v1181
      %v1333 = vunpack.c.h.b16 %v1181
      %v1334 = vunpack.c.l.b16 %v1182
      %v1335 = vunpack.c.h.b16 %v1182
      %v1336 = vunpack.c.l.b16 %v1183
      %v1337 = vunpack.c.h.b16 %v1183
      %v1338 = vunpack.c.l.b16 %v1184
      %v1339 = vunpack.c.h.b16 %v1184
      %v1340 = vunpack.c.l.b16 %v1185
      %v1341 = vunpack.c.h.b16 %v1185
      %v1342 = vunpack.c.l.b16 %v1186
      %v1343 = vunpack.c.h.b16 %v1186
      %v1344 = vunpack.c.l.b16 %v1187
      %v1345 = vunpack.c.h.b16 %v1187
      %v1346 = vunpack.c.l.b16 %v1188
      %v1347 = vunpack.c.h.b16 %v1188
      %v1348 = vunpack.c.l.b16 %v1189
      %v1349 = vunpack.c.h.b16 %v1189
      %v1350 = vunpack.c.l.b16 %v1190
      %v1351 = vunpack.c.h.b16 %v1190
      %v1352 = vunpack.c.l.b16 %v1191
      %v1353 = vunpack.c.h.b16 %v1191
      %v1354 = vunpack.c.l.b16 %v1192
      %v1355 = vunpack.c.h.b16 %v1192
      %v1356 = vunpack.c.l.b16 %v1193
      %v1357 = vunpack.c.h.b16 %v1193
      %v1358 = vunpack.c.l.b16 %v1194
      %v1359 = vunpack.c.h.b16 %v1194
      %v1360 = vunpack.c.l.b16 %v1195
      %v1361 = vunpack.c.h.b16 %v1195
      %v1362 = vunpack.c.l.b16 %v1196
      %v1363 = vunpack.c.h.b16 %v1196
      %v1364 = vunpack.c.l.b16 %v1197
      %v1365 = vunpack.c.h.b16 %v1197
      %v1366 = vunpack.c.l.b16 %v1198
      %v1367 = vunpack.c.h.b16 %v1198
      %v1368 = vunpack.c.l.b16 %v1199
      %v1369 = vunpack.c.h.b16 %v1199
      %v1370 = vunpack.c.l.b16 %v1200
      %v1371 = vunpack.c.h.b16 %v1200
      %v1372 = vunpack.c.l.b16 %v1201
      %v1373 = vunpack.c.h.b16 %v1201
      %v1374 = vunpack.c.l.b16 %v1202
      %v1375 = vunpack.c.h.b16 %v1202
      %v1376 = vunpack.c.l.b16 %v1203
      %v1377 = vunpack.c.h.b16 %v1203
      %v1378 = vunpack.c.l.b16 %v1204
      %v1379 = vunpack.c.h.b16 %v1204
      %v1380 = vunpack.c.l.b16 %v1205
      %v1381 = vunpack.c.h.b16 %v1205
      %v1382 = vunpack.c.l.b16 %v1206
      %v1383 = vunpack.c.h.b16 %v1206
      %v1384 = vunpack.c.l.b16 %v1207
      %v1385 = vunpack.c.h.b16 %v1207
      %v1386 = vunpack.c.l.b16 %v1208
      %v1387 = vunpack.c.h.b16 %v1208
      %v1388 = vunpack.c.l.b16 %v1209
      %v1389 = vunpack.c.h.b16 %v1209
      %v1390 = vunpack.c.l.b16 %v1210
      %v1391 = vunpack.c.h.b16 %v1210
      %v1392 = vunpack.c.l.b16 %v1211
      %v1393 = vunpack.c.h.b16 %v1211
      %v1394 = vunpack.c.l.b16 %v1212
      %v1395 = vunpack.c.h.b16 %v1212
      %v1396 = vunpack.c.l.b16 %v1213
      %v1397 = vunpack.c.h.b16 %v1213
      %v1398 = vunpack.c.l.b16 %v1214
      %v1399 = vunpack.c.h.b16 %v1214
      %v1400 = vunpack.c.l.b16 %v1215
      %v1401 = vunpack.c.h.b16 %v1215
      %v1402 = vunpack.c.l.b16 %v1216
      %v1403 = vunpack.c.h.b16 %v1216
      %v1404 = vunpack.c.l.b16 %v1217
      %v1405 = vunpack.c.h.b16 %v1217
      %v1406 = vunpack.c.l.b16 %v1218
      %v1407 = vunpack.c.h.b16 %v1218
      %v1408 = vunpack.c.l.b16 %v1219
      %v1409 = vunpack.c.h.b16 %v1219
      %v1410 = vunpack.c.l.b16 %v1220
      %v1411 = vunpack.c.h.b16 %v1220
      %v1412 = vunpack.c.l.b16 %v1221
      %v1413 = vunpack.c.h.b16 %v1221
      %v1414 = vpack.c.b16 %v1294, %v1286
      %v1415 = vpack.c.b16 %v1295, %v1287
      %v1416 = vpack.c.b16 %v1296, %v1288
      %v1417 = vpack.c.b16 %v1297, %v1289
      %v1418 = vpack.c.b16 %v1298, %v1290
      %v1419 = vpack.c.b16 %v1299, %v1291
      %v1420 = vpack.c.b16 %v1300, %v1292
      %v1421 = vpack.c.b16 %v1301, %v1293
      %v1422 = vpack.c.b16 %v1310, %v1302
      %v1423 = vpack.c.b16 %v1311, %v1303
      %v1424 = vpack.c.b16 %v1312, %v1304
      %v1425 = vpack.c.b16 %v1313, %v1305
      %v1426 = vpack.c.b16 %v1314, %v1306
      %v1427 = vpack.c.b16 %v1315, %v1307
      %v1428 = vpack.c.b16 %v1316, %v1308
      %v1429 = vpack.c.b16 %v1317, %v1309
      %v1430 = vpack.c.b16 %v1326, %v1318
      %v1431 = vpack.c.b16 %v1327, %v1319
      %v1432 = vpack.c.b16 %v1328, %v1320
      %v1433 = vpack.c.b16 %v1329, %v1321
      %v1434 = vpack.c.b16 %v1330, %v1322
      %v1435 = vpack.c.b16 %v1331, %v1323
      %v1436 = vpack.c.b16 %v1332, %v1324
      %v1437 = vpack.c.b16 %v1333, %v1325
      %v1438 = vpack.c.b16 %v1342, %v1334
      %v1439 = vpack.c.b16 %v1343, %v1335
      %v1440 = vpack.c.b16 %v1344, %v1336
      %v1441 = vpack.c.b16 %v1345, %v1337
      %v1442 = vpack.c.b16 %v1346, %v1338
      %v1443 = vpack.c.b16 %v1347, %v1339
      %v1444 = vpack.c.b16 %v1348, %v1340
      %v1445 = vpack.c.b16 %v1349, %v1341
      %v1446 = vpack.c.b16 %v1358, %v1350
      %v1447 = vpack.c.b16 %v1359, %v1351
      %v1448 = vpack.c.b16 %v1360, %v1352
      %v1449 = vpack.c.b16 %v1361, %v1353
      %v1450 = vpack.c.b16 %v1362, %v1354
      %v1451 = vpack.c.b16 %v1363, %v1355
      %v1452 = vpack.c.b16 %v1364, %v1356
      %v1453 = vpack.c.b16 %v1365, %v1357
      %v1454 = vpack.c.b16 %v1374, %v1366
      %v1455 = vpack.c.b16 %v1375, %v1367
      %v1456 = vpack.c.b16 %v1376, %v1368
      %v1457 = vpack.c.b16 %v1377, %v1369
      %v1458 = vpack.c.b16 %v1378, %v1370
      %v1459 = vpack.c.b16 %v1379, %v1371
      %v1460 = vpack.c.b16 %v1380, %v1372
      %v1461 = vpack.c.b16 %v1381, %v1373
      %v1462 = vpack.c.b16 %v1390, %v1382
      %v1463 = vpack.c.b16 %v1391, %v1383
      %v1464 = vpack.c.b16 %v1392, %v1384
      %v1465 = vpack.c.b16 %v1393, %v1385
      %v1466 = vpack.c.b16 %v1394, %v1386
      %v1467 = vpack.c.b16 %v1395, %v1387
      %v1468 = vpack.c.b16 %v1396, %v1388
      %v1469 = vpack.c.b16 %v1397, %v1389
      %v1470 = vpack.c.b16 %v1406, %v1398
      %v1471 = vpack.c.b16 %v1407, %v1399
      %v1472 = vpack.c.b16 %v1408, %v1400
      %v1473 = vpack.c.b16 %v1409, %v1401
      %v1474 = vpack.c.b16 %v1410, %v1402
      %v1475 = vpack.c.b16 %v1411, %v1403
      %v1476 = vpack.c.b16 %v1412, %v1404
      %v1477 = vpack.c.b16 %v1413, %v1405
      %1542 = vmatpush.bf16.msra.mxu0 %v1470
      %1543 = vmatpush.bf16.msra.mxu0 %v1462
      %1544 = vmatpush.bf16.msra.mxu0 %v1454
      %1545 = vmatpush.bf16.msra.mxu0 %v1446
      %1546 = vmatpush.bf16.msra.mxu0 %v1438
      %1547 = vmatpush.bf16.msra.mxu0 %v1430
      %1548 = vmatpush.bf16.msra.mxu0 %v1422
      %1549 = vmatpush.bf16.msra.mxu0 %v1414
      %1550 = vmatmul.bf16.gmra.mxu0 %v171
      %v1551 = vpop.f32.mrf.mxu0
      %v1552 = vadd.f32 0.0, %v1551
      %v1553 = vpop.f32.mrf.mxu0
      %1554 = vdwg.mxu0
      %1555 = vmatpush.bf16.msra.mxu0 %v1471
      %1556 = vmatpush.bf16.msra.mxu0 %v1463
      %1557 = vmatpush.bf16.msra.mxu0 %v1455
      %1558 = vmatpush.bf16.msra.mxu0 %v1447
      %1559 = vmatpush.bf16.msra.mxu0 %v1439
      %1560 = vmatpush.bf16.msra.mxu0 %v1431
      %1561 = vmatpush.bf16.msra.mxu0 %v1423
      %1562 = vmatpush.bf16.msra.mxu0 %v1415
      %1563 = vmatmul.bf16.gmra.mxu0 %v171
      %v1564 = vpop.f32.mrf.mxu0
      %v1565 = vadd.f32 0.0, %v1564
      %v1566 = vpop.f32.mrf.mxu0
      %1567 = vdwg.mxu0
      %1568 = vmatpush.bf16.msra.mxu0 %v1472
      %1569 = vmatpush.bf16.msra.mxu0 %v1464
      %1570 = vmatpush.bf16.msra.mxu0 %v1456
      %1571 = vmatpush.bf16.msra.mxu0 %v1448
      %1572 = vmatpush.bf16.msra.mxu0 %v1440
      %1573 = vmatpush.bf16.msra.mxu0 %v1432
      %1574 = vmatpush.bf16.msra.mxu0 %v1424
      %1575 = vmatpush.bf16.msra.mxu0 %v1416
      %1576 = vmatmul.bf16.gmra.mxu0 %v171
      %v1577 = vpop.f32.mrf.mxu0
      %v1578 = vadd.f32 0.0, %v1577
      %v1579 = vpop.f32.mrf.mxu0
      %1580 = vdwg.mxu0
      %1581 = vmatpush.bf16.msra.mxu0 %v1473
      %1582 = vmatpush.bf16.msra.mxu0 %v1465
      %1583 = vmatpush.bf16.msra.mxu0 %v1457
      %1584 = vmatpush.bf16.msra.mxu0 %v1449
      %1585 = vmatpush.bf16.msra.mxu0 %v1441
      %1586 = vmatpush.bf16.msra.mxu0 %v1433
      %1587 = vmatpush.bf16.msra.mxu0 %v1425
      %1588 = vmatpush.bf16.msra.mxu0 %v1417
      %1589 = vmatmul.bf16.gmra.mxu0 %v171
      %v1590 = vpop.f32.mrf.mxu0
      %v1591 = vadd.f32 0.0, %v1590
      %v1592 = vpop.f32.mrf.mxu0
      %1593 = vdwg.mxu0
      %1594 = vmatpush.bf16.msra.mxu0 %v1474
      %1595 = vmatpush.bf16.msra.mxu0 %v1466
      %1596 = vmatpush.bf16.msra.mxu0 %v1458
      %1597 = vmatpush.bf16.msra.mxu0 %v1450
      %1598 = vmatpush.bf16.msra.mxu0 %v1442
      %1599 = vmatpush.bf16.msra.mxu0 %v1434
      %1600 = vmatpush.bf16.msra.mxu0 %v1426
      %1601 = vmatpush.bf16.msra.mxu0 %v1418
      %1602 = vmatmul.bf16.gmra.mxu0 %v171
      %v1603 = vpop.f32.mrf.mxu0
      %v1604 = vadd.f32 0.0, %v1603
      %v1605 = vpop.f32.mrf.mxu0
      %1606 = vdwg.mxu0
      %1607 = vmatpush.bf16.msra.mxu0 %v1475
      %1608 = vmatpush.bf16.msra.mxu0 %v1467
      %1609 = vmatpush.bf16.msra.mxu0 %v1459
      %1610 = vmatpush.bf16.msra.mxu0 %v1451
      %1611 = vmatpush.bf16.msra.mxu0 %v1443
      %1612 = vmatpush.bf16.msra.mxu0 %v1435
      %1613 = vmatpush.bf16.msra.mxu0 %v1427
      %1614 = vmatpush.bf16.msra.mxu0 %v1419
      %1615 = vmatmul.bf16.gmra.mxu0 %v171
      %v1616 = vpop.f32.mrf.mxu0
      %v1617 = vadd.f32 0.0, %v1616
      %v1618 = vpop.f32.mrf.mxu0
      %1619 = vdwg.mxu0
      %1620 = vmatpush.bf16.msra.mxu0 %v1476
      %1621 = vmatpush.bf16.msra.mxu0 %v1468
      %1622 = vmatpush.bf16.msra.mxu0 %v1460
      %1623 = vmatpush.bf16.msra.mxu0 %v1452
      %1624 = vmatpush.bf16.msra.mxu0 %v1444
      %1625 = vmatpush.bf16.msra.mxu0 %v1436
      %1626 = vmatpush.bf16.msra.mxu0 %v1428
      %1627 = vmatpush.bf16.msra.mxu0 %v1420
      %1628 = vmatmul.bf16.gmra.mxu0 %v171
      %v1629 = vpop.f32.mrf.mxu0
      %v1630 = vadd.f32 0.0, %v1629
      %v1631 = vpop.f32.mrf.mxu0
      %1632 = vdwg.mxu0
      %1633 = vmatpush.bf16.msra.mxu0 %v1477
      %1634 = vmatpush.bf16.msra.mxu0 %v1469
      %1635 = vmatpush.bf16.msra.mxu0 %v1461
      %1636 = vmatpush.bf16.msra.mxu0 %v1453
      %1637 = vmatpush.bf16.msra.mxu0 %v1445
      %1638 = vmatpush.bf16.msra.mxu0 %v1437
      %1639 = vmatpush.bf16.msra.mxu0 %v1429
      %1640 = vmatpush.bf16.msra.mxu0 %v1421
      %1641 = vmatmul.bf16.gmra.mxu0 %v171
      %v1642 = vpop.f32.mrf.mxu0
      %v1643 = vadd.f32 0.0, %v1642
      %v1644 = vpop.f32.mrf.mxu0
      %1645 = vdwg.mxu0
      %v1646 = vmax.f32 %v1149, %v1552
      %v1647 = vmax.f32 %v1150, %v1565
      %v1648 = vmax.f32 %v1151, %v1578
      %v1649 = vmax.f32 %v1152, %v1591
      %v1650 = vmax.f32 %v1153, %v1604
      %v1651 = vmax.f32 %v1154, %v1617
      %v1652 = vmax.f32 %v1155, %v1630
      %v1653 = vmax.f32 %v1156, %v1643
      %s1654 = scalar_lea.vmem %s165, 1536
      %v1655 = vld [vmem:[%s1654] sm:$0xff]
      %v1656 = vld [vmem:[%s1654 + $0x8] sm:$0xff]
      %v1657 = vld [vmem:[%s1654 + $0x10] sm:$0xff]
      %v1658 = vld [vmem:[%s1654 + $0x18] sm:$0xff]
      %v1659 = vld [vmem:[%s1654 + $0x20] sm:$0xff]
      %v1660 = vld [vmem:[%s1654 + $0x28] sm:$0xff]
      %v1661 = vld [vmem:[%s1654 + $0x30] sm:$0xff]
      %v1662 = vld [vmem:[%s1654 + $0x38] sm:$0xff]
      %v1663 = vld [vmem:[%s1654 + $0x40] sm:$0xff]
      %v1664 = vld [vmem:[%s1654 + $0x48] sm:$0xff]
      %v1665 = vld [vmem:[%s1654 + $0x50] sm:$0xff]
      %v1666 = vld [vmem:[%s1654 + $0x58] sm:$0xff]
      %v1667 = vld [vmem:[%s1654 + $0x60] sm:$0xff]
      %v1668 = vld [vmem:[%s1654 + $0x68] sm:$0xff]
      %v1669 = vld [vmem:[%s1654 + $0x70] sm:$0xff]
      %v1670 = vld [vmem:[%s1654 + $0x78] sm:$0xff]
      %v1671 = vld [vmem:[%s1654 + $0x80] sm:$0xff]
      %v1672 = vld [vmem:[%s1654 + $0x88] sm:$0xff]
      %v1673 = vld [vmem:[%s1654 + $0x90] sm:$0xff]
      %v1674 = vld [vmem:[%s1654 + $0x98] sm:$0xff]
      %v1675 = vld [vmem:[%s1654 + $0xa0] sm:$0xff]
      %v1676 = vld [vmem:[%s1654 + $0xa8] sm:$0xff]
      %v1677 = vld [vmem:[%s1654 + $0xb0] sm:$0xff]
      %v1678 = vld [vmem:[%s1654 + $0xb8] sm:$0xff]
      %v1679 = vld [vmem:[%s1654 + $0xc0] sm:$0xff]
      %v1680 = vld [vmem:[%s1654 + $0xc8] sm:$0xff]
      %v1681 = vld [vmem:[%s1654 + $0xd0] sm:$0xff]
      %v1682 = vld [vmem:[%s1654 + $0xd8] sm:$0xff]
      %v1683 = vld [vmem:[%s1654 + $0xe0] sm:$0xff]
      %v1684 = vld [vmem:[%s1654 + $0xe8] sm:$0xff]
      %v1685 = vld [vmem:[%s1654 + $0xf0] sm:$0xff]
      %v1686 = vld [vmem:[%s1654 + $0xf8] sm:$0xff]
      %v1687 = vld [vmem:[%s1654 + $0x100] sm:$0xff]
      %v1688 = vld [vmem:[%s1654 + $0x108] sm:$0xff]
      %v1689 = vld [vmem:[%s1654 + $0x110] sm:$0xff]
      %v1690 = vld [vmem:[%s1654 + $0x118] sm:$0xff]
      %v1691 = vld [vmem:[%s1654 + $0x120] sm:$0xff]
      %v1692 = vld [vmem:[%s1654 + $0x128] sm:$0xff]
      %v1693 = vld [vmem:[%s1654 + $0x130] sm:$0xff]
      %v1694 = vld [vmem:[%s1654 + $0x138] sm:$0xff]
      %v1695 = vld [vmem:[%s1654 + $0x140] sm:$0xff]
      %v1696 = vld [vmem:[%s1654 + $0x148] sm:$0xff]
      %v1697 = vld [vmem:[%s1654 + $0x150] sm:$0xff]
      %v1698 = vld [vmem:[%s1654 + $0x158] sm:$0xff]
      %v1699 = vld [vmem:[%s1654 + $0x160] sm:$0xff]
      %v1700 = vld [vmem:[%s1654 + $0x168] sm:$0xff]
      %v1701 = vld [vmem:[%s1654 + $0x170] sm:$0xff]
      %v1702 = vld [vmem:[%s1654 + $0x178] sm:$0xff]
      %v1703 = vld [vmem:[%s1654 + $0x180] sm:$0xff]
      %v1704 = vld [vmem:[%s1654 + $0x188] sm:$0xff]
      %v1705 = vld [vmem:[%s1654 + $0x190] sm:$0xff]
      %v1706 = vld [vmem:[%s1654 + $0x198] sm:$0xff]
      %v1707 = vld [vmem:[%s1654 + $0x1a0] sm:$0xff]
      %v1708 = vld [vmem:[%s1654 + $0x1a8] sm:$0xff]
      %v1709 = vld [vmem:[%s1654 + $0x1b0] sm:$0xff]
      %v1710 = vld [vmem:[%s1654 + $0x1b8] sm:$0xff]
      %v1711 = vld [vmem:[%s1654 + $0x1c0] sm:$0xff]
      %v1712 = vld [vmem:[%s1654 + $0x1c8] sm:$0xff]
      %v1713 = vld [vmem:[%s1654 + $0x1d0] sm:$0xff]
      %v1714 = vld [vmem:[%s1654 + $0x1d8] sm:$0xff]
      %v1715 = vld [vmem:[%s1654 + $0x1e0] sm:$0xff]
      %v1716 = vld [vmem:[%s1654 + $0x1e8] sm:$0xff]
      %v1717 = vld [vmem:[%s1654 + $0x1f0] sm:$0xff]
      %v1718 = vld [vmem:[%s1654 + $0x1f8] sm:$0xff]
      %v1783 = vunpack.c.l.b16 %v1655
      %v1784 = vunpack.c.h.b16 %v1655
      %v1785 = vunpack.c.l.b16 %v1656
      %v1786 = vunpack.c.h.b16 %v1656
      %v1787 = vunpack.c.l.b16 %v1657
      %v1788 = vunpack.c.h.b16 %v1657
      %v1789 = vunpack.c.l.b16 %v1658
      %v1790 = vunpack.c.h.b16 %v1658
      %v1791 = vunpack.c.l.b16 %v1659
      %v1792 = vunpack.c.h.b16 %v1659
      %v1793 = vunpack.c.l.b16 %v1660
      %v1794 = vunpack.c.h.b16 %v1660
      %v1795 = vunpack.c.l.b16 %v1661
      %v1796 = vunpack.c.h.b16 %v1661
      %v1797 = vunpack.c.l.b16 %v1662
      %v1798 = vunpack.c.h.b16 %v1662
      %v1799 = vunpack.c.l.b16 %v1663
      %v1800 = vunpack.c.h.b16 %v1663
      %v1801 = vunpack.c.l.b16 %v1664
      %v1802 = vunpack.c.h.b16 %v1664
      %v1803 = vunpack.c.l.b16 %v1665
      %v1804 = vunpack.c.h.b16 %v1665
      %v1805 = vunpack.c.l.b16 %v1666
      %v1806 = vunpack.c.h.b16 %v1666
      %v1807 = vunpack.c.l.b16 %v1667
      %v1808 = vunpack.c.h.b16 %v1667
      %v1809 = vunpack.c.l.b16 %v1668
      %v1810 = vunpack.c.h.b16 %v1668
      %v1811 = vunpack.c.l.b16 %v1669
      %v1812 = vunpack.c.h.b16 %v1669
      %v1813 = vunpack.c.l.b16 %v1670
      %v1814 = vunpack.c.h.b16 %v1670
      %v1815 = vunpack.c.l.b16 %v1671
      %v1816 = vunpack.c.h.b16 %v1671
      %v1817 = vunpack.c.l.b16 %v1672
      %v1818 = vunpack.c.h.b16 %v1672
      %v1819 = vunpack.c.l.b16 %v1673
      %v1820 = vunpack.c.h.b16 %v1673
      %v1821 = vunpack.c.l.b16 %v1674
      %v1822 = vunpack.c.h.b16 %v1674
      %v1823 = vunpack.c.l.b16 %v1675
      %v1824 = vunpack.c.h.b16 %v1675
      %v1825 = vunpack.c.l.b16 %v1676
      %v1826 = vunpack.c.h.b16 %v1676
      %v1827 = vunpack.c.l.b16 %v1677
      %v1828 = vunpack.c.h.b16 %v1677
      %v1829 = vunpack.c.l.b16 %v1678
      %v1830 = vunpack.c.h.b16 %v1678
      %v1831 = vunpack.c.l.b16 %v1679
      %v1832 = vunpack.c.h.b16 %v1679
      %v1833 = vunpack.c.l.b16 %v1680
      %v1834 = vunpack.c.h.b16 %v1680
      %v1835 = vunpack.c.l.b16 %v1681
      %v1836 = vunpack.c.h.b16 %v1681
      %v1837 = vunpack.c.l.b16 %v1682
      %v1838 = vunpack.c.h.b16 %v1682
      %v1839 = vunpack.c.l.b16 %v1683
      %v1840 = vunpack.c.h.b16 %v1683
      %v1841 = vunpack.c.l.b16 %v1684
      %v1842 = vunpack.c.h.b16 %v1684
      %v1843 = vunpack.c.l.b16 %v1685
      %v1844 = vunpack.c.h.b16 %v1685
      %v1845 = vunpack.c.l.b16 %v1686
      %v1846 = vunpack.c.h.b16 %v1686
      %v1847 = vunpack.c.l.b16 %v1687
      %v1848 = vunpack.c.h.b16 %v1687
      %v1849 = vunpack.c.l.b16 %v1688
      %v1850 = vunpack.c.h.b16 %v1688
      %v1851 = vunpack.c.l.b16 %v1689
      %v1852 = vunpack.c.h.b16 %v1689
      %v1853 = vunpack.c.l.b16 %v1690
      %v1854 = vunpack.c.h.b16 %v1690
      %v1855 = vunpack.c.l.b16 %v1691
      %v1856 = vunpack.c.h.b16 %v1691
      %v1857 = vunpack.c.l.b16 %v1692
      %v1858 = vunpack.c.h.b16 %v1692
      %v1859 = vunpack.c.l.b16 %v1693
      %v1860 = vunpack.c.h.b16 %v1693
      %v1861 = vunpack.c.l.b16 %v1694
      %v1862 = vunpack.c.h.b16 %v1694
      %v1863 = vunpack.c.l.b16 %v1695
      %v1864 = vunpack.c.h.b16 %v1695
      %v1865 = vunpack.c.l.b16 %v1696
      %v1866 = vunpack.c.h.b16 %v1696
      %v1867 = vunpack.c.l.b16 %v1697
      %v1868 = vunpack.c.h.b16 %v1697
      %v1869 = vunpack.c.l.b16 %v1698
      %v1870 = vunpack.c.h.b16 %v1698
      %v1871 = vunpack.c.l.b16 %v1699
      %v1872 = vunpack.c.h.b16 %v1699
      %v1873 = vunpack.c.l.b16 %v1700
      %v1874 = vunpack.c.h.b16 %v1700
      %v1875 = vunpack.c.l.b16 %v1701
      %v1876 = vunpack.c.h.b16 %v1701
      %v1877 = vunpack.c.l.b16 %v1702
      %v1878 = vunpack.c.h.b16 %v1702
      %v1879 = vunpack.c.l.b16 %v1703
      %v1880 = vunpack.c.h.b16 %v1703
      %v1881 = vunpack.c.l.b16 %v1704
      %v1882 = vunpack.c.h.b16 %v1704
      %v1883 = vunpack.c.l.b16 %v1705
      %v1884 = vunpack.c.h.b16 %v1705
      %v1885 = vunpack.c.l.b16 %v1706
      %v1886 = vunpack.c.h.b16 %v1706
      %v1887 = vunpack.c.l.b16 %v1707
      %v1888 = vunpack.c.h.b16 %v1707
      %v1889 = vunpack.c.l.b16 %v1708
      %v1890 = vunpack.c.h.b16 %v1708
      %v1891 = vunpack.c.l.b16 %v1709
      %v1892 = vunpack.c.h.b16 %v1709
      %v1893 = vunpack.c.l.b16 %v1710
      %v1894 = vunpack.c.h.b16 %v1710
      %v1895 = vunpack.c.l.b16 %v1711
      %v1896 = vunpack.c.h.b16 %v1711
      %v1897 = vunpack.c.l.b16 %v1712
      %v1898 = vunpack.c.h.b16 %v1712
      %v1899 = vunpack.c.l.b16 %v1713
      %v1900 = vunpack.c.h.b16 %v1713
      %v1901 = vunpack.c.l.b16 %v1714
      %v1902 = vunpack.c.h.b16 %v1714
      %v1903 = vunpack.c.l.b16 %v1715
      %v1904 = vunpack.c.h.b16 %v1715
      %v1905 = vunpack.c.l.b16 %v1716
      %v1906 = vunpack.c.h.b16 %v1716
      %v1907 = vunpack.c.l.b16 %v1717
      %v1908 = vunpack.c.h.b16 %v1717
      %v1909 = vunpack.c.l.b16 %v1718
      %v1910 = vunpack.c.h.b16 %v1718
      %v1911 = vpack.c.b16 %v1791, %v1783
      %v1912 = vpack.c.b16 %v1792, %v1784
      %v1913 = vpack.c.b16 %v1793, %v1785
      %v1914 = vpack.c.b16 %v1794, %v1786
      %v1915 = vpack.c.b16 %v1795, %v1787
      %v1916 = vpack.c.b16 %v1796, %v1788
      %v1917 = vpack.c.b16 %v1797, %v1789
      %v1918 = vpack.c.b16 %v1798, %v1790
      %v1919 = vpack.c.b16 %v1807, %v1799
      %v1920 = vpack.c.b16 %v1808, %v1800
      %v1921 = vpack.c.b16 %v1809, %v1801
      %v1922 = vpack.c.b16 %v1810, %v1802
      %v1923 = vpack.c.b16 %v1811, %v1803
      %v1924 = vpack.c.b16 %v1812, %v1804
      %v1925 = vpack.c.b16 %v1813, %v1805
      %v1926 = vpack.c.b16 %v1814, %v1806
      %v1927 = vpack.c.b16 %v1823, %v1815
      %v1928 = vpack.c.b16 %v1824, %v1816
      %v1929 = vpack.c.b16 %v1825, %v1817
      %v1930 = vpack.c.b16 %v1826, %v1818
      %v1931 = vpack.c.b16 %v1827, %v1819
      %v1932 = vpack.c.b16 %v1828, %v1820
      %v1933 = vpack.c.b16 %v1829, %v1821
      %v1934 = vpack.c.b16 %v1830, %v1822
      %v1935 = vpack.c.b16 %v1839, %v1831
      %v1936 = vpack.c.b16 %v1840, %v1832
      %v1937 = vpack.c.b16 %v1841, %v1833
      %v1938 = vpack.c.b16 %v1842, %v1834
      %v1939 = vpack.c.b16 %v1843, %v1835
      %v1940 = vpack.c.b16 %v1844, %v1836
      %v1941 = vpack.c.b16 %v1845, %v1837
      %v1942 = vpack.c.b16 %v1846, %v1838
      %v1943 = vpack.c.b16 %v1855, %v1847
      %v1944 = vpack.c.b16 %v1856, %v1848
      %v1945 = vpack.c.b16 %v1857, %v1849
      %v1946 = vpack.c.b16 %v1858, %v1850
      %v1947 = vpack.c.b16 %v1859, %v1851
      %v1948 = vpack.c.b16 %v1860, %v1852
      %v1949 = vpack.c.b16 %v1861, %v1853
      %v1950 = vpack.c.b16 %v1862, %v1854
      %v1951 = vpack.c.b16 %v1871, %v1863
      %v1952 = vpack.c.b16 %v1872, %v1864
      %v1953 = vpack.c.b16 %v1873, %v1865
      %v1954 = vpack.c.b16 %v1874, %v1866
      %v1955 = vpack.c.b16 %v1875, %v1867
      %v1956 = vpack.c.b16 %v1876, %v1868
      %v1957 = vpack.c.b16 %v1877, %v1869
      %v1958 = vpack.c.b16 %v1878, %v1870
      %v1959 = vpack.c.b16 %v1887, %v1879
      %v1960 = vpack.c.b16 %v1888, %v1880
      %v1961 = vpack.c.b16 %v1889, %v1881
      %v1962 = vpack.c.b16 %v1890, %v1882
      %v1963 = vpack.c.b16 %v1891, %v1883
      %v1964 = vpack.c.b16 %v1892, %v1884
      %v1965 = vpack.c.b16 %v1893, %v1885
      %v1966 = vpack.c.b16 %v1894, %v1886
      %v1967 = vpack.c.b16 %v1903, %v1895
      %v1968 = vpack.c.b16 %v1904, %v1896
      %v1969 = vpack.c.b16 %v1905, %v1897
      %v1970 = vpack.c.b16 %v1906, %v1898
      %v1971 = vpack.c.b16 %v1907, %v1899
      %v1972 = vpack.c.b16 %v1908, %v1900
      %v1973 = vpack.c.b16 %v1909, %v1901
      %v1974 = vpack.c.b16 %v1910, %v1902
      %2039 = vmatpush.bf16.msra.mxu0 %v1967
      %2040 = vmatpush.bf16.msra.mxu0 %v1959
      %2041 = vmatpush.bf16.msra.mxu0 %v1951
      %2042 = vmatpush.bf16.msra.mxu0 %v1943
      %2043 = vmatpush.bf16.msra.mxu0 %v1935
      %2044 = vmatpush.bf16.msra.mxu0 %v1927
      %2045 = vmatpush.bf16.msra.mxu0 %v1919
      %2046 = vmatpush.bf16.msra.mxu0 %v1911
      %2047 = vmatmul.bf16.gmra.mxu0 %v171
      %v2048 = vpop.f32.mrf.mxu0
      %v2049 = vadd.f32 0.0, %v2048
      %v2050 = vpop.f32.mrf.mxu0
      %2051 = vdwg.mxu0
      %2052 = vmatpush.bf16.msra.mxu0 %v1968
      %2053 = vmatpush.bf16.msra.mxu0 %v1960
      %2054 = vmatpush.bf16.msra.mxu0 %v1952
      %2055 = vmatpush.bf16.msra.mxu0 %v1944
      %2056 = vmatpush.bf16.msra.mxu0 %v1936
      %2057 = vmatpush.bf16.msra.mxu0 %v1928
      %2058 = vmatpush.bf16.msra.mxu0 %v1920
      %2059 = vmatpush.bf16.msra.mxu0 %v1912
      %2060 = vmatmul.bf16.gmra.mxu0 %v171
      %v2061 = vpop.f32.mrf.mxu0
      %v2062 = vadd.f32 0.0, %v2061
      %v2063 = vpop.f32.mrf.mxu0
      %2064 = vdwg.mxu0
      %2065 = vmatpush.bf16.msra.mxu0 %v1969
      %2066 = vmatpush.bf16.msra.mxu0 %v1961
      %2067 = vmatpush.bf16.msra.mxu0 %v1953
      %2068 = vmatpush.bf16.msra.mxu0 %v1945
      %2069 = vmatpush.bf16.msra.mxu0 %v1937
      %2070 = vmatpush.bf16.msra.mxu0 %v1929
      %2071 = vmatpush.bf16.msra.mxu0 %v1921
      %2072 = vmatpush.bf16.msra.mxu0 %v1913
      %2073 = vmatmul.bf16.gmra.mxu0 %v171
      %v2074 = vpop.f32.mrf.mxu0
      %v2075 = vadd.f32 0.0, %v2074
      %v2076 = vpop.f32.mrf.mxu0
      %2077 = vdwg.mxu0
      %2078 = vmatpush.bf16.msra.mxu0 %v1970
      %2079 = vmatpush.bf16.msra.mxu0 %v1962
      %2080 = vmatpush.bf16.msra.mxu0 %v1954
      %2081 = vmatpush.bf16.msra.mxu0 %v1946
      %2082 = vmatpush.bf16.msra.mxu0 %v1938
      %2083 = vmatpush.bf16.msra.mxu0 %v1930
      %2084 = vmatpush.bf16.msra.mxu0 %v1922
      %2085 = vmatpush.bf16.msra.mxu0 %v1914
      %2086 = vmatmul.bf16.gmra.mxu0 %v171
      %v2087 = vpop.f32.mrf.mxu0
      %v2088 = vadd.f32 0.0, %v2087
      %v2089 = vpop.f32.mrf.mxu0
      %2090 = vdwg.mxu0
      %2091 = vmatpush.bf16.msra.mxu0 %v1971
      %2092 = vmatpush.bf16.msra.mxu0 %v1963
      %2093 = vmatpush.bf16.msra.mxu0 %v1955
      %2094 = vmatpush.bf16.msra.mxu0 %v1947
      %2095 = vmatpush.bf16.msra.mxu0 %v1939
      %2096 = vmatpush.bf16.msra.mxu0 %v1931
      %2097 = vmatpush.bf16.msra.mxu0 %v1923
      %2098 = vmatpush.bf16.msra.mxu0 %v1915
      %2099 = vmatmul.bf16.gmra.mxu0 %v171
      %v2100 = vpop.f32.mrf.mxu0
      %v2101 = vadd.f32 0.0, %v2100
      %v2102 = vpop.f32.mrf.mxu0
      %2103 = vdwg.mxu0
      %2104 = vmatpush.bf16.msra.mxu0 %v1972
      %2105 = vmatpush.bf16.msra.mxu0 %v1964
      %2106 = vmatpush.bf16.msra.mxu0 %v1956
      %2107 = vmatpush.bf16.msra.mxu0 %v1948
      %2108 = vmatpush.bf16.msra.mxu0 %v1940
      %2109 = vmatpush.bf16.msra.mxu0 %v1932
      %2110 = vmatpush.bf16.msra.mxu0 %v1924
      %2111 = vmatpush.bf16.msra.mxu0 %v1916
      %2112 = vmatmul.bf16.gmra.mxu0 %v171
      %v2113 = vpop.f32.mrf.mxu0
      %v2114 = vadd.f32 0.0, %v2113
      %v2115 = vpop.f32.mrf.mxu0
      %2116 = vdwg.mxu0
      %2117 = vmatpush.bf16.msra.mxu0 %v1973
      %2118 = vmatpush.bf16.msra.mxu0 %v1965
      %2119 = vmatpush.bf16.msra.mxu0 %v1957
      %2120 = vmatpush.bf16.msra.mxu0 %v1949
      %2121 = vmatpush.bf16.msra.mxu0 %v1941
      %2122 = vmatpush.bf16.msra.mxu0 %v1933
      %2123 = vmatpush.bf16.msra.mxu0 %v1925
      %2124 = vmatpush.bf16.msra.mxu0 %v1917
      %2125 = vmatmul.bf16.gmra.mxu0 %v171
      %v2126 = vpop.f32.mrf.mxu0
      %v2127 = vadd.f32 0.0, %v2126
      %v2128 = vpop.f32.mrf.mxu0
      %2129 = vdwg.mxu0
      %2130 = vmatpush.bf16.msra.mxu0 %v1974
      %2131 = vmatpush.bf16.msra.mxu0 %v1966
      %2132 = vmatpush.bf16.msra.mxu0 %v1958
      %2133 = vmatpush.bf16.msra.mxu0 %v1950
      %2134 = vmatpush.bf16.msra.mxu0 %v1942
      %2135 = vmatpush.bf16.msra.mxu0 %v1934
      %2136 = vmatpush.bf16.msra.mxu0 %v1926
      %2137 = vmatpush.bf16.msra.mxu0 %v1918
      %2138 = vmatmul.bf16.gmra.mxu0 %v171
      %v2139 = vpop.f32.mrf.mxu0
      %v2140 = vadd.f32 0.0, %v2139
      %v2141 = vpop.f32.mrf.mxu0
      %2142 = vdwg.mxu0
      %v2143 = vmax.f32 %v1646, %v2049
      %v2144 = vmax.f32 %v1647, %v2062
      %v2145 = vmax.f32 %v1648, %v2075
      %v2146 = vmax.f32 %v1649, %v2088
      %v2147 = vmax.f32 %v1650, %v2101
      %v2148 = vmax.f32 %v1651, %v2114
      %v2149 = vmax.f32 %v1652, %v2127
      %v2150 = vmax.f32 %v1653, %v2140
      %v2151 = vld [vmem:[%s2] sm:$0x3f]
      %2153 = vset.pattern.permute.xlu0 0
      %2154 = vperm.xlu0 %2153, %v2151
      %v2155 = vpop.permute.xlu0 %2154
      %v2157 = vadd.f32 %v2143, %v2155
      %v2158 = vadd.f32 %v2144, %v2155
      %v2159 = vadd.f32 %v2145, %v2155
      %v2160 = vadd.f32 %v2146, %v2155
      %v2161 = vadd.f32 %v2147, %v2155
      %v2162 = vadd.f32 %v2148, %v2155
      %v2163 = vadd.f32 %v2149, %v2155
      %v2164 = vadd.f32 %v2150, %v2155
      %v2165 = vmax.f32 %v2157, 0.0
      %v2166 = vmax.f32 %v2158, 0.0
      %v2167 = vmax.f32 %v2159, 0.0
      %v2168 = vmax.f32 %v2160, 0.0
      %v2169 = vmax.f32 %v2161, 0.0
      %v2170 = vmax.f32 %v2162, 0.0
      %v2171 = vmax.f32 %v2163, 0.0
      %v2172 = vmax.f32 %v2164, 0.0
      %v2173 = vpack.c.bf16 %v2166, %v2165
      %v2174 = vpack.c.bf16 %v2168, %v2167
      %v2175 = vpack.c.bf16 %v2170, %v2169
      %v2176 = vpack.c.bf16 %v2172, %v2171
      %2177 = vst [vmem:[%s170] sm:$0x77] %v2173
      %2178 = vst [vmem:[%s170 + $0x8] sm:$0x77] %v2174
      %2179 = vst [vmem:[%s170 + $0x10] sm:$0x77] %v2175
      %2180 = vst [vmem:[%s170 + $0x18] sm:$0x77] %v2176
      %p2181 = scmp.lt.s32.totalorder %s14, 1
      %s2182 = scalar_select %p2181, %s14, 1
      %s2183 = smul.addr %s2182, 8
      %s2184 = smul.addr %s2183, 4
      %s2185 = scalar_lea.vmem %s3, %s2184
      // Predicated region
      $region33: #{lenet5_forward.3} parent=31 // pred_check
        %p2186 = pneg %p100
      $region34: #{lenet5_forward.3} parent=31 // pred_check_branch
        %2188 = sbr.rel (%p2186) target = $region36
      $region35: #{lenet5_forward.3} parent=31 // pred_region
        _
      $region36: #{lenet5_forward.3} parent=31 // pred_fallthru
        _
    $region32: #{lenet5_forward.3} parent=5 // pred_fallthru
      _
    %p2189 = scmp.le.s32.totalorder 2, %s9
    // Predicated region
    $region37: #{lenet5_forward.3} parent=5 // pred_check
      %p2190 = pneg %p2189
    $region38: #{lenet5_forward.3} parent=5 // pred_check_branch
      %2192 = sbr.rel (%p2190) target = $region40
    $region39: #{lenet5_forward.3} parent=5 // pred_region
      %s2193 = ssub.s32 %s9, 2
      // Predicated region
      $region41: #{lenet5_forward.3} parent=39 // pred_check
        %p2194 = pneg %p106
      $region42: #{lenet5_forward.3} parent=39 // pred_check_branch
        %2196 = sbr.rel (%p2194) target = $region44
      $region43: #{lenet5_forward.3} parent=39 // pred_region
        %p2197 = scmp.lt.s32.totalorder %s15, 1
        %s2198 = scalar_select %p2197, %s15, 1
        %s2199 = smul.addr %s2198, 8
        %s2200 = smul.addr %s2199, 4
        %s2201 = scalar_lea.vmem %s3, %s2200
      $region44: #{lenet5_forward.3} parent=39 // pred_fallthru
        _
    $region40: #{lenet5_forward.3} parent=5 // pred_fallthru
      _
  $region6: #{lenet5_forward.3} parent=0 // loop_footer
    %s13 = sadd.s32 1, %s9
  $region7: #{lenet5_forward.3} parent=0 // loop_footer_branch
    %8 = sbr.rel target = $region3
  $region8: #{lenet5_forward.3} parent=0 // loop_exit
    _

// kernel: lenet5_forward.4
$region0: #{lenet5_forward.4}
  #allocation0 [shape = 'u32[]', space=smem, size = 0x4, offset = 0x4, fixed_abs, tag = 'smem constant byte address 0x4 - core index']
  #allocation1 [shape = 'u32[72,128]{1,0:T(1,128)}', space=vmem, size = 0x9000, scoped, tag = 'internal scratch']
  %s0 = inlined_call_operand.vmem [shape: bf16[2,4,256,196], index: 0, kind: input, shape index: {}]
  %s1 = inlined_call_operand.vmem [shape: bf16[16,256], index: 1, kind: input, shape index: {}]
  %s2 = inlined_call_operand.vmem [shape: f32[16,1], index: 2, kind: input, shape index: {}]
  %s3 = inlined_call_operand.vmem [shape: bf16[2,16,196], index: 3, kind: output, shape index: {}]
  %s4 = sld [smem:[#allocation0]]
  $region45: #{lenet5_forward.4} parent=0
    _
  %s6 = ssub.s32 1, %s4
  %s7 = scalar_select 0, %s6, %s4
  loop: start=0, step=1, limit=4
  $region2: #{lenet5_forward.4} parent=0 // loop_pre_header
    _
  $region3: #{lenet5_forward.4} parent=0 // loop_header
    %s9 = sphi 0, %s13
    %p10 = scmp.ge.s32.totalorder %s9, 4
    %s19 = sphi 0, %s21
    %s22 = sphi 0, %s19
    %s23 = sphi 0, %s22
    %s39 = sphi 0, %s23
    %s43 = sphi 0, %s43
    %s45 = sphi 0, %s43
    %s46 = sphi 0, %s45
    %s60 = sphi 0, %s46
    %s64 = sphi 0, %s64
    %s66 = sphi 0, %s64
    %s67 = sphi 0, %s66
    %s81 = sphi 0, %s67
    %s87 = sphi 0, %s89
    %s90 = sphi 0, %s87
    %s91 = sphi 0, %s90
    %s107 = sphi 0, %s91
  $region4: #{lenet5_forward.4} parent=0 // loop_header_branch
    %12 = sbr.rel (%p10) target = $region8
  $region5: #{lenet5_forward.4} parent=0 // loop_body
    %s14 = ssub.s32 %s9, 1
    %s15 = ssub.s32 %s9, 2
    %s16 = sadd.s32 %s9, 1
    %s17 = ssub.s32 %s9, %s16
    %p18 = scmp.eq.s32.totalorder %s17, 0
    %s20 = sadd.s32 %s19, 1
    %s21 = scalar_select %p18, %s19, %s20
    %p24 = pneg %p18
    %p25 = scmp.eq.s32.totalorder %s9, 1
    %p26 = por %p24, %p25
    %p27 = scmp.ne.s32.totalorder %s19, %s22
    %p28 = scmp.eq.s32.totalorder %s9, 0
    %p29 = por %p27, %p28
    %p30 = scmp.ne.s32.totalorder %s19, %s22
    %p31 = scmp.eq.s32.totalorder %s14, 1
    %p32 = por %p30, %p31
    %p33 = scmp.ne.s32.totalorder %s22, %s23
    %p34 = scmp.eq.s32.totalorder %s14, 0
    %p35 = por %p33, %p34
    %p36 = scmp.ne.s32.totalorder %s22, %s23
    %p37 = scmp.eq.s32.totalorder %s15, 1
    %p38 = por %p36, %p37
    %p40 = scmp.ne.s32.totalorder %s23, %s39
    %p41 = scmp.eq.s32.totalorder %s15, 0
    %p42 = por %p40, %p41
    %s44 = sadd.s32 %s43, 1
    %p47 = scmp.eq.s32.totalorder %s9, 1
    %p48 = scmp.ne.s32.totalorder %s43, %s45
    %p49 = scmp.eq.s32.totalorder %s9, 0
    %p50 = por %p48, %p49
    %p51 = scmp.ne.s32.totalorder %s43, %s45
    %p52 = scmp.eq.s32.totalorder %s14, 1
    %p53 = por %p51, %p52
    %p54 = scmp.ne.s32.totalorder %s45, %s46
    %p55 = scmp.eq.s32.totalorder %s14, 0
    %p56 = por %p54, %p55
    %p57 = scmp.ne.s32.totalorder %s45, %s46
    %p58 = scmp.eq.s32.totalorder %s15, 1
    %p59 = por %p57, %p58
    %p61 = scmp.ne.s32.totalorder %s46, %s60
    %p62 = scmp.eq.s32.totalorder %s15, 0
    %p63 = por %p61, %p62
    %s65 = sadd.s32 %s64, 1
    %p68 = scmp.eq.s32.totalorder %s9, 1
    %p69 = scmp.ne.s32.totalorder %s64, %s66
    %p70 = scmp.eq.s32.totalorder %s9, 0
    %p71 = por %p69, %p70
    %p72 = scmp.ne.s32.totalorder %s64, %s66
    %p73 = scmp.eq.s32.totalorder %s14, 1
    %p74 = por %p72, %p73
    %p75 = scmp.ne.s32.totalorder %s66, %s67
    %p76 = scmp.eq.s32.totalorder %s14, 0
    %p77 = por %p75, %p76
    %p78 = scmp.ne.s32.totalorder %s66, %s67
    %p79 = scmp.eq.s32.totalorder %s15, 1
    %p80 = por %p78, %p79
    %p82 = scmp.ne.s32.totalorder %s67, %s81
    %p83 = scmp.eq.s32.totalorder %s15, 0
    %p84 = por %p82, %p83
    %s85 = ssub.s32 %s9, %s16
    %p86 = scmp.eq.s32.totalorder %s85, 0
    %s88 = sadd.s32 %s87, 1
    %s89 = scalar_select %p86, %s87, %s88
    %p92 = pneg %p86
    %p93 = scmp.eq.s32.totalorder %s9, 1
    %p94 = por %p92, %p93
    %p95 = scmp.ne.s32.totalorder %s87, %s90
    %p96 = scmp.eq.s32.totalorder %s9, 0
    %p97 = por %p95, %p96
    %p98 = scmp.ne.s32.totalorder %s87, %s90
    %p99 = scmp.eq.s32.totalorder %s14, 1
    %p100 = por %p98, %p99
    %p101 = scmp.ne.s32.totalorder %s90, %s91
    %p102 = scmp.eq.s32.totalorder %s14, 0
    %p103 = por %p101, %p102
    %p104 = scmp.ne.s32.totalorder %s90, %s91
    %p105 = scmp.eq.s32.totalorder %s15, 1
    %p106 = por %p104, %p105
    %p108 = scmp.ne.s32.totalorder %s91, %s107
    %p109 = scmp.eq.s32.totalorder %s15, 0
    %p110 = por %p108, %p109
    %p111 = scmp.le.s32.totalorder 1, %s9
    %p112 = scmp.lt.s32.totalorder %s9, 3
    %p113 = pnand %p111, %p112
    %p114 = pneg %p113
    // Predicated region
    $region9: #{lenet5_forward.4} parent=5 // pred_check
      _
    $region10: #{lenet5_forward.4} parent=5 // pred_check_branch
      %116 = sbr.rel (%p113) target = $region12
    $region11: #{lenet5_forward.4} parent=5 // pred_region
      %s117 = ssub.s32 %s9, 1
      // Predicated region
      $region13: #{lenet5_forward.4} parent=11 // pred_check
        %p118 = pneg %p56
      $region14: #{lenet5_forward.4} parent=11 // pred_check_branch
        %120 = sbr.rel (%p118) target = $region16
      $region15: #{lenet5_forward.4} parent=11 // pred_region
        _
      $region16: #{lenet5_forward.4} parent=11 // pred_fallthru
        _
      // Predicated region
      $region17: #{lenet5_forward.4} parent=11 // pred_check
        %p121 = pneg %p77
      $region18: #{lenet5_forward.4} parent=11 // pred_check_branch
        %123 = sbr.rel (%p121) target = $region20
      $region19: #{lenet5_forward.4} parent=11 // pred_region
        _
      $region20: #{lenet5_forward.4} parent=11 // pred_fallthru
        _
    $region12: #{lenet5_forward.4} parent=5 // pred_fallthru
      _
    %p124 = scmp.lt.s32.totalorder %s9, 2
    // Predicated region
    $region21: #{lenet5_forward.4} parent=5 // pred_check
      %p125 = pneg %p124
    $region22: #{lenet5_forward.4} parent=5 // pred_check_branch
      %127 = sbr.rel (%p125) target = $region24
    $region23: #{lenet5_forward.4} parent=5 // pred_region
      // Predicated region
      $region25: #{lenet5_forward.4} parent=23 // pred_check
        %p128 = pneg %p29
      $region26: #{lenet5_forward.4} parent=23 // pred_check_branch
        %130 = sbr.rel (%p128) target = $region28
      $region27: #{lenet5_forward.4} parent=23 // pred_region
        %p131 = scmp.lt.s32.totalorder %s9, 1
        %s132 = scalar_select %p131, %s9, 1
        %s133 = smul.addr %s132, 256
        %s134 = smul.addr %s133, 4
        %s135 = scalar_lea.vmem %s0, %s134
      $region28: #{lenet5_forward.4} parent=23 // pred_fallthru
        _
    $region24: #{lenet5_forward.4} parent=5 // pred_fallthru
      _
    %p136 = scmp.le.s32.totalorder 1, %s9
    %p137 = scmp.lt.s32.totalorder %s9, 3
    %p138 = pnand %p136, %p137
    %p139 = pneg %p138
    // Predicated region
    $region29: #{lenet5_forward.4} parent=5 // pred_check
      _
    $region30: #{lenet5_forward.4} parent=5 // pred_check_branch
      %141 = sbr.rel (%p138) target = $region32
    $region31: #{lenet5_forward.4} parent=5 // pred_region
      %s142 = ssub.s32 %s9, 1
      %p143 = scmp.lt.s32.totalorder %s14, 1
      %s144 = scalar_select %p143, %s14, 1
      %s145 = smul.addr %s144, 256
      %s146 = smul.addr %s145, 4
      %s147 = scalar_lea.vmem %s0, %s146
      %p148 = pneg %p35
      %p149 = pneg %p32
      %p150 = pneg %p56
      %p151 = pneg %p53
      %p152 = pneg %p77
      %p153 = pneg %p74
      %p154 = pneg %p103
      %p155 = pneg %p100
      %p156 = scmp.lt.s32.totalorder %s14, 1
      %s157 = scalar_select %p156, %s14, 1
      %s158 = smul.addr %s157, 4
      %s159 = smul.addr %s158, 4
      %s160 = scalar_lea.vmem %s3, %s159
      %p161 = scmp.lt.s32.totalorder %s14, 1
      %s162 = scalar_select %p161, %s14, 1
      %s163 = smul.addr %s162, 256
      %s164 = smul.addr %s163, 4
      %s165 = scalar_lea.vmem %s0, %s164
      %p166 = scmp.lt.s32.totalorder %s14, 1
      %s167 = scalar_select %p166, %s14, 1
      %s168 = smul.addr %s167, 4
      %s169 = smul.addr %s168, 4
      %s170 = scalar_lea.vmem %s3, %s169
      %v171 = vld [vmem:[%s1] sm:$0xff]
      %v172 = vld [vmem:[%s1 + $0x8] sm:$0xff]
      %v173 = vld [vmem:[%s165] sm:$0xff]
      %v174 = vld [vmem:[%s165 + $0x8] sm:$0xff]
      %v175 = vld [vmem:[%s165 + $0x10] sm:$0xff]
      %v176 = vld [vmem:[%s165 + $0x18] sm:$0xff]
      %v177 = vld [vmem:[%s165 + $0x20] sm:$0xff]
      %v178 = vld [vmem:[%s165 + $0x28] sm:$0xff]
      %v179 = vld [vmem:[%s165 + $0x30] sm:$0xff]
      %v180 = vld [vmem:[%s165 + $0x38] sm:$0xff]
      %v181 = vld [vmem:[%s165 + $0x40] sm:$0xff]
      %v182 = vld [vmem:[%s165 + $0x48] sm:$0xff]
      %v183 = vld [vmem:[%s165 + $0x50] sm:$0xff]
      %v184 = vld [vmem:[%s165 + $0x58] sm:$0xff]
      %v185 = vld [vmem:[%s165 + $0x60] sm:$0xff]
      %v186 = vld [vmem:[%s165 + $0x68] sm:$0xff]
      %v187 = vld [vmem:[%s165 + $0x70] sm:$0xff]
      %v188 = vld [vmem:[%s165 + $0x78] sm:$0xff]
      %v189 = vld [vmem:[%s165 + $0x80] sm:$0xff]
      %v190 = vld [vmem:[%s165 + $0x88] sm:$0xff]
      %v191 = vld [vmem:[%s165 + $0x90] sm:$0xff]
      %v192 = vld [vmem:[%s165 + $0x98] sm:$0xff]
      %v193 = vld [vmem:[%s165 + $0xa0] sm:$0xff]
      %v194 = vld [vmem:[%s165 + $0xa8] sm:$0xff]
      %v195 = vld [vmem:[%s165 + $0xb0] sm:$0xff]
      %v196 = vld [vmem:[%s165 + $0xb8] sm:$0xff]
      %v197 = vld [vmem:[%s165 + $0xc0] sm:$0xff]
      %v198 = vld [vmem:[%s165 + $0xc8] sm:$0xff]
      %v199 = vld [vmem:[%s165 + $0xd0] sm:$0xff]
      %v200 = vld [vmem:[%s165 + $0xd8] sm:$0xff]
      %v201 = vld [vmem:[%s165 + $0xe0] sm:$0xff]
      %v202 = vld [vmem:[%s165 + $0xe8] sm:$0xff]
      %v203 = vld [vmem:[%s165 + $0xf0] sm:$0xff]
      %v204 = vld [vmem:[%s165 + $0xf8] sm:$0xff]
      %v207 = vunpack.c.l.b16 %v171
      %v208 = vunpack.c.h.b16 %v171
      %v209 = vunpack.c.l.b16 %v172
      %v210 = vunpack.c.h.b16 %v172
      %v211 = vpack.c.b16 %v209, %v207
      %v212 = vpack.c.b16 %v210, %v208
      %v247 = vunpack.c.l.b16 %v173
      %v248 = vunpack.c.h.b16 %v173
      %v249 = vunpack.c.l.b16 %v174
      %v250 = vunpack.c.h.b16 %v174
      %v251 = vunpack.c.l.b16 %v175
      %v252 = vunpack.c.h.b16 %v175
      %v253 = vunpack.c.l.b16 %v176
      %v254 = vunpack.c.h.b16 %v176
      %v255 = vunpack.c.l.b16 %v177
      %v256 = vunpack.c.h.b16 %v177
      %v257 = vunpack.c.l.b16 %v178
      %v258 = vunpack.c.h.b16 %v178
      %v259 = vunpack.c.l.b16 %v179
      %v260 = vunpack.c.h.b16 %v179
      %v261 = vunpack.c.l.b16 %v180
      %v262 = vunpack.c.h.b16 %v180
      %v263 = vunpack.c.l.b16 %v181
      %v264 = vunpack.c.h.b16 %v181
      %v265 = vunpack.c.l.b16 %v182
      %v266 = vunpack.c.h.b16 %v182
      %v267 = vunpack.c.l.b16 %v183
      %v268 = vunpack.c.h.b16 %v183
      %v269 = vunpack.c.l.b16 %v184
      %v270 = vunpack.c.h.b16 %v184
      %v271 = vunpack.c.l.b16 %v185
      %v272 = vunpack.c.h.b16 %v185
      %v273 = vunpack.c.l.b16 %v186
      %v274 = vunpack.c.h.b16 %v186
      %v275 = vunpack.c.l.b16 %v187
      %v276 = vunpack.c.h.b16 %v187
      %v277 = vunpack.c.l.b16 %v188
      %v278 = vunpack.c.h.b16 %v188
      %v279 = vunpack.c.l.b16 %v189
      %v280 = vunpack.c.h.b16 %v189
      %v281 = vunpack.c.l.b16 %v190
      %v282 = vunpack.c.h.b16 %v190
      %v283 = vunpack.c.l.b16 %v191
      %v284 = vunpack.c.h.b16 %v191
      %v285 = vunpack.c.l.b16 %v192
      %v286 = vunpack.c.h.b16 %v192
      %v287 = vunpack.c.l.b16 %v193
      %v288 = vunpack.c.h.b16 %v193
      %v289 = vunpack.c.l.b16 %v194
      %v290 = vunpack.c.h.b16 %v194
      %v291 = vunpack.c.l.b16 %v195
      %v292 = vunpack.c.h.b16 %v195
      %v293 = vunpack.c.l.b16 %v196
      %v294 = vunpack.c.h.b16 %v196
      %v295 = vunpack.c.l.b16 %v197
      %v296 = vunpack.c.h.b16 %v197
      %v297 = vunpack.c.l.b16 %v198
      %v298 = vunpack.c.h.b16 %v198
      %v299 = vunpack.c.l.b16 %v199
      %v300 = vunpack.c.h.b16 %v199
      %v301 = vunpack.c.l.b16 %v200
      %v302 = vunpack.c.h.b16 %v200
      %v303 = vunpack.c.l.b16 %v201
      %v304 = vunpack.c.h.b16 %v201
      %v305 = vunpack.c.l.b16 %v202
      %v306 = vunpack.c.h.b16 %v202
      %v307 = vunpack.c.l.b16 %v203
      %v308 = vunpack.c.h.b16 %v203
      %v309 = vunpack.c.l.b16 %v204
      %v310 = vunpack.c.h.b16 %v204
      %v311 = vpack.c.b16 %v249, %v247
      %v312 = vpack.c.b16 %v250, %v248
      %v313 = vpack.c.b16 %v253, %v251
      %v314 = vpack.c.b16 %v254, %v252
      %v315 = vpack.c.b16 %v257, %v255
      %v316 = vpack.c.b16 %v258, %v256
      %v317 = vpack.c.b16 %v261, %v259
      %v318 = vpack.c.b16 %v262, %v260
      %v319 = vpack.c.b16 %v265, %v263
      %v320 = vpack.c.b16 %v266, %v264
      %v321 = vpack.c.b16 %v269, %v267
      %v322 = vpack.c.b16 %v270, %v268
      %v323 = vpack.c.b16 %v273, %v271
      %v324 = vpack.c.b16 %v274, %v272
      %v325 = vpack.c.b16 %v277, %v275
      %v326 = vpack.c.b16 %v278, %v276
      %v327 = vpack.c.b16 %v281, %v279
      %v328 = vpack.c.b16 %v282, %v280
      %v329 = vpack.c.b16 %v285, %v283
      %v330 = vpack.c.b16 %v286, %v284
      %v331 = vpack.c.b16 %v289, %v287
      %v332 = vpack.c.b16 %v290, %v288
      %v333 = vpack.c.b16 %v293, %v291
      %v334 = vpack.c.b16 %v294, %v292
      %v335 = vpack.c.b16 %v297, %v295
      %v336 = vpack.c.b16 %v298, %v296
      %v337 = vpack.c.b16 %v301, %v299
      %v338 = vpack.c.b16 %v302, %v300
      %v339 = vpack.c.b16 %v305, %v303
      %v340 = vpack.c.b16 %v306, %v304
      %v341 = vpack.c.b16 %v309, %v307
      %v342 = vpack.c.b16 %v310, %v308
      %375 = vmatpush.bf16.msra.mxu0 %v325
      %376 = vmatpush.bf16.msra.mxu0 %v323
      %377 = vmatpush.bf16.msra.mxu0 %v321
      %378 = vmatpush.bf16.msra.mxu0 %v319
      %379 = vmatpush.bf16.msra.mxu0 %v317
      %380 = vmatpush.bf16.msra.mxu0 %v315
      %381 = vmatpush.bf16.msra.mxu0 %v313
      %382 = vmatpush.bf16.msra.mxu0 %v311
      %383 = vmatmul.bf16.gmra.mxu0 %v211
      %v384 = vpop.f32.mrf.mxu0
      %v385 = vadd.f32 0.0, %v384
      %v386 = vpop.f32.mrf.mxu0
      %v387 = vadd.f32 0.0, %v386
      %388 = vdwg.mxu0
      %389 = vmatpush.bf16.msra.mxu0 %v341
      %390 = vmatpush.bf16.msra.mxu0 %v339
      %391 = vmatpush.bf16.msra.mxu0 %v337
      %392 = vmatpush.bf16.msra.mxu0 %v335
      %393 = vmatpush.bf16.msra.mxu0 %v333
      %394 = vmatpush.bf16.msra.mxu0 %v331
      %395 = vmatpush.bf16.msra.mxu0 %v329
      %396 = vmatpush.bf16.msra.mxu0 %v327
      %397 = vmatmul.bf16.gmra.mxu0 %v212
      %v398 = vpop.f32.mrf.mxu0
      %v399 = vadd.f32 %v385, %v398
      %v400 = vpop.f32.mrf.mxu0
      %v401 = vadd.f32 %v387, %v400
      %402 = vdwg.mxu0
      %403 = vmatpush.bf16.msra.mxu0 %v326
      %404 = vmatpush.bf16.msra.mxu0 %v324
      %405 = vmatpush.bf16.msra.mxu0 %v322
      %406 = vmatpush.bf16.msra.mxu0 %v320
      %407 = vmatpush.bf16.msra.mxu0 %v318
      %408 = vmatpush.bf16.msra.mxu0 %v316
      %409 = vmatpush.bf16.msra.mxu0 %v314
      %410 = vmatpush.bf16.msra.mxu0 %v312
      %411 = vmatmul.bf16.gmra.mxu0 %v211
      %v412 = vpop.f32.mrf.mxu0
      %v413 = vadd.f32 0.0, %v412
      %v414 = vpop.f32.mrf.mxu0
      %v415 = vadd.f32 0.0, %v414
      %416 = vdwg.mxu0
      %417 = vmatpush.bf16.msra.mxu0 %v342
      %418 = vmatpush.bf16.msra.mxu0 %v340
      %419 = vmatpush.bf16.msra.mxu0 %v338
      %420 = vmatpush.bf16.msra.mxu0 %v336
      %421 = vmatpush.bf16.msra.mxu0 %v334
      %422 = vmatpush.bf16.msra.mxu0 %v332
      %423 = vmatpush.bf16.msra.mxu0 %v330
      %424 = vmatpush.bf16.msra.mxu0 %v328
      %425 = vmatmul.bf16.gmra.mxu0 %v212
      %v426 = vpop.f32.mrf.mxu0
      %v427 = vadd.f32 %v413, %v426
      %v428 = vpop.f32.mrf.mxu0
      %v429 = vadd.f32 %v415, %v428
      %430 = vdwg.mxu0
      %s431 = scalar_lea.vmem %s165, 256
      %v432 = vld [vmem:[%s431] sm:$0xff]
      %v433 = vld [vmem:[%s431 + $0x8] sm:$0xff]
      %v434 = vld [vmem:[%s431 + $0x10] sm:$0xff]
      %v435 = vld [vmem:[%s431 + $0x18] sm:$0xff]
      %v436 = vld [vmem:[%s431 + $0x20] sm:$0xff]
      %v437 = vld [vmem:[%s431 + $0x28] sm:$0xff]
      %v438 = vld [vmem:[%s431 + $0x30] sm:$0xff]
      %v439 = vld [vmem:[%s431 + $0x38] sm:$0xff]
      %v440 = vld [vmem:[%s431 + $0x40] sm:$0xff]
      %v441 = vld [vmem:[%s431 + $0x48] sm:$0xff]
      %v442 = vld [vmem:[%s431 + $0x50] sm:$0xff]
      %v443 = vld [vmem:[%s431 + $0x58] sm:$0xff]
      %v444 = vld [vmem:[%s431 + $0x60] sm:$0xff]
      %v445 = vld [vmem:[%s431 + $0x68] sm:$0xff]
      %v446 = vld [vmem:[%s431 + $0x70] sm:$0xff]
      %v447 = vld [vmem:[%s431 + $0x78] sm:$0xff]
      %v448 = vld [vmem:[%s431 + $0x80] sm:$0xff]
      %v449 = vld [vmem:[%s431 + $0x88] sm:$0xff]
      %v450 = vld [vmem:[%s431 + $0x90] sm:$0xff]
      %v451 = vld [vmem:[%s431 + $0x98] sm:$0xff]
      %v452 = vld [vmem:[%s431 + $0xa0] sm:$0xff]
      %v453 = vld [vmem:[%s431 + $0xa8] sm:$0xff]
      %v454 = vld [vmem:[%s431 + $0xb0] sm:$0xff]
      %v455 = vld [vmem:[%s431 + $0xb8] sm:$0xff]
      %v456 = vld [vmem:[%s431 + $0xc0] sm:$0xff]
      %v457 = vld [vmem:[%s431 + $0xc8] sm:$0xff]
      %v458 = vld [vmem:[%s431 + $0xd0] sm:$0xff]
      %v459 = vld [vmem:[%s431 + $0xd8] sm:$0xff]
      %v460 = vld [vmem:[%s431 + $0xe0] sm:$0xff]
      %v461 = vld [vmem:[%s431 + $0xe8] sm:$0xff]
      %v462 = vld [vmem:[%s431 + $0xf0] sm:$0xff]
      %v463 = vld [vmem:[%s431 + $0xf8] sm:$0xff]
      %v496 = vunpack.c.l.b16 %v432
      %v497 = vunpack.c.h.b16 %v432
      %v498 = vunpack.c.l.b16 %v433
      %v499 = vunpack.c.h.b16 %v433
      %v500 = vunpack.c.l.b16 %v434
      %v501 = vunpack.c.h.b16 %v434
      %v502 = vunpack.c.l.b16 %v435
      %v503 = vunpack.c.h.b16 %v435
      %v504 = vunpack.c.l.b16 %v436
      %v505 = vunpack.c.h.b16 %v436
      %v506 = vunpack.c.l.b16 %v437
      %v507 = vunpack.c.h.b16 %v437
      %v508 = vunpack.c.l.b16 %v438
      %v509 = vunpack.c.h.b16 %v438
      %v510 = vunpack.c.l.b16 %v439
      %v511 = vunpack.c.h.b16 %v439
      %v512 = vunpack.c.l.b16 %v440
      %v513 = vunpack.c.h.b16 %v440
      %v514 = vunpack.c.l.b16 %v441
      %v515 = vunpack.c.h.b16 %v441
      %v516 = vunpack.c.l.b16 %v442
      %v517 = vunpack.c.h.b16 %v442
      %v518 = vunpack.c.l.b16 %v443
      %v519 = vunpack.c.h.b16 %v443
      %v520 = vunpack.c.l.b16 %v444
      %v521 = vunpack.c.h.b16 %v444
      %v522 = vunpack.c.l.b16 %v445
      %v523 = vunpack.c.h.b16 %v445
      %v524 = vunpack.c.l.b16 %v446
      %v525 = vunpack.c.h.b16 %v446
      %v526 = vunpack.c.l.b16 %v447
      %v527 = vunpack.c.h.b16 %v447
      %v528 = vunpack.c.l.b16 %v448
      %v529 = vunpack.c.h.b16 %v448
      %v530 = vunpack.c.l.b16 %v449
      %v531 = vunpack.c.h.b16 %v449
      %v532 = vunpack.c.l.b16 %v450
      %v533 = vunpack.c.h.b16 %v450
      %v534 = vunpack.c.l.b16 %v451
      %v535 = vunpack.c.h.b16 %v451
      %v536 = vunpack.c.l.b16 %v452
      %v537 = vunpack.c.h.b16 %v452
      %v538 = vunpack.c.l.b16 %v453
      %v539 = vunpack.c.h.b16 %v453
      %v540 = vunpack.c.l.b16 %v454
      %v541 = vunpack.c.h.b16 %v454
      %v542 = vunpack.c.l.b16 %v455
      %v543 = vunpack.c.h.b16 %v455
      %v544 = vunpack.c.l.b16 %v456
      %v545 = vunpack.c.h.b16 %v456
      %v546 = vunpack.c.l.b16 %v457
      %v547 = vunpack.c.h.b16 %v457
      %v548 = vunpack.c.l.b16 %v458
      %v549 = vunpack.c.h.b16 %v458
      %v550 = vunpack.c.l.b16 %v459
      %v551 = vunpack.c.h.b16 %v459
      %v552 = vunpack.c.l.b16 %v460
      %v553 = vunpack.c.h.b16 %v460
      %v554 = vunpack.c.l.b16 %v461
      %v555 = vunpack.c.h.b16 %v461
      %v556 = vunpack.c.l.b16 %v462
      %v557 = vunpack.c.h.b16 %v462
      %v558 = vunpack.c.l.b16 %v463
      %v559 = vunpack.c.h.b16 %v463
      %v560 = vpack.c.b16 %v498, %v496
      %v561 = vpack.c.b16 %v499, %v497
      %v562 = vpack.c.b16 %v502, %v500
      %v563 = vpack.c.b16 %v503, %v501
      %v564 = vpack.c.b16 %v506, %v504
      %v565 = vpack.c.b16 %v507, %v505
      %v566 = vpack.c.b16 %v510, %v508
      %v567 = vpack.c.b16 %v511, %v509
      %v568 = vpack.c.b16 %v514, %v512
      %v569 = vpack.c.b16 %v515, %v513
      %v570 = vpack.c.b16 %v518, %v516
      %v571 = vpack.c.b16 %v519, %v517
      %v572 = vpack.c.b16 %v522, %v520
      %v573 = vpack.c.b16 %v523, %v521
      %v574 = vpack.c.b16 %v526, %v524
      %v575 = vpack.c.b16 %v527, %v525
      %v576 = vpack.c.b16 %v530, %v528
      %v577 = vpack.c.b16 %v531, %v529
      %v578 = vpack.c.b16 %v534, %v532
      %v579 = vpack.c.b16 %v535, %v533
      %v580 = vpack.c.b16 %v538, %v536
      %v581 = vpack.c.b16 %v539, %v537
      %v582 = vpack.c.b16 %v542, %v540
      %v583 = vpack.c.b16 %v543, %v541
      %v584 = vpack.c.b16 %v546, %v544
      %v585 = vpack.c.b16 %v547, %v545
      %v586 = vpack.c.b16 %v550, %v548
      %v587 = vpack.c.b16 %v551, %v549
      %v588 = vpack.c.b16 %v554, %v552
      %v589 = vpack.c.b16 %v555, %v553
      %v590 = vpack.c.b16 %v558, %v556
      %v591 = vpack.c.b16 %v559, %v557
      %624 = vmatpush.bf16.msra.mxu0 %v574
      %625 = vmatpush.bf16.msra.mxu0 %v572
      %626 = vmatpush.bf16.msra.mxu0 %v570
      %627 = vmatpush.bf16.msra.mxu0 %v568
      %628 = vmatpush.bf16.msra.mxu0 %v566
      %629 = vmatpush.bf16.msra.mxu0 %v564
      %630 = vmatpush.bf16.msra.mxu0 %v562
      %631 = vmatpush.bf16.msra.mxu0 %v560
      %632 = vmatmul.bf16.gmra.mxu0 %v211
      %v633 = vpop.f32.mrf.mxu0
      %v634 = vadd.f32 0.0, %v633
      %v635 = vpop.f32.mrf.mxu0
      %v636 = vadd.f32 0.0, %v635
      %637 = vdwg.mxu0
      %638 = vmatpush.bf16.msra.mxu0 %v590
      %639 = vmatpush.bf16.msra.mxu0 %v588
      %640 = vmatpush.bf16.msra.mxu0 %v586
      %641 = vmatpush.bf16.msra.mxu0 %v584
      %642 = vmatpush.bf16.msra.mxu0 %v582
      %643 = vmatpush.bf16.msra.mxu0 %v580
      %644 = vmatpush.bf16.msra.mxu0 %v578
      %645 = vmatpush.bf16.msra.mxu0 %v576
      %646 = vmatmul.bf16.gmra.mxu0 %v212
      %v647 = vpop.f32.mrf.mxu0
      %v648 = vadd.f32 %v634, %v647
      %v649 = vpop.f32.mrf.mxu0
      %v650 = vadd.f32 %v636, %v649
      %651 = vdwg.mxu0
      %652 = vmatpush.bf16.msra.mxu0 %v575
      %653 = vmatpush.bf16.msra.mxu0 %v573
      %654 = vmatpush.bf16.msra.mxu0 %v571
      %655 = vmatpush.bf16.msra.mxu0 %v569
      %656 = vmatpush.bf16.msra.mxu0 %v567
      %657 = vmatpush.bf16.msra.mxu0 %v565
      %658 = vmatpush.bf16.msra.mxu0 %v563
      %659 = vmatpush.bf16.msra.mxu0 %v561
      %660 = vmatmul.bf16.gmra.mxu0 %v211
      %v661 = vpop.f32.mrf.mxu0
      %v662 = vadd.f32 0.0, %v661
      %v663 = vpop.f32.mrf.mxu0
      %v664 = vadd.f32 0.0, %v663
      %665 = vdwg.mxu0
      %666 = vmatpush.bf16.msra.mxu0 %v591
      %667 = vmatpush.bf16.msra.mxu0 %v589
      %668 = vmatpush.bf16.msra.mxu0 %v587
      %669 = vmatpush.bf16.msra.mxu0 %v585
      %670 = vmatpush.bf16.msra.mxu0 %v583
      %671 = vmatpush.bf16.msra.mxu0 %v581
      %672 = vmatpush.bf16.msra.mxu0 %v579
      %673 = vmatpush.bf16.msra.mxu0 %v577
      %674 = vmatmul.bf16.gmra.mxu0 %v212
      %v675 = vpop.f32.mrf.mxu0
      %v676 = vadd.f32 %v662, %v675
      %v677 = vpop.f32.mrf.mxu0
      %v678 = vadd.f32 %v664, %v677
      %679 = vdwg.mxu0
      %v680 = vmax.f32 %v399, %v648
      %v681 = vmax.f32 %v427, %v676
      %v682 = vmax.f32 %v401, %v650
      %v683 = vmax.f32 %v429, %v678
      %s684 = scalar_lea.vmem %s165, 512
      %v685 = vld [vmem:[%s684] sm:$0xff]
      %v686 = vld [vmem:[%s684 + $0x8] sm:$0xff]
      %v687 = vld [vmem:[%s684 + $0x10] sm:$0xff]
      %v688 = vld [vmem:[%s684 + $0x18] sm:$0xff]
      %v689 = vld [vmem:[%s684 + $0x20] sm:$0xff]
      %v690 = vld [vmem:[%s684 + $0x28] sm:$0xff]
      %v691 = vld [vmem:[%s684 + $0x30] sm:$0xff]
      %v692 = vld [vmem:[%s684 + $0x38] sm:$0xff]
      %v693 = vld [vmem:[%s684 + $0x40] sm:$0xff]
      %v694 = vld [vmem:[%s684 + $0x48] sm:$0xff]
      %v695 = vld [vmem:[%s684 + $0x50] sm:$0xff]
      %v696 = vld [vmem:[%s684 + $0x58] sm:$0xff]
      %v697 = vld [vmem:[%s684 + $0x60] sm:$0xff]
      %v698 = vld [vmem:[%s684 + $0x68] sm:$0xff]
      %v699 = vld [vmem:[%s684 + $0x70] sm:$0xff]
      %v700 = vld [vmem:[%s684 + $0x78] sm:$0xff]
      %v701 = vld [vmem:[%s684 + $0x80] sm:$0xff]
      %v702 = vld [vmem:[%s684 + $0x88] sm:$0xff]
      %v703 = vld [vmem:[%s684 + $0x90] sm:$0xff]
      %v704 = vld [vmem:[%s684 + $0x98] sm:$0xff]
      %v705 = vld [vmem:[%s684 + $0xa0] sm:$0xff]
      %v706 = vld [vmem:[%s684 + $0xa8] sm:$0xff]
      %v707 = vld [vmem:[%s684 + $0xb0] sm:$0xff]
      %v708 = vld [vmem:[%s684 + $0xb8] sm:$0xff]
      %v709 = vld [vmem:[%s684 + $0xc0] sm:$0xff]
      %v710 = vld [vmem:[%s684 + $0xc8] sm:$0xff]
      %v711 = vld [vmem:[%s684 + $0xd0] sm:$0xff]
      %v712 = vld [vmem:[%s684 + $0xd8] sm:$0xff]
      %v713 = vld [vmem:[%s684 + $0xe0] sm:$0xff]
      %v714 = vld [vmem:[%s684 + $0xe8] sm:$0xff]
      %v715 = vld [vmem:[%s684 + $0xf0] sm:$0xff]
      %v716 = vld [vmem:[%s684 + $0xf8] sm:$0xff]
      %v749 = vunpack.c.l.b16 %v685
      %v750 = vunpack.c.h.b16 %v685
      %v751 = vunpack.c.l.b16 %v686
      %v752 = vunpack.c.h.b16 %v686
      %v753 = vunpack.c.l.b16 %v687
      %v754 = vunpack.c.h.b16 %v687
      %v755 = vunpack.c.l.b16 %v688
      %v756 = vunpack.c.h.b16 %v688
      %v757 = vunpack.c.l.b16 %v689
      %v758 = vunpack.c.h.b16 %v689
      %v759 = vunpack.c.l.b16 %v690
      %v760 = vunpack.c.h.b16 %v690
      %v761 = vunpack.c.l.b16 %v691
      %v762 = vunpack.c.h.b16 %v691
      %v763 = vunpack.c.l.b16 %v692
      %v764 = vunpack.c.h.b16 %v692
      %v765 = vunpack.c.l.b16 %v693
      %v766 = vunpack.c.h.b16 %v693
      %v767 = vunpack.c.l.b16 %v694
      %v768 = vunpack.c.h.b16 %v694
      %v769 = vunpack.c.l.b16 %v695
      %v770 = vunpack.c.h.b16 %v695
      %v771 = vunpack.c.l.b16 %v696
      %v772 = vunpack.c.h.b16 %v696
      %v773 = vunpack.c.l.b16 %v697
      %v774 = vunpack.c.h.b16 %v697
      %v775 = vunpack.c.l.b16 %v698
      %v776 = vunpack.c.h.b16 %v698
      %v777 = vunpack.c.l.b16 %v699
      %v778 = vunpack.c.h.b16 %v699
      %v779 = vunpack.c.l.b16 %v700
      %v780 = vunpack.c.h.b16 %v700
      %v781 = vunpack.c.l.b16 %v701
      %v782 = vunpack.c.h.b16 %v701
      %v783 = vunpack.c.l.b16 %v702
      %v784 = vunpack.c.h.b16 %v702
      %v785 = vunpack.c.l.b16 %v703
      %v786 = vunpack.c.h.b16 %v703
      %v787 = vunpack.c.l.b16 %v704
      %v788 = vunpack.c.h.b16 %v704
      %v789 = vunpack.c.l.b16 %v705
      %v790 = vunpack.c.h.b16 %v705
      %v791 = vunpack.c.l.b16 %v706
      %v792 = vunpack.c.h.b16 %v706
      %v793 = vunpack.c.l.b16 %v707
      %v794 = vunpack.c.h.b16 %v707
      %v795 = vunpack.c.l.b16 %v708
      %v796 = vunpack.c.h.b16 %v708
      %v797 = vunpack.c.l.b16 %v709
      %v798 = vunpack.c.h.b16 %v709
      %v799 = vunpack.c.l.b16 %v710
      %v800 = vunpack.c.h.b16 %v710
      %v801 = vunpack.c.l.b16 %v711
      %v802 = vunpack.c.h.b16 %v711
      %v803 = vunpack.c.l.b16 %v712
      %v804 = vunpack.c.h.b16 %v712
      %v805 = vunpack.c.l.b16 %v713
      %v806 = vunpack.c.h.b16 %v713
      %v807 = vunpack.c.l.b16 %v714
      %v808 = vunpack.c.h.b16 %v714
      %v809 = vunpack.c.l.b16 %v715
      %v810 = vunpack.c.h.b16 %v715
      %v811 = vunpack.c.l.b16 %v716
      %v812 = vunpack.c.h.b16 %v716
      %v813 = vpack.c.b16 %v751, %v749
      %v814 = vpack.c.b16 %v752, %v750
      %v815 = vpack.c.b16 %v755, %v753
      %v816 = vpack.c.b16 %v756, %v754
      %v817 = vpack.c.b16 %v759, %v757
      %v818 = vpack.c.b16 %v760, %v758
      %v819 = vpack.c.b16 %v763, %v761
      %v820 = vpack.c.b16 %v764, %v762
      %v821 = vpack.c.b16 %v767, %v765
      %v822 = vpack.c.b16 %v768, %v766
      %v823 = vpack.c.b16 %v771, %v769
      %v824 = vpack.c.b16 %v772, %v770
      %v825 = vpack.c.b16 %v775, %v773
      %v826 = vpack.c.b16 %v776, %v774
      %v827 = vpack.c.b16 %v779, %v777
      %v828 = vpack.c.b16 %v780, %v778
      %v829 = vpack.c.b16 %v783, %v781
      %v830 = vpack.c.b16 %v784, %v782
      %v831 = vpack.c.b16 %v787, %v785
      %v832 = vpack.c.b16 %v788, %v786
      %v833 = vpack.c.b16 %v791, %v789
      %v834 = vpack.c.b16 %v792, %v790
      %v835 = vpack.c.b16 %v795, %v793
      %v836 = vpack.c.b16 %v796, %v794
      %v837 = vpack.c.b16 %v799, %v797
      %v838 = vpack.c.b16 %v800, %v798
      %v839 = vpack.c.b16 %v803, %v801
      %v840 = vpack.c.b16 %v804, %v802
      %v841 = vpack.c.b16 %v807, %v805
      %v842 = vpack.c.b16 %v808, %v806
      %v843 = vpack.c.b16 %v811, %v809
      %v844 = vpack.c.b16 %v812, %v810
      %877 = vmatpush.bf16.msra.mxu0 %v827
      %878 = vmatpush.bf16.msra.mxu0 %v825
      %879 = vmatpush.bf16.msra.mxu0 %v823
      %880 = vmatpush.bf16.msra.mxu0 %v821
      %881 = vmatpush.bf16.msra.mxu0 %v819
      %882 = vmatpush.bf16.msra.mxu0 %v817
      %883 = vmatpush.bf16.msra.mxu0 %v815
      %884 = vmatpush.bf16.msra.mxu0 %v813
      %885 = vmatmul.bf16.gmra.mxu0 %v211
      %v886 = vpop.f32.mrf.mxu0
      %v887 = vadd.f32 0.0, %v886
      %v888 = vpop.f32.mrf.mxu0
      %v889 = vadd.f32 0.0, %v888
      %890 = vdwg.mxu0
      %891 = vmatpush.bf16.msra.mxu0 %v843
      %892 = vmatpush.bf16.msra.mxu0 %v841
      %893 = vmatpush.bf16.msra.mxu0 %v839
      %894 = vmatpush.bf16.msra.mxu0 %v837
      %895 = vmatpush.bf16.msra.mxu0 %v835
      %896 = vmatpush.bf16.msra.mxu0 %v833
      %897 = vmatpush.bf16.msra.mxu0 %v831
      %898 = vmatpush.bf16.msra.mxu0 %v829
      %899 = vmatmul.bf16.gmra.mxu0 %v212
      %v900 = vpop.f32.mrf.mxu0
      %v901 = vadd.f32 %v887, %v900
      %v902 = vpop.f32.mrf.mxu0
      %v903 = vadd.f32 %v889, %v902
      %904 = vdwg.mxu0
      %905 = vmatpush.bf16.msra.mxu0 %v828
      %906 = vmatpush.bf16.msra.mxu0 %v826
      %907 = vmatpush.bf16.msra.mxu0 %v824
      %908 = vmatpush.bf16.msra.mxu0 %v822
      %909 = vmatpush.bf16.msra.mxu0 %v820
      %910 = vmatpush.bf16.msra.mxu0 %v818
      %911 = vmatpush.bf16.msra.mxu0 %v816
      %912 = vmatpush.bf16.msra.mxu0 %v814
      %913 = vmatmul.bf16.gmra.mxu0 %v211
      %v914 = vpop.f32.mrf.mxu0
      %v915 = vadd.f32 0.0, %v914
      %v916 = vpop.f32.mrf.mxu0
      %v917 = vadd.f32 0.0, %v916
      %918 = vdwg.mxu0
      %919 = vmatpush.bf16.msra.mxu0 %v844
      %920 = vmatpush.bf16.msra.mxu0 %v842
      %921 = vmatpush.bf16.msra.mxu0 %v840
      %922 = vmatpush.bf16.msra.mxu0 %v838
      %923 = vmatpush.bf16.msra.mxu0 %v836
      %924 = vmatpush.bf16.msra.mxu0 %v834
      %925 = vmatpush.bf16.msra.mxu0 %v832
      %926 = vmatpush.bf16.msra.mxu0 %v830
      %927 = vmatmul.bf16.gmra.mxu0 %v212
      %v928 = vpop.f32.mrf.mxu0
      %v929 = vadd.f32 %v915, %v928
      %v930 = vpop.f32.mrf.mxu0
      %v931 = vadd.f32 %v917, %v930
      %932 = vdwg.mxu0
      %v933 = vmax.f32 %v680, %v901
      %v934 = vmax.f32 %v681, %v929
      %v935 = vmax.f32 %v682, %v903
      %v936 = vmax.f32 %v683, %v931
      %s937 = scalar_lea.vmem %s165, 768
      %v938 = vld [vmem:[%s937] sm:$0xff]
      %v939 = vld [vmem:[%s937 + $0x8] sm:$0xff]
      %v940 = vld [vmem:[%s937 + $0x10] sm:$0xff]
      %v941 = vld [vmem:[%s937 + $0x18] sm:$0xff]
      %v942 = vld [vmem:[%s937 + $0x20] sm:$0xff]
      %v943 = vld [vmem:[%s937 + $0x28] sm:$0xff]
      %v944 = vld [vmem:[%s937 + $0x30] sm:$0xff]
      %v945 = vld [vmem:[%s937 + $0x38] sm:$0xff]
      %v946 = vld [vmem:[%s937 + $0x40] sm:$0xff]
      %v947 = vld [vmem:[%s937 + $0x48] sm:$0xff]
      %v948 = vld [vmem:[%s937 + $0x50] sm:$0xff]
      %v949 = vld [vmem:[%s937 + $0x58] sm:$0xff]
      %v950 = vld [vmem:[%s937 + $0x60] sm:$0xff]
      %v951 = vld [vmem:[%s937 + $0x68] sm:$0xff]
      %v952 = vld [vmem:[%s937 + $0x70] sm:$0xff]
      %v953 = vld [vmem:[%s937 + $0x78] sm:$0xff]
      %v954 = vld [vmem:[%s937 + $0x80] sm:$0xff]
      %v955 = vld [vmem:[%s937 + $0x88] sm:$0xff]
      %v956 = vld [vmem:[%s937 + $0x90] sm:$0xff]
      %v957 = vld [vmem:[%s937 + $0x98] sm:$0xff]
      %v958 = vld [vmem:[%s937 + $0xa0] sm:$0xff]
      %v959 = vld [vmem:[%s937 + $0xa8] sm:$0xff]
      %v960 = vld [vmem:[%s937 + $0xb0] sm:$0xff]
      %v961 = vld [vmem:[%s937 + $0xb8] sm:$0xff]
      %v962 = vld [vmem:[%s937 + $0xc0] sm:$0xff]
      %v963 = vld [vmem:[%s937 + $0xc8] sm:$0xff]
      %v964 = vld [vmem:[%s937 + $0xd0] sm:$0xff]
      %v965 = vld [vmem:[%s937 + $0xd8] sm:$0xff]
      %v966 = vld [vmem:[%s937 + $0xe0] sm:$0xff]
      %v967 = vld [vmem:[%s937 + $0xe8] sm:$0xff]
      %v968 = vld [vmem:[%s937 + $0xf0] sm:$0xff]
      %v969 = vld [vmem:[%s937 + $0xf8] sm:$0xff]
      %v1002 = vunpack.c.l.b16 %v938
      %v1003 = vunpack.c.h.b16 %v938
      %v1004 = vunpack.c.l.b16 %v939
      %v1005 = vunpack.c.h.b16 %v939
      %v1006 = vunpack.c.l.b16 %v940
      %v1007 = vunpack.c.h.b16 %v940
      %v1008 = vunpack.c.l.b16 %v941
      %v1009 = vunpack.c.h.b16 %v941
      %v1010 = vunpack.c.l.b16 %v942
      %v1011 = vunpack.c.h.b16 %v942
      %v1012 = vunpack.c.l.b16 %v943
      %v1013 = vunpack.c.h.b16 %v943
      %v1014 = vunpack.c.l.b16 %v944
      %v1015 = vunpack.c.h.b16 %v944
      %v1016 = vunpack.c.l.b16 %v945
      %v1017 = vunpack.c.h.b16 %v945
      %v1018 = vunpack.c.l.b16 %v946
      %v1019 = vunpack.c.h.b16 %v946
      %v1020 = vunpack.c.l.b16 %v947
      %v1021 = vunpack.c.h.b16 %v947
      %v1022 = vunpack.c.l.b16 %v948
      %v1023 = vunpack.c.h.b16 %v948
      %v1024 = vunpack.c.l.b16 %v949
      %v1025 = vunpack.c.h.b16 %v949
      %v1026 = vunpack.c.l.b16 %v950
      %v1027 = vunpack.c.h.b16 %v950
      %v1028 = vunpack.c.l.b16 %v951
      %v1029 = vunpack.c.h.b16 %v951
      %v1030 = vunpack.c.l.b16 %v952
      %v1031 = vunpack.c.h.b16 %v952
      %v1032 = vunpack.c.l.b16 %v953
      %v1033 = vunpack.c.h.b16 %v953
      %v1034 = vunpack.c.l.b16 %v954
      %v1035 = vunpack.c.h.b16 %v954
      %v1036 = vunpack.c.l.b16 %v955
      %v1037 = vunpack.c.h.b16 %v955
      %v1038 = vunpack.c.l.b16 %v956
      %v1039 = vunpack.c.h.b16 %v956
      %v1040 = vunpack.c.l.b16 %v957
      %v1041 = vunpack.c.h.b16 %v957
      %v1042 = vunpack.c.l.b16 %v958
      %v1043 = vunpack.c.h.b16 %v958
      %v1044 = vunpack.c.l.b16 %v959
      %v1045 = vunpack.c.h.b16 %v959
      %v1046 = vunpack.c.l.b16 %v960
      %v1047 = vunpack.c.h.b16 %v960
      %v1048 = vunpack.c.l.b16 %v961
      %v1049 = vunpack.c.h.b16 %v961
      %v1050 = vunpack.c.l.b16 %v962
      %v1051 = vunpack.c.h.b16 %v962
      %v1052 = vunpack.c.l.b16 %v963
      %v1053 = vunpack.c.h.b16 %v963
      %v1054 = vunpack.c.l.b16 %v964
      %v1055 = vunpack.c.h.b16 %v964
      %v1056 = vunpack.c.l.b16 %v965
      %v1057 = vunpack.c.h.b16 %v965
      %v1058 = vunpack.c.l.b16 %v966
      %v1059 = vunpack.c.h.b16 %v966
      %v1060 = vunpack.c.l.b16 %v967
      %v1061 = vunpack.c.h.b16 %v967
      %v1062 = vunpack.c.l.b16 %v968
      %v1063 = vunpack.c.h.b16 %v968
      %v1064 = vunpack.c.l.b16 %v969
      %v1065 = vunpack.c.h.b16 %v969
      %v1066 = vpack.c.b16 %v1004, %v1002
      %v1067 = vpack.c.b16 %v1005, %v1003
      %v1068 = vpack.c.b16 %v1008, %v1006
      %v1069 = vpack.c.b16 %v1009, %v1007
      %v1070 = vpack.c.b16 %v1012, %v1010
      %v1071 = vpack.c.b16 %v1013, %v1011
      %v1072 = vpack.c.b16 %v1016, %v1014
      %v1073 = vpack.c.b16 %v1017, %v1015
      %v1074 = vpack.c.b16 %v1020, %v1018
      %v1075 = vpack.c.b16 %v1021, %v1019
      %v1076 = vpack.c.b16 %v1024, %v1022
      %v1077 = vpack.c.b16 %v1025, %v1023
      %v1078 = vpack.c.b16 %v1028, %v1026
      %v1079 = vpack.c.b16 %v1029, %v1027
      %v1080 = vpack.c.b16 %v1032, %v1030
      %v1081 = vpack.c.b16 %v1033, %v1031
      %v1082 = vpack.c.b16 %v1036, %v1034
      %v1083 = vpack.c.b16 %v1037, %v1035
      %v1084 = vpack.c.b16 %v1040, %v1038
      %v1085 = vpack.c.b16 %v1041, %v1039
      %v1086 = vpack.c.b16 %v1044, %v1042
      %v1087 = vpack.c.b16 %v1045, %v1043
      %v1088 = vpack.c.b16 %v1048, %v1046
      %v1089 = vpack.c.b16 %v1049, %v1047
      %v1090 = vpack.c.b16 %v1052, %v1050
      %v1091 = vpack.c.b16 %v1053, %v1051
      %v1092 = vpack.c.b16 %v1056, %v1054
      %v1093 = vpack.c.b16 %v1057, %v1055
      %v1094 = vpack.c.b16 %v1060, %v1058
      %v1095 = vpack.c.b16 %v1061, %v1059
      %v1096 = vpack.c.b16 %v1064, %v1062
      %v1097 = vpack.c.b16 %v1065, %v1063
      %1130 = vmatpush.bf16.msra.mxu0 %v1080
      %1131 = vmatpush.bf16.msra.mxu0 %v1078
      %1132 = vmatpush.bf16.msra.mxu0 %v1076
      %1133 = vmatpush.bf16.msra.mxu0 %v1074
      %1134 = vmatpush.bf16.msra.mxu0 %v1072
      %1135 = vmatpush.bf16.msra.mxu0 %v1070
      %1136 = vmatpush.bf16.msra.mxu0 %v1068
      %1137 = vmatpush.bf16.msra.mxu0 %v1066
      %1138 = vmatmul.bf16.gmra.mxu0 %v211
      %v1139 = vpop.f32.mrf.mxu0
      %v1140 = vadd.f32 0.0, %v1139
      %v1141 = vpop.f32.mrf.mxu0
      %v1142 = vadd.f32 0.0, %v1141
      %1143 = vdwg.mxu0
      %1144 = vmatpush.bf16.msra.mxu0 %v1096
      %1145 = vmatpush.bf16.msra.mxu0 %v1094
      %1146 = vmatpush.bf16.msra.mxu0 %v1092
      %1147 = vmatpush.bf16.msra.mxu0 %v1090
      %1148 = vmatpush.bf16.msra.mxu0 %v1088
      %1149 = vmatpush.bf16.msra.mxu0 %v1086
      %1150 = vmatpush.bf16.msra.mxu0 %v1084
      %1151 = vmatpush.bf16.msra.mxu0 %v1082
      %1152 = vmatmul.bf16.gmra.mxu0 %v212
      %v1153 = vpop.f32.mrf.mxu0
      %v1154 = vadd.f32 %v1140, %v1153
      %v1155 = vpop.f32.mrf.mxu0
      %v1156 = vadd.f32 %v1142, %v1155
      %1157 = vdwg.mxu0
      %1158 = vmatpush.bf16.msra.mxu0 %v1081
      %1159 = vmatpush.bf16.msra.mxu0 %v1079
      %1160 = vmatpush.bf16.msra.mxu0 %v1077
      %1161 = vmatpush.bf16.msra.mxu0 %v1075
      %1162 = vmatpush.bf16.msra.mxu0 %v1073
      %1163 = vmatpush.bf16.msra.mxu0 %v1071
      %1164 = vmatpush.bf16.msra.mxu0 %v1069
      %1165 = vmatpush.bf16.msra.mxu0 %v1067
      %1166 = vmatmul.bf16.gmra.mxu0 %v211
      %v1167 = vpop.f32.mrf.mxu0
      %v1168 = vadd.f32 0.0, %v1167
      %v1169 = vpop.f32.mrf.mxu0
      %v1170 = vadd.f32 0.0, %v1169
      %1171 = vdwg.mxu0
      %1172 = vmatpush.bf16.msra.mxu0 %v1097
      %1173 = vmatpush.bf16.msra.mxu0 %v1095
      %1174 = vmatpush.bf16.msra.mxu0 %v1093
      %1175 = vmatpush.bf16.msra.mxu0 %v1091
      %1176 = vmatpush.bf16.msra.mxu0 %v1089
      %1177 = vmatpush.bf16.msra.mxu0 %v1087
      %1178 = vmatpush.bf16.msra.mxu0 %v1085
      %1179 = vmatpush.bf16.msra.mxu0 %v1083
      %1180 = vmatmul.bf16.gmra.mxu0 %v212
      %v1181 = vpop.f32.mrf.mxu0
      %v1182 = vadd.f32 %v1168, %v1181
      %v1183 = vpop.f32.mrf.mxu0
      %v1184 = vadd.f32 %v1170, %v1183
      %1185 = vdwg.mxu0
      %v1186 = vmax.f32 %v933, %v1154
      %v1187 = vmax.f32 %v934, %v1182
      %v1188 = vmax.f32 %v935, %v1156
      %v1189 = vmax.f32 %v936, %v1184
      %v1190 = vld [vmem:[%s2] sm:$0xff]
      %v1191 = vld [vmem:[%s2 + $0x8] sm:$0xff]
      %1193 = vset.pattern.permute.xlu0 0
      %1194 = vperm.xlu0 %1193, %v1190
      %v1195 = vpop.permute.xlu0 %1194
      %1198 = vset.pattern.permute.xlu0 0
      %1199 = vperm.xlu0 %1198, %v1191
      %v1200 = vpop.permute.xlu0 %1199
      %v1202 = vadd.f32 %v1186, %v1195
      %v1203 = vadd.f32 %v1187, %v1195
      %v1204 = vadd.f32 %v1188, %v1200
      %v1205 = vadd.f32 %v1189, %v1200
      %v1206 = vmax.f32 %v1202, 0.0
      %v1207 = vmax.f32 %v1203, 0.0
      %v1208 = vmax.f32 %v1204, 0.0
      %v1209 = vmax.f32 %v1205, 0.0
      %v1210 = vpack.c.bf16 %v1207, %v1206
      %v1211 = vpack.c.bf16 %v1209, %v1208
      %vm1212 = vcmask 1043456
      %vm1213 = vcmask 556036
      %vm1214 = vmor %vm1213, %vm1212
      %1215 = vst.msk [vmem:[%s170] sm:$0xff] %vm1214, %v1210
      %1216 = vst.msk [vmem:[%s170 + $0x8] sm:$0xff] %vm1214, %v1211
      %p1217 = scmp.lt.s32.totalorder %s14, 1
      %s1218 = scalar_select %p1217, %s14, 1
      %s1219 = smul.addr %s1218, 4
      %s1220 = smul.addr %s1219, 4
      %s1221 = scalar_lea.vmem %s3, %s1220
      // Predicated region
      $region33: #{lenet5_forward.4} parent=31 // pred_check
        %p1222 = pneg %p100
      $region34: #{lenet5_forward.4} parent=31 // pred_check_branch
        %1224 = sbr.rel (%p1222) target = $region36
      $region35: #{lenet5_forward.4} parent=31 // pred_region
        _
      $region36: #{lenet5_forward.4} parent=31 // pred_fallthru
        _
    $region32: #{lenet5_forward.4} parent=5 // pred_fallthru
      _
    %p1225 = scmp.le.s32.totalorder 2, %s9
    // Predicated region
    $region37: #{lenet5_forward.4} parent=5 // pred_check
      %p1226 = pneg %p1225
    $region38: #{lenet5_forward.4} parent=5 // pred_check_branch
      %1228 = sbr.rel (%p1226) target = $region40
    $region39: #{lenet5_forward.4} parent=5 // pred_region
      %s1229 = ssub.s32 %s9, 2
      // Predicated region
      $region41: #{lenet5_forward.4} parent=39 // pred_check
        %p1230 = pneg %p106
      $region42: #{lenet5_forward.4} parent=39 // pred_check_branch
        %1232 = sbr.rel (%p1230) target = $region44
      $region43: #{lenet5_forward.4} parent=39 // pred_region
        %p1233 = scmp.lt.s32.totalorder %s15, 1
        %s1234 = scalar_select %p1233, %s15, 1
        %s1235 = smul.addr %s1234, 4
        %s1236 = smul.addr %s1235, 4
        %s1237 = scalar_lea.vmem %s3, %s1236
      $region44: #{lenet5_forward.4} parent=39 // pred_fallthru
        _
    $region40: #{lenet5_forward.4} parent=5 // pred_fallthru
      _
  $region6: #{lenet5_forward.4} parent=0 // loop_footer
    %s13 = sadd.s32 1, %s9
  $region7: #{lenet5_forward.4} parent=0 // loop_footer_branch
    %8 = sbr.rel target = $region3
  $region8: #{lenet5_forward.4} parent=0 // loop_exit
    _

// kernel: lenet5_forward.5
$region0: #{lenet5_forward.5}
  #allocation0 [shape = 'u32[]', space=smem, size = 0x4, offset = 0x4, fixed_abs, tag = 'smem constant byte address 0x4 - core index']
  #allocation1 [shape = 'u32[72,128]{1,0:T(1,128)}', space=vmem, size = 0x9000, scoped, tag = 'internal scratch']
  %s0 = inlined_call_operand.vmem [shape: bf16[2,3136], index: 0, kind: input, shape index: {}]
  %s1 = inlined_call_operand.vmem [shape: bf16[3136,120], index: 1, kind: input, shape index: {}]
  %s2 = inlined_call_operand.vmem [shape: f32[1,120], index: 2, kind: input, shape index: {}]
  %s3 = inlined_call_operand.vmem [shape: bf16[120,84], index: 3, kind: input, shape index: {}]
  %s4 = inlined_call_operand.vmem [shape: f32[1,84], index: 4, kind: input, shape index: {}]
  %s5 = inlined_call_operand.vmem [shape: bf16[84,2], index: 5, kind: input, shape index: {}]
  %s6 = inlined_call_operand.vmem [shape: f32[1,2], index: 6, kind: input, shape index: {}]
  %s7 = inlined_call_operand.hbm [shape: f32[2,2], index: 7, kind: output, shape index: {}]
  %s8 = sld [smem:[#allocation0]]
  $region38: #{lenet5_forward.5} parent=0
    _
  %s10 = ssub.s32 1, %s8
  %s11 = scalar_select 0, %s10, %s8
  $region1: #{lenet5_forward.5} parent=0
    #allocation2 [shape = 'u8[1024]{0}', space=vmem, size = 0x400, scoped, tag = 'output window, operand 0, single buffered']
    #allocation3 [shape = 's32[1]{0}', space=sflag, size = 0x4, scoped, tag = 'scoped memory for lenet5_forward.5']
    %12 = vsyncpa [#allocation3], 0
    // Predicated region
    $region2: #{lenet5_forward.5} parent=1 // pred_check
      _
    $region3: #{lenet5_forward.5} parent=1 // pred_check_branch
      %14 = sbr.rel (0) target = $region5
    $region4: #{lenet5_forward.5} parent=1 // pred_region
      _
    $region5: #{lenet5_forward.5} parent=1 // pred_fallthru
      _
    // Predicated region
    $region6: #{lenet5_forward.5} parent=1 // pred_check
      _
    $region7: #{lenet5_forward.5} parent=1 // pred_check_branch
      %16 = sbr.rel (0) target = $region9
    $region8: #{lenet5_forward.5} parent=1 // pred_region
      _
    $region9: #{lenet5_forward.5} parent=1 // pred_fallthru
      _
    // Predicated region
    $region10: #{lenet5_forward.5} parent=1 // pred_check
      _
    $region11: #{lenet5_forward.5} parent=1 // pred_check_branch
      %18 = sbr.rel (0) target = $region13
    $region12: #{lenet5_forward.5} parent=1 // pred_region
      _
    $region13: #{lenet5_forward.5} parent=1 // pred_fallthru
      _
    // Predicated region
    $region14: #{lenet5_forward.5} parent=1 // pred_check
      _
    $region15: #{lenet5_forward.5} parent=1 // pred_check_branch
      %20 = sbr.rel (0) target = $region17
    $region16: #{lenet5_forward.5} parent=1 // pred_region
      _
    $region17: #{lenet5_forward.5} parent=1 // pred_fallthru
      _
    // Predicated region
    $region18: #{lenet5_forward.5} parent=1 // pred_check
      _
    $region19: #{lenet5_forward.5} parent=1 // pred_check_branch
      %22 = sbr.rel (0) target = $region21
    $region20: #{lenet5_forward.5} parent=1 // pred_region
      _
    $region21: #{lenet5_forward.5} parent=1 // pred_fallthru
      _
    // Predicated region
    $region22: #{lenet5_forward.5} parent=1 // pred_check
      _
    $region23: #{lenet5_forward.5} parent=1 // pred_check_branch
      %24 = sbr.rel (0) target = $region25
    $region24: #{lenet5_forward.5} parent=1 // pred_region
      _
    $region25: #{lenet5_forward.5} parent=1 // pred_fallthru
      _
    // Predicated region
    $region26: #{lenet5_forward.5} parent=1 // pred_check
      _
    $region27: #{lenet5_forward.5} parent=1 // pred_check_branch
      %26 = sbr.rel (0) target = $region29
    $region28: #{lenet5_forward.5} parent=1 // pred_region
      _
    $region29: #{lenet5_forward.5} parent=1 // pred_fallthru
      _
    %v28 = vld [vmem:[%s0] sm:$0xff]
    %v29 = vld [vmem:[%s0 + $0x8] sm:$0xff]
    %v30 = vld [vmem:[%s0 + $0x10] sm:$0xff]
    %v31 = vld [vmem:[%s0 + $0x18] sm:$0x1]
    %v32 = vld [vmem:[%s1] sm:$0xf]
    %v33 = vld [vmem:[%s1 + $0x4] sm:$0xf]
    %v34 = vld [vmem:[%s1 + $0x8] sm:$0xf]
    %v35 = vld [vmem:[%s1 + $0xc] sm:$0xf]
    %v36 = vld [vmem:[%s1 + $0x10] sm:$0xf]
    %v37 = vld [vmem:[%s1 + $0x14] sm:$0xf]
    %v38 = vld [vmem:[%s1 + $0x18] sm:$0xf]
    %v39 = vld [vmem:[%s1 + $0x1c] sm:$0xf]
    %v40 = vld [vmem:[%s1 + $0x20] sm:$0xf]
    %v41 = vld [vmem:[%s1 + $0x24] sm:$0xf]
    %v42 = vld [vmem:[%s1 + $0x28] sm:$0xf]
    %v43 = vld [vmem:[%s1 + $0x2c] sm:$0xf]
    %v44 = vld [vmem:[%s1 + $0x30] sm:$0xf]
    %v45 = vld [vmem:[%s1 + $0x34] sm:$0xf]
    %v46 = vld [vmem:[%s1 + $0x38] sm:$0xf]
    %v47 = vld [vmem:[%s1 + $0x3c] sm:$0xf]
    %v48 = vld [vmem:[%s1 + $0x40] sm:$0xf]
    %v49 = vld [vmem:[%s1 + $0x44] sm:$0xf]
    %v50 = vld [vmem:[%s1 + $0x48] sm:$0xf]
    %v51 = vld [vmem:[%s1 + $0x4c] sm:$0xf]
    %v52 = vld [vmem:[%s1 + $0x50] sm:$0xf]
    %v53 = vld [vmem:[%s1 + $0x54] sm:$0xf]
    %v54 = vld [vmem:[%s1 + $0x58] sm:$0xf]
    %v55 = vld [vmem:[%s1 + $0x5c] sm:$0xf]
    %v56 = vld [vmem:[%s1 + $0x60] sm:$0xf]
    %v57 = vld [vmem:[%s1 + $0x64] sm:$0xf]
    %v58 = vld [vmem:[%s1 + $0x68] sm:$0xf]
    %v59 = vld [vmem:[%s1 + $0x6c] sm:$0xf]
    %v60 = vld [vmem:[%s1 + $0x70] sm:$0xf]
    %v61 = vld [vmem:[%s1 + $0x74] sm:$0xf]
    %v62 = vld [vmem:[%s1 + $0x78] sm:$0xf]
    %v63 = vld [vmem:[%s1 + $0x7c] sm:$0xf]
    %v64 = vld [vmem:[%s1 + $0x80] sm:$0xf]
    %v65 = vld [vmem:[%s1 + $0x84] sm:$0xf]
    %v66 = vld [vmem:[%s1 + $0x88] sm:$0xf]
    %v67 = vld [vmem:[%s1 + $0x8c] sm:$0xf]
    %v68 = vld [vmem:[%s1 + $0x90] sm:$0xf]
    %v69 = vld [vmem:[%s1 + $0x94] sm:$0xf]
    %v70 = vld [vmem:[%s1 + $0x98] sm:$0xf]
    %v71 = vld [vmem:[%s1 + $0x9c] sm:$0xf]
    %v72 = vld [vmem:[%s1 + $0xa0] sm:$0xf]
    %v73 = vld [vmem:[%s1 + $0xa4] sm:$0xf]
    %v74 = vld [vmem:[%s1 + $0xa8] sm:$0xf]
    %v75 = vld [vmem:[%s1 + $0xac] sm:$0xf]
    %v76 = vld [vmem:[%s1 + $0xb0] sm:$0xf]
    %v77 = vld [vmem:[%s1 + $0xb4] sm:$0xf]
    %v78 = vld [vmem:[%s1 + $0xb8] sm:$0xf]
    %v79 = vld [vmem:[%s1 + $0xbc] sm:$0xf]
    %v80 = vld [vmem:[%s1 + $0xc0] sm:$0xf]
    %v81 = vld [vmem:[%s1 + $0xc4] sm:$0xf]
    %v82 = vld [vmem:[%s1 + $0xc8] sm:$0xf]
    %v83 = vld [vmem:[%s1 + $0xcc] sm:$0xf]
    %v84 = vld [vmem:[%s1 + $0xd0] sm:$0xf]
    %v85 = vld [vmem:[%s1 + $0xd4] sm:$0xf]
    %v86 = vld [vmem:[%s1 + $0xd8] sm:$0xf]
    %v87 = vld [vmem:[%s1 + $0xdc] sm:$0xf]
    %v88 = vld [vmem:[%s1 + $0xe0] sm:$0xf]
    %v89 = vld [vmem:[%s1 + $0xe4] sm:$0xf]
    %v90 = vld [vmem:[%s1 + $0xe8] sm:$0xf]
    %v91 = vld [vmem:[%s1 + $0xec] sm:$0xf]
    %v92 = vld [vmem:[%s1 + $0xf0] sm:$0xf]
    %v93 = vld [vmem:[%s1 + $0xf4] sm:$0xf]
    %v94 = vld [vmem:[%s1 + $0xf8] sm:$0xf]
    %v95 = vld [vmem:[%s1 + $0xfc] sm:$0xf]
    %v96 = vld [vmem:[%s1 + $0x100] sm:$0xf]
    %v97 = vld [vmem:[%s1 + $0x104] sm:$0xf]
    %v98 = vld [vmem:[%s1 + $0x108] sm:$0xf]
    %v99 = vld [vmem:[%s1 + $0x10c] sm:$0xf]
    %v100 = vld [vmem:[%s1 + $0x110] sm:$0xf]
    %v101 = vld [vmem:[%s1 + $0x114] sm:$0xf]
    %v102 = vld [vmem:[%s1 + $0x118] sm:$0xf]
    %v103 = vld [vmem:[%s1 + $0x11c] sm:$0xf]
    %v104 = vld [vmem:[%s1 + $0x120] sm:$0xf]
    %v105 = vld [vmem:[%s1 + $0x124] sm:$0xf]
    %v106 = vld [vmem:[%s1 + $0x128] sm:$0xf]
    %v107 = vld [vmem:[%s1 + $0x12c] sm:$0xf]
    %v108 = vld [vmem:[%s1 + $0x130] sm:$0xf]
    %v109 = vld [vmem:[%s1 + $0x134] sm:$0xf]
    %v110 = vld [vmem:[%s1 + $0x138] sm:$0xf]
    %v111 = vld [vmem:[%s1 + $0x13c] sm:$0xf]
    %v112 = vld [vmem:[%s1 + $0x140] sm:$0xf]
    %v113 = vld [vmem:[%s1 + $0x144] sm:$0xf]
    %v114 = vld [vmem:[%s1 + $0x148] sm:$0xf]
    %v115 = vld [vmem:[%s1 + $0x14c] sm:$0xf]
    %v116 = vld [vmem:[%s1 + $0x150] sm:$0xf]
    %v117 = vld [vmem:[%s1 + $0x154] sm:$0xf]
    %v118 = vld [vmem:[%s1 + $0x158] sm:$0xf]
    %v119 = vld [vmem:[%s1 + $0x15c] sm:$0xf]
    %v120 = vld [vmem:[%s1 + $0x160] sm:$0xf]
    %v121 = vld [vmem:[%s1 + $0x164] sm:$0xf]
    %v122 = vld [vmem:[%s1 + $0x168] sm:$0xf]
    %v123 = vld [vmem:[%s1 + $0x16c] sm:$0xf]
    %v124 = vld [vmem:[%s1 + $0x170] sm:$0xf]
    %v125 = vld [vmem:[%s1 + $0x174] sm:$0xf]
    %v126 = vld [vmem:[%s1 + $0x178] sm:$0xf]
    %v127 = vld [vmem:[%s1 + $0x17c] sm:$0xf]
    %v128 = vld [vmem:[%s1 + $0x180] sm:$0xf]
    %v129 = vld [vmem:[%s1 + $0x184] sm:$0xf]
    %v130 = vld [vmem:[%s1 + $0x188] sm:$0xf]
    %v131 = vld [vmem:[%s1 + $0x18c] sm:$0xf]
    %v132 = vld [vmem:[%s1 + $0x190] sm:$0xf]
    %v133 = vld [vmem:[%s1 + $0x194] sm:$0xf]
    %v134 = vld [vmem:[%s1 + $0x198] sm:$0xf]
    %v135 = vld [vmem:[%s1 + $0x19c] sm:$0xf]
    %v136 = vld [vmem:[%s1 + $0x1a0] sm:$0xf]
    %v137 = vld [vmem:[%s1 + $0x1a4] sm:$0xf]
    %v138 = vld [vmem:[%s1 + $0x1a8] sm:$0xf]
    %v139 = vld [vmem:[%s1 + $0x1ac] sm:$0xf]
    %v140 = vld [vmem:[%s1 + $0x1b0] sm:$0xf]
    %v141 = vld [vmem:[%s1 + $0x1b4] sm:$0xf]
    %v142 = vld [vmem:[%s1 + $0x1b8] sm:$0xf]
    %v143 = vld [vmem:[%s1 + $0x1bc] sm:$0xf]
    %v144 = vld [vmem:[%s1 + $0x1c0] sm:$0xf]
    %v145 = vld [vmem:[%s1 + $0x1c4] sm:$0xf]
    %v146 = vld [vmem:[%s1 + $0x1c8] sm:$0xf]
    %v147 = vld [vmem:[%s1 + $0x1cc] sm:$0xf]
    %v148 = vld [vmem:[%s1 + $0x1d0] sm:$0xf]
    %v149 = vld [vmem:[%s1 + $0x1d4] sm:$0xf]
    %v150 = vld [vmem:[%s1 + $0x1d8] sm:$0xf]
    %v151 = vld [vmem:[%s1 + $0x1dc] sm:$0xf]
    %v152 = vld [vmem:[%s1 + $0x1e0] sm:$0xf]
    %v153 = vld [vmem:[%s1 + $0x1e4] sm:$0xf]
    %v154 = vld [vmem:[%s1 + $0x1e8] sm:$0xf]
    %v155 = vld [vmem:[%s1 + $0x1ec] sm:$0xf]
    %v156 = vld [vmem:[%s1 + $0x1f0] sm:$0xf]
    %v157 = vld [vmem:[%s1 + $0x1f4] sm:$0xf]
    %v158 = vld [vmem:[%s1 + $0x1f8] sm:$0xf]
    %v159 = vld [vmem:[%s1 + $0x1fc] sm:$0xf]
    %v160 = vld [vmem:[%s1 + $0x200] sm:$0xf]
    %v161 = vld [vmem:[%s1 + $0x204] sm:$0xf]
    %v162 = vld [vmem:[%s1 + $0x208] sm:$0xf]
    %v163 = vld [vmem:[%s1 + $0x20c] sm:$0xf]
    %v164 = vld [vmem:[%s1 + $0x210] sm:$0xf]
    %v165 = vld [vmem:[%s1 + $0x214] sm:$0xf]
    %v166 = vld [vmem:[%s1 + $0x218] sm:$0xf]
    %v167 = vld [vmem:[%s1 + $0x21c] sm:$0xf]
    %v168 = vld [vmem:[%s1 + $0x220] sm:$0xf]
    %v169 = vld [vmem:[%s1 + $0x224] sm:$0xf]
    %v170 = vld [vmem:[%s1 + $0x228] sm:$0xf]
    %v171 = vld [vmem:[%s1 + $0x22c] sm:$0xf]
    %v172 = vld [vmem:[%s1 + $0x230] sm:$0xf]
    %v173 = vld [vmem:[%s1 + $0x234] sm:$0xf]
    %v174 = vld [vmem:[%s1 + $0x238] sm:$0xf]
    %v175 = vld [vmem:[%s1 + $0x23c] sm:$0xf]
    %v176 = vld [vmem:[%s1 + $0x240] sm:$0xf]
    %v177 = vld [vmem:[%s1 + $0x244] sm:$0xf]
    %v178 = vld [vmem:[%s1 + $0x248] sm:$0xf]
    %v179 = vld [vmem:[%s1 + $0x24c] sm:$0xf]
    %v180 = vld [vmem:[%s1 + $0x250] sm:$0xf]
    %v181 = vld [vmem:[%s1 + $0x254] sm:$0xf]
    %v182 = vld [vmem:[%s1 + $0x258] sm:$0xf]
    %v183 = vld [vmem:[%s1 + $0x25c] sm:$0xf]
    %v184 = vld [vmem:[%s1 + $0x260] sm:$0xf]
    %v185 = vld [vmem:[%s1 + $0x264] sm:$0xf]
    %v186 = vld [vmem:[%s1 + $0x268] sm:$0xf]
    %v187 = vld [vmem:[%s1 + $0x26c] sm:$0xf]
    %v188 = vld [vmem:[%s1 + $0x270] sm:$0xf]
    %v189 = vld [vmem:[%s1 + $0x274] sm:$0xf]
    %v190 = vld [vmem:[%s1 + $0x278] sm:$0xf]
    %v191 = vld [vmem:[%s1 + $0x27c] sm:$0xf]
    %v192 = vld [vmem:[%s1 + $0x280] sm:$0xf]
    %v193 = vld [vmem:[%s1 + $0x284] sm:$0xf]
    %v194 = vld [vmem:[%s1 + $0x288] sm:$0xf]
    %v195 = vld [vmem:[%s1 + $0x28c] sm:$0xf]
    %v196 = vld [vmem:[%s1 + $0x290] sm:$0xf]
    %v197 = vld [vmem:[%s1 + $0x294] sm:$0xf]
    %v198 = vld [vmem:[%s1 + $0x298] sm:$0xf]
    %v199 = vld [vmem:[%s1 + $0x29c] sm:$0xf]
    %v200 = vld [vmem:[%s1 + $0x2a0] sm:$0xf]
    %v201 = vld [vmem:[%s1 + $0x2a4] sm:$0xf]
    %v202 = vld [vmem:[%s1 + $0x2a8] sm:$0xf]
    %v203 = vld [vmem:[%s1 + $0x2ac] sm:$0xf]
    %v204 = vld [vmem:[%s1 + $0x2b0] sm:$0xf]
    %v205 = vld [vmem:[%s1 + $0x2b4] sm:$0xf]
    %v206 = vld [vmem:[%s1 + $0x2b8] sm:$0xf]
    %v207 = vld [vmem:[%s1 + $0x2bc] sm:$0xf]
    %v208 = vld [vmem:[%s1 + $0x2c0] sm:$0xf]
    %v209 = vld [vmem:[%s1 + $0x2c4] sm:$0xf]
    %v210 = vld [vmem:[%s1 + $0x2c8] sm:$0xf]
    %v211 = vld [vmem:[%s1 + $0x2cc] sm:$0xf]
    %v212 = vld [vmem:[%s1 + $0x2d0] sm:$0xf]
    %v213 = vld [vmem:[%s1 + $0x2d4] sm:$0xf]
    %v214 = vld [vmem:[%s1 + $0x2d8] sm:$0xf]
    %v215 = vld [vmem:[%s1 + $0x2dc] sm:$0xf]
    %v216 = vld [vmem:[%s1 + $0x2e0] sm:$0xf]
    %v217 = vld [vmem:[%s1 + $0x2e4] sm:$0xf]
    %v218 = vld [vmem:[%s1 + $0x2e8] sm:$0xf]
    %v219 = vld [vmem:[%s1 + $0x2ec] sm:$0xf]
    %v220 = vld [vmem:[%s1 + $0x2f0] sm:$0xf]
    %v221 = vld [vmem:[%s1 + $0x2f4] sm:$0xf]
    %v222 = vld [vmem:[%s1 + $0x2f8] sm:$0xf]
    %v223 = vld [vmem:[%s1 + $0x2fc] sm:$0xf]
    %v224 = vld [vmem:[%s1 + $0x300] sm:$0xf]
    %v225 = vld [vmem:[%s1 + $0x304] sm:$0xf]
    %v226 = vld [vmem:[%s1 + $0x308] sm:$0xf]
    %v227 = vld [vmem:[%s1 + $0x30c] sm:$0xf]
    %v228 = vld [vmem:[%s1 + $0x310] sm:$0xf]
    %v229 = vld [vmem:[%s1 + $0x314] sm:$0xf]
    %v230 = vld [vmem:[%s1 + $0x318] sm:$0xf]
    %v231 = vld [vmem:[%s1 + $0x31c] sm:$0xf]
    %v232 = vld [vmem:[%s1 + $0x320] sm:$0xf]
    %v233 = vld [vmem:[%s1 + $0x324] sm:$0xf]
    %v234 = vld [vmem:[%s1 + $0x328] sm:$0xf]
    %v235 = vld [vmem:[%s1 + $0x32c] sm:$0xf]
    %v236 = vld [vmem:[%s1 + $0x330] sm:$0xf]
    %v237 = vld [vmem:[%s1 + $0x334] sm:$0xf]
    %v238 = vld [vmem:[%s1 + $0x338] sm:$0xf]
    %v239 = vld [vmem:[%s1 + $0x33c] sm:$0xf]
    %v240 = vld [vmem:[%s1 + $0x340] sm:$0xf]
    %v241 = vld [vmem:[%s1 + $0x344] sm:$0xf]
    %v242 = vld [vmem:[%s1 + $0x348] sm:$0xf]
    %v243 = vld [vmem:[%s1 + $0x34c] sm:$0xf]
    %v244 = vld [vmem:[%s1 + $0x350] sm:$0xf]
    %v245 = vld [vmem:[%s1 + $0x354] sm:$0xf]
    %v246 = vld [vmem:[%s1 + $0x358] sm:$0xf]
    %v247 = vld [vmem:[%s1 + $0x35c] sm:$0xf]
    %v248 = vld [vmem:[%s1 + $0x360] sm:$0xf]
    %v249 = vld [vmem:[%s1 + $0x364] sm:$0xf]
    %v250 = vld [vmem:[%s1 + $0x368] sm:$0xf]
    %v251 = vld [vmem:[%s1 + $0x36c] sm:$0xf]
    %v252 = vld [vmem:[%s1 + $0x370] sm:$0xf]
    %v253 = vld [vmem:[%s1 + $0x374] sm:$0xf]
    %v254 = vld [vmem:[%s1 + $0x378] sm:$0xf]
    %v255 = vld [vmem:[%s1 + $0x37c] sm:$0xf]
    %v256 = vld [vmem:[%s1 + $0x380] sm:$0xf]
    %v257 = vld [vmem:[%s1 + $0x384] sm:$0xf]
    %v258 = vld [vmem:[%s1 + $0x388] sm:$0xf]
    %v259 = vld [vmem:[%s1 + $0x38c] sm:$0xf]
    %v260 = vld [vmem:[%s1 + $0x390] sm:$0xf]
    %v261 = vld [vmem:[%s1 + $0x394] sm:$0xf]
    %v262 = vld [vmem:[%s1 + $0x398] sm:$0xf]
    %v263 = vld [vmem:[%s1 + $0x39c] sm:$0xf]
    %v264 = vld [vmem:[%s1 + $0x3a0] sm:$0xf]
    %v265 = vld [vmem:[%s1 + $0x3a4] sm:$0xf]
    %v266 = vld [vmem:[%s1 + $0x3a8] sm:$0xf]
    %v267 = vld [vmem:[%s1 + $0x3ac] sm:$0xf]
    %v268 = vld [vmem:[%s1 + $0x3b0] sm:$0xf]
    %v269 = vld [vmem:[%s1 + $0x3b4] sm:$0xf]
    %v270 = vld [vmem:[%s1 + $0x3b8] sm:$0xf]
    %v271 = vld [vmem:[%s1 + $0x3bc] sm:$0xf]
    %v272 = vld [vmem:[%s1 + $0x3c0] sm:$0xf]
    %v273 = vld [vmem:[%s1 + $0x3c4] sm:$0xf]
    %v274 = vld [vmem:[%s1 + $0x3c8] sm:$0xf]
    %v275 = vld [vmem:[%s1 + $0x3cc] sm:$0xf]
    %v276 = vld [vmem:[%s1 + $0x3d0] sm:$0xf]
    %v277 = vld [vmem:[%s1 + $0x3d4] sm:$0xf]
    %v278 = vld [vmem:[%s1 + $0x3d8] sm:$0xf]
    %v279 = vld [vmem:[%s1 + $0x3dc] sm:$0xf]
    %v280 = vld [vmem:[%s1 + $0x3e0] sm:$0xf]
    %v281 = vld [vmem:[%s1 + $0x3e4] sm:$0xf]
    %v282 = vld [vmem:[%s1 + $0x3e8] sm:$0xf]
    %v283 = vld [vmem:[%s1 + $0x3ec] sm:$0xf]
    %v284 = vld [vmem:[%s1 + $0x3f0] sm:$0xf]
    %v285 = vld [vmem:[%s1 + $0x3f4] sm:$0xf]
    %v286 = vld [vmem:[%s1 + $0x3f8] sm:$0xf]
    %v287 = vld [vmem:[%s1 + $0x3fc] sm:$0xf]
    %v288 = vld [vmem:[%s1 + $0x400] sm:$0xf]
    %v289 = vld [vmem:[%s1 + $0x404] sm:$0xf]
    %v290 = vld [vmem:[%s1 + $0x408] sm:$0xf]
    %v291 = vld [vmem:[%s1 + $0x40c] sm:$0xf]
    %v292 = vld [vmem:[%s1 + $0x410] sm:$0xf]
    %v293 = vld [vmem:[%s1 + $0x414] sm:$0xf]
    %v294 = vld [vmem:[%s1 + $0x418] sm:$0xf]
    %v295 = vld [vmem:[%s1 + $0x41c] sm:$0xf]
    %v296 = vld [vmem:[%s1 + $0x420] sm:$0xf]
    %v297 = vld [vmem:[%s1 + $0x424] sm:$0xf]
    %v298 = vld [vmem:[%s1 + $0x428] sm:$0xf]
    %v299 = vld [vmem:[%s1 + $0x42c] sm:$0xf]
    %v300 = vld [vmem:[%s1 + $0x430] sm:$0xf]
    %v301 = vld [vmem:[%s1 + $0x434] sm:$0xf]
    %v302 = vld [vmem:[%s1 + $0x438] sm:$0xf]
    %v303 = vld [vmem:[%s1 + $0x43c] sm:$0xf]
    %v304 = vld [vmem:[%s1 + $0x440] sm:$0xf]
    %v305 = vld [vmem:[%s1 + $0x444] sm:$0xf]
    %v306 = vld [vmem:[%s1 + $0x448] sm:$0xf]
    %v307 = vld [vmem:[%s1 + $0x44c] sm:$0xf]
    %v308 = vld [vmem:[%s1 + $0x450] sm:$0xf]
    %v309 = vld [vmem:[%s1 + $0x454] sm:$0xf]
    %v310 = vld [vmem:[%s1 + $0x458] sm:$0xf]
    %v311 = vld [vmem:[%s1 + $0x45c] sm:$0xf]
    %v312 = vld [vmem:[%s1 + $0x460] sm:$0xf]
    %v313 = vld [vmem:[%s1 + $0x464] sm:$0xf]
    %v314 = vld [vmem:[%s1 + $0x468] sm:$0xf]
    %v315 = vld [vmem:[%s1 + $0x46c] sm:$0xf]
    %v316 = vld [vmem:[%s1 + $0x470] sm:$0xf]
    %v317 = vld [vmem:[%s1 + $0x474] sm:$0xf]
    %v318 = vld [vmem:[%s1 + $0x478] sm:$0xf]
    %v319 = vld [vmem:[%s1 + $0x47c] sm:$0xf]
    %v320 = vld [vmem:[%s1 + $0x480] sm:$0xf]
    %v321 = vld [vmem:[%s1 + $0x484] sm:$0xf]
    %v322 = vld [vmem:[%s1 + $0x488] sm:$0xf]
    %v323 = vld [vmem:[%s1 + $0x48c] sm:$0xf]
    %v324 = vld [vmem:[%s1 + $0x490] sm:$0xf]
    %v325 = vld [vmem:[%s1 + $0x494] sm:$0xf]
    %v326 = vld [vmem:[%s1 + $0x498] sm:$0xf]
    %v327 = vld [vmem:[%s1 + $0x49c] sm:$0xf]
    %v328 = vld [vmem:[%s1 + $0x4a0] sm:$0xf]
    %v329 = vld [vmem:[%s1 + $0x4a4] sm:$0xf]
    %v330 = vld [vmem:[%s1 + $0x4a8] sm:$0xf]
    %v331 = vld [vmem:[%s1 + $0x4ac] sm:$0xf]
    %v332 = vld [vmem:[%s1 + $0x4b0] sm:$0xf]
    %v333 = vld [vmem:[%s1 + $0x4b4] sm:$0xf]
    %v334 = vld [vmem:[%s1 + $0x4b8] sm:$0xf]
    %v335 = vld [vmem:[%s1 + $0x4bc] sm:$0xf]
    %v336 = vld [vmem:[%s1 + $0x4c0] sm:$0xf]
    %v337 = vld [vmem:[%s1 + $0x4c4] sm:$0xf]
    %v338 = vld [vmem:[%s1 + $0x4c8] sm:$0xf]
    %v339 = vld [vmem:[%s1 + $0x4cc] sm:$0xf]
    %v340 = vld [vmem:[%s1 + $0x4d0] sm:$0xf]
    %v341 = vld [vmem:[%s1 + $0x4d4] sm:$0xf]
    %v342 = vld [vmem:[%s1 + $0x4d8] sm:$0xf]
    %v343 = vld [vmem:[%s1 + $0x4dc] sm:$0xf]
    %v344 = vld [vmem:[%s1 + $0x4e0] sm:$0xf]
    %v345 = vld [vmem:[%s1 + $0x4e4] sm:$0xf]
    %v346 = vld [vmem:[%s1 + $0x4e8] sm:$0xf]
    %v347 = vld [vmem:[%s1 + $0x4ec] sm:$0xf]
    %v348 = vld [vmem:[%s1 + $0x4f0] sm:$0xf]
    %v349 = vld [vmem:[%s1 + $0x4f4] sm:$0xf]
    %v350 = vld [vmem:[%s1 + $0x4f8] sm:$0xf]
    %v351 = vld [vmem:[%s1 + $0x4fc] sm:$0xf]
    %v352 = vld [vmem:[%s1 + $0x500] sm:$0xf]
    %v353 = vld [vmem:[%s1 + $0x504] sm:$0xf]
    %v354 = vld [vmem:[%s1 + $0x508] sm:$0xf]
    %v355 = vld [vmem:[%s1 + $0x50c] sm:$0xf]
    %v356 = vld [vmem:[%s1 + $0x510] sm:$0xf]
    %v357 = vld [vmem:[%s1 + $0x514] sm:$0xf]
    %v358 = vld [vmem:[%s1 + $0x518] sm:$0xf]
    %v359 = vld [vmem:[%s1 + $0x51c] sm:$0xf]
    %v360 = vld [vmem:[%s1 + $0x520] sm:$0xf]
    %v361 = vld [vmem:[%s1 + $0x524] sm:$0xf]
    %v362 = vld [vmem:[%s1 + $0x528] sm:$0xf]
    %v363 = vld [vmem:[%s1 + $0x52c] sm:$0xf]
    %v364 = vld [vmem:[%s1 + $0x530] sm:$0xf]
    %v365 = vld [vmem:[%s1 + $0x534] sm:$0xf]
    %v366 = vld [vmem:[%s1 + $0x538] sm:$0xf]
    %v367 = vld [vmem:[%s1 + $0x53c] sm:$0xf]
    %v368 = vld [vmem:[%s1 + $0x540] sm:$0xf]
    %v369 = vld [vmem:[%s1 + $0x544] sm:$0xf]
    %v370 = vld [vmem:[%s1 + $0x548] sm:$0xf]
    %v371 = vld [vmem:[%s1 + $0x54c] sm:$0xf]
    %v372 = vld [vmem:[%s1 + $0x550] sm:$0xf]
    %v373 = vld [vmem:[%s1 + $0x554] sm:$0xf]
    %v374 = vld [vmem:[%s1 + $0x558] sm:$0xf]
    %v375 = vld [vmem:[%s1 + $0x55c] sm:$0xf]
    %v376 = vld [vmem:[%s1 + $0x560] sm:$0xf]
    %v377 = vld [vmem:[%s1 + $0x564] sm:$0xf]
    %v378 = vld [vmem:[%s1 + $0x568] sm:$0xf]
    %v379 = vld [vmem:[%s1 + $0x56c] sm:$0xf]
    %v380 = vld [vmem:[%s1 + $0x570] sm:$0xf]
    %v381 = vld [vmem:[%s1 + $0x574] sm:$0xf]
    %v382 = vld [vmem:[%s1 + $0x578] sm:$0xf]
    %v383 = vld [vmem:[%s1 + $0x57c] sm:$0xf]
    %v384 = vld [vmem:[%s1 + $0x580] sm:$0xf]
    %v385 = vld [vmem:[%s1 + $0x584] sm:$0xf]
    %v386 = vld [vmem:[%s1 + $0x588] sm:$0xf]
    %v387 = vld [vmem:[%s1 + $0x58c] sm:$0xf]
    %v388 = vld [vmem:[%s1 + $0x590] sm:$0xf]
    %v389 = vld [vmem:[%s1 + $0x594] sm:$0xf]
    %v390 = vld [vmem:[%s1 + $0x598] sm:$0xf]
    %v391 = vld [vmem:[%s1 + $0x59c] sm:$0xf]
    %v392 = vld [vmem:[%s1 + $0x5a0] sm:$0xf]
    %v393 = vld [vmem:[%s1 + $0x5a4] sm:$0xf]
    %v394 = vld [vmem:[%s1 + $0x5a8] sm:$0xf]
    %v395 = vld [vmem:[%s1 + $0x5ac] sm:$0xf]
    %v396 = vld [vmem:[%s1 + $0x5b0] sm:$0xf]
    %v397 = vld [vmem:[%s1 + $0x5b4] sm:$0xf]
    %v398 = vld [vmem:[%s1 + $0x5b8] sm:$0xf]
    %v399 = vld [vmem:[%s1 + $0x5bc] sm:$0xf]
    %v400 = vld [vmem:[%s1 + $0x5c0] sm:$0xf]
    %v401 = vld [vmem:[%s1 + $0x5c4] sm:$0xf]
    %v402 = vld [vmem:[%s1 + $0x5c8] sm:$0xf]
    %v403 = vld [vmem:[%s1 + $0x5cc] sm:$0xf]
    %v404 = vld [vmem:[%s1 + $0x5d0] sm:$0xf]
    %v405 = vld [vmem:[%s1 + $0x5d4] sm:$0xf]
    %v406 = vld [vmem:[%s1 + $0x5d8] sm:$0xf]
    %v407 = vld [vmem:[%s1 + $0x5dc] sm:$0xf]
    %v408 = vld [vmem:[%s1 + $0x5e0] sm:$0xf]
    %v409 = vld [vmem:[%s1 + $0x5e4] sm:$0xf]
    %v410 = vld [vmem:[%s1 + $0x5e8] sm:$0xf]
    %v411 = vld [vmem:[%s1 + $0x5ec] sm:$0xf]
    %v412 = vld [vmem:[%s1 + $0x5f0] sm:$0xf]
    %v413 = vld [vmem:[%s1 + $0x5f4] sm:$0xf]
    %v414 = vld [vmem:[%s1 + $0x5f8] sm:$0xf]
    %v415 = vld [vmem:[%s1 + $0x5fc] sm:$0xf]
    %v416 = vld [vmem:[%s1 + $0x600] sm:$0xf]
    %v417 = vld [vmem:[%s1 + $0x604] sm:$0xf]
    %v418 = vld [vmem:[%s1 + $0x608] sm:$0xf]
    %v419 = vld [vmem:[%s1 + $0x60c] sm:$0xf]
    %v420 = vld [vmem:[%s1 + $0x610] sm:$0xf]
    %v421 = vld [vmem:[%s1 + $0x614] sm:$0xf]
    %v422 = vld [vmem:[%s1 + $0x618] sm:$0xf]
    %v423 = vld [vmem:[%s1 + $0x61c] sm:$0xf]
    %v424 = vld [vmem:[%s2] sm:$0x1]
    %v426 = vperm.slane %v424, 0
    %429 = vst [vmem:[#allocation1] ss:$9 sm:$0xff] %v28
    %v430 = vld [vmem:[#allocation1] sm:$0xff]
    %v431 = vld [vmem:[#allocation1 + $0x9] sm:$0xff]
    %v432 = vld [vmem:[#allocation1 + $0x12] sm:$0xff]
    %v433 = vld [vmem:[#allocation1 + $0x1b] sm:$0xff]
    %v434 = vld [vmem:[#allocation1 + $0x24] sm:$0xff]
    %v435 = vld [vmem:[#allocation1 + $0x2d] sm:$0xff]
    %v436 = vld [vmem:[#allocation1 + $0x36] sm:$0xff]
    %v437 = vld [vmem:[#allocation1 + $0x3f] sm:$0xff]
    %439 = vst [vmem:[#allocation1] ss:$9 sm:$0xff] %v29
    %v440 = vld [vmem:[#allocation1] sm:$0xff]
    %v441 = vld [vmem:[#allocation1 + $0x9] sm:$0xff]
    %v442 = vld [vmem:[#allocation1 + $0x12] sm:$0xff]
    %v443 = vld [vmem:[#allocation1 + $0x1b] sm:$0xff]
    %v444 = vld [vmem:[#allocation1 + $0x24] sm:$0xff]
    %v445 = vld [vmem:[#allocation1 + $0x2d] sm:$0xff]
    %v446 = vld [vmem:[#allocation1 + $0x36] sm:$0xff]
    %v447 = vld [vmem:[#allocation1 + $0x3f] sm:$0xff]
    %449 = vst [vmem:[#allocation1] ss:$9 sm:$0xff] %v30
    %v450 = vld [vmem:[#allocation1] sm:$0xff]
    %v451 = vld [vmem:[#allocation1 + $0x9] sm:$0xff]
    %v452 = vld [vmem:[#allocation1 + $0x12] sm:$0xff]
    %v453 = vld [vmem:[#allocation1 + $0x1b] sm:$0xff]
    %v454 = vld [vmem:[#allocation1 + $0x24] sm:$0xff]
    %v455 = vld [vmem:[#allocation1 + $0x2d] sm:$0xff]
    %v456 = vld [vmem:[#allocation1 + $0x36] sm:$0xff]
    %v457 = vld [vmem:[#allocation1 + $0x3f] sm:$0xff]
    %459 = vst [vmem:[#allocation1] ss:$9 sm:$0xff] %v31
    %v460 = vld [vmem:[#allocation1] sm:$0xff]
    %v877 = vunpack.c.l.b16 %v32
    %v878 = vunpack.c.l.b16 %v33
    %v879 = vunpack.c.l.b16 %v34
    %v880 = vunpack.c.l.b16 %v35
    %v881 = vunpack.c.l.b16 %v36
    %v882 = vunpack.c.l.b16 %v37
    %v883 = vunpack.c.l.b16 %v38
    %v884 = vunpack.c.l.b16 %v39
    %v885 = vunpack.c.l.b16 %v40
    %v886 = vunpack.c.l.b16 %v41
    %v887 = vunpack.c.l.b16 %v42
    %v888 = vunpack.c.l.b16 %v43
    %v889 = vunpack.c.l.b16 %v44
    %v890 = vunpack.c.l.b16 %v45
    %v891 = vunpack.c.l.b16 %v46
    %v892 = vunpack.c.l.b16 %v47
    %v893 = vunpack.c.l.b16 %v48
    %v894 = vunpack.c.l.b16 %v49
    %v895 = vunpack.c.l.b16 %v50
    %v896 = vunpack.c.l.b16 %v51
    %v897 = vunpack.c.l.b16 %v52
    %v898 = vunpack.c.l.b16 %v53
    %v899 = vunpack.c.l.b16 %v54
    %v900 = vunpack.c.l.b16 %v55
    %v901 = vunpack.c.l.b16 %v56
    %v902 = vunpack.c.l.b16 %v57
    %v903 = vunpack.c.l.b16 %v58
    %v904 = vunpack.c.l.b16 %v59
    %v905 = vunpack.c.l.b16 %v60
    %v906 = vunpack.c.l.b16 %v61
    %v907 = vunpack.c.l.b16 %v62
    %v908 = vunpack.c.l.b16 %v63
    %v909 = vunpack.c.l.b16 %v64
    %v910 = vunpack.c.l.b16 %v65
    %v911 = vunpack.c.l.b16 %v66
    %v912 = vunpack.c.l.b16 %v67
    %v913 = vunpack.c.l.b16 %v68
    %v914 = vunpack.c.l.b16 %v69
    %v915 = vunpack.c.l.b16 %v70
    %v916 = vunpack.c.l.b16 %v71
    %v917 = vunpack.c.l.b16 %v72
    %v918 = vunpack.c.l.b16 %v73
    %v919 = vunpack.c.l.b16 %v74
    %v920 = vunpack.c.l.b16 %v75
    %v921 = vunpack.c.l.b16 %v76
    %v922 = vunpack.c.l.b16 %v77
    %v923 = vunpack.c.l.b16 %v78
    %v924 = vunpack.c.l.b16 %v79
    %v925 = vunpack.c.l.b16 %v80
    %v926 = vunpack.c.l.b16 %v81
    %v927 = vunpack.c.l.b16 %v82
    %v928 = vunpack.c.l.b16 %v83
    %v929 = vunpack.c.l.b16 %v84
    %v930 = vunpack.c.l.b16 %v85
    %v931 = vunpack.c.l.b16 %v86
    %v932 = vunpack.c.l.b16 %v87
    %v933 = vunpack.c.l.b16 %v88
    %v934 = vunpack.c.l.b16 %v89
    %v935 = vunpack.c.l.b16 %v90
    %v936 = vunpack.c.l.b16 %v91
    %v937 = vunpack.c.l.b16 %v92
    %v938 = vunpack.c.l.b16 %v93
    %v939 = vunpack.c.l.b16 %v94
    %v940 = vunpack.c.l.b16 %v95
    %v941 = vunpack.c.l.b16 %v96
    %v942 = vunpack.c.l.b16 %v97
    %v943 = vunpack.c.l.b16 %v98
    %v944 = vunpack.c.l.b16 %v99
    %v945 = vunpack.c.l.b16 %v100
    %v946 = vunpack.c.l.b16 %v101
    %v947 = vunpack.c.l.b16 %v102
    %v948 = vunpack.c.l.b16 %v103
    %v949 = vunpack.c.l.b16 %v104
    %v950 = vunpack.c.l.b16 %v105
    %v951 = vunpack.c.l.b16 %v106
    %v952 = vunpack.c.l.b16 %v107
    %v953 = vunpack.c.l.b16 %v108
    %v954 = vunpack.c.l.b16 %v109
    %v955 = vunpack.c.l.b16 %v110
    %v956 = vunpack.c.l.b16 %v111
    %v957 = vunpack.c.l.b16 %v112
    %v958 = vunpack.c.l.b16 %v113
    %v959 = vunpack.c.l.b16 %v114
    %v960 = vunpack.c.l.b16 %v115
    %v961 = vunpack.c.l.b16 %v116
    %v962 = vunpack.c.l.b16 %v117
    %v963 = vunpack.c.l.b16 %v118
    %v964 = vunpack.c.l.b16 %v119
    %v965 = vunpack.c.l.b16 %v120
    %v966 = vunpack.c.l.b16 %v121
    %v967 = vunpack.c.l.b16 %v122
    %v968 = vunpack.c.l.b16 %v123
    %v969 = vunpack.c.l.b16 %v124
    %v970 = vunpack.c.l.b16 %v125
    %v971 = vunpack.c.l.b16 %v126
    %v972 = vunpack.c.l.b16 %v127
    %v973 = vunpack.c.l.b16 %v128
    %v974 = vunpack.c.l.b16 %v129
    %v975 = vunpack.c.l.b16 %v130
    %v976 = vunpack.c.l.b16 %v131
    %v977 = vunpack.c.l.b16 %v132
    %v978 = vunpack.c.l.b16 %v133
    %v979 = vunpack.c.l.b16 %v134
    %v980 = vunpack.c.l.b16 %v135
    %v981 = vunpack.c.l.b16 %v136
    %v982 = vunpack.c.l.b16 %v137
    %v983 = vunpack.c.l.b16 %v138
    %v984 = vunpack.c.l.b16 %v139
    %v985 = vunpack.c.l.b16 %v140
    %v986 = vunpack.c.l.b16 %v141
    %v987 = vunpack.c.l.b16 %v142
    %v988 = vunpack.c.l.b16 %v143
    %v989 = vunpack.c.l.b16 %v144
    %v990 = vunpack.c.l.b16 %v145
    %v991 = vunpack.c.l.b16 %v146
    %v992 = vunpack.c.l.b16 %v147
    %v993 = vunpack.c.l.b16 %v148
    %v994 = vunpack.c.l.b16 %v149
    %v995 = vunpack.c.l.b16 %v150
    %v996 = vunpack.c.l.b16 %v151
    %v997 = vunpack.c.l.b16 %v152
    %v998 = vunpack.c.l.b16 %v153
    %v999 = vunpack.c.l.b16 %v154
    %v1000 = vunpack.c.l.b16 %v155
    %v1001 = vunpack.c.l.b16 %v156
    %v1002 = vunpack.c.l.b16 %v157
    %v1003 = vunpack.c.l.b16 %v158
    %v1004 = vunpack.c.l.b16 %v159
    %v1005 = vunpack.c.l.b16 %v160
    %v1006 = vunpack.c.l.b16 %v161
    %v1007 = vunpack.c.l.b16 %v162
    %v1008 = vunpack.c.l.b16 %v163
    %v1009 = vunpack.c.l.b16 %v164
    %v1010 = vunpack.c.l.b16 %v165
    %v1011 = vunpack.c.l.b16 %v166
    %v1012 = vunpack.c.l.b16 %v167
    %v1013 = vunpack.c.l.b16 %v168
    %v1014 = vunpack.c.l.b16 %v169
    %v1015 = vunpack.c.l.b16 %v170
    %v1016 = vunpack.c.l.b16 %v171
    %v1017 = vunpack.c.l.b16 %v172
    %v1018 = vunpack.c.l.b16 %v173
    %v1019 = vunpack.c.l.b16 %v174
    %v1020 = vunpack.c.l.b16 %v175
    %v1021 = vunpack.c.l.b16 %v176
    %v1022 = vunpack.c.l.b16 %v177
    %v1023 = vunpack.c.l.b16 %v178
    %v1024 = vunpack.c.l.b16 %v179
    %v1025 = vunpack.c.l.b16 %v180
    %v1026 = vunpack.c.l.b16 %v181
    %v1027 = vunpack.c.l.b16 %v182
    %v1028 = vunpack.c.l.b16 %v183
    %v1029 = vunpack.c.l.b16 %v184
    %v1030 = vunpack.c.l.b16 %v185
    %v1031 = vunpack.c.l.b16 %v186
    %v1032 = vunpack.c.l.b16 %v187
    %v1033 = vunpack.c.l.b16 %v188
    %v1034 = vunpack.c.l.b16 %v189
    %v1035 = vunpack.c.l.b16 %v190
    %v1036 = vunpack.c.l.b16 %v191
    %v1037 = vunpack.c.l.b16 %v192
    %v1038 = vunpack.c.l.b16 %v193
    %v1039 = vunpack.c.l.b16 %v194
    %v1040 = vunpack.c.l.b16 %v195
    %v1041 = vunpack.c.l.b16 %v196
    %v1042 = vunpack.c.l.b16 %v197
    %v1043 = vunpack.c.l.b16 %v198
    %v1044 = vunpack.c.l.b16 %v199
    %v1045 = vunpack.c.l.b16 %v200
    %v1046 = vunpack.c.l.b16 %v201
    %v1047 = vunpack.c.l.b16 %v202
    %v1048 = vunpack.c.l.b16 %v203
    %v1049 = vunpack.c.l.b16 %v204
    %v1050 = vunpack.c.l.b16 %v205
    %v1051 = vunpack.c.l.b16 %v206
    %v1052 = vunpack.c.l.b16 %v207
    %v1053 = vunpack.c.l.b16 %v208
    %v1054 = vunpack.c.l.b16 %v209
    %v1055 = vunpack.c.l.b16 %v210
    %v1056 = vunpack.c.l.b16 %v211
    %v1057 = vunpack.c.l.b16 %v212
    %v1058 = vunpack.c.l.b16 %v213
    %v1059 = vunpack.c.l.b16 %v214
    %v1060 = vunpack.c.l.b16 %v215
    %v1061 = vunpack.c.l.b16 %v216
    %v1062 = vunpack.c.l.b16 %v217
    %v1063 = vunpack.c.l.b16 %v218
    %v1064 = vunpack.c.l.b16 %v219
    %v1065 = vunpack.c.l.b16 %v220
    %v1066 = vunpack.c.l.b16 %v221
    %v1067 = vunpack.c.l.b16 %v222
    %v1068 = vunpack.c.l.b16 %v223
    %v1069 = vunpack.c.l.b16 %v224
    %v1070 = vunpack.c.l.b16 %v225
    %v1071 = vunpack.c.l.b16 %v226
    %v1072 = vunpack.c.l.b16 %v227
    %v1073 = vunpack.c.l.b16 %v228
    %v1074 = vunpack.c.l.b16 %v229
    %v1075 = vunpack.c.l.b16 %v230
    %v1076 = vunpack.c.l.b16 %v231
    %v1077 = vunpack.c.l.b16 %v232
    %v1078 = vunpack.c.l.b16 %v233
    %v1079 = vunpack.c.l.b16 %v234
    %v1080 = vunpack.c.l.b16 %v235
    %v1081 = vunpack.c.l.b16 %v236
    %v1082 = vunpack.c.l.b16 %v237
    %v1083 = vunpack.c.l.b16 %v238
    %v1084 = vunpack.c.l.b16 %v239
    %v1085 = vunpack.c.l.b16 %v240
    %v1086 = vunpack.c.l.b16 %v241
    %v1087 = vunpack.c.l.b16 %v242
    %v1088 = vunpack.c.l.b16 %v243
    %v1089 = vunpack.c.l.b16 %v244
    %v1090 = vunpack.c.l.b16 %v245
    %v1091 = vunpack.c.l.b16 %v246
    %v1092 = vunpack.c.l.b16 %v247
    %v1093 = vunpack.c.l.b16 %v248
    %v1094 = vunpack.c.l.b16 %v249
    %v1095 = vunpack.c.l.b16 %v250
    %v1096 = vunpack.c.l.b16 %v251
    %v1097 = vunpack.c.l.b16 %v252
    %v1098 = vunpack.c.l.b16 %v253
    %v1099 = vunpack.c.l.b16 %v254
    %v1100 = vunpack.c.l.b16 %v255
    %v1101 = vunpack.c.l.b16 %v256
    %v1102 = vunpack.c.l.b16 %v257
    %v1103 = vunpack.c.l.b16 %v258
    %v1104 = vunpack.c.l.b16 %v259
    %v1105 = vunpack.c.l.b16 %v260
    %v1106 = vunpack.c.l.b16 %v261
    %v1107 = vunpack.c.l.b16 %v262
    %v1108 = vunpack.c.l.b16 %v263
    %v1109 = vunpack.c.l.b16 %v264
    %v1110 = vunpack.c.l.b16 %v265
    %v1111 = vunpack.c.l.b16 %v266
    %v1112 = vunpack.c.l.b16 %v267
    %v1113 = vunpack.c.l.b16 %v268
    %v1114 = vunpack.c.l.b16 %v269
    %v1115 = vunpack.c.l.b16 %v270
    %v1116 = vunpack.c.l.b16 %v271
    %v1117 = vunpack.c.l.b16 %v272
    %v1118 = vunpack.c.l.b16 %v273
    %v1119 = vunpack.c.l.b16 %v274
    %v1120 = vunpack.c.l.b16 %v275
    %v1121 = vunpack.c.l.b16 %v276
    %v1122 = vunpack.c.l.b16 %v277
    %v1123 = vunpack.c.l.b16 %v278
    %v1124 = vunpack.c.l.b16 %v279
    %v1125 = vunpack.c.l.b16 %v280
    %v1126 = vunpack.c.l.b16 %v281
    %v1127 = vunpack.c.l.b16 %v282
    %v1128 = vunpack.c.l.b16 %v283
    %v1129 = vunpack.c.l.b16 %v284
    %v1130 = vunpack.c.l.b16 %v285
    %v1131 = vunpack.c.l.b16 %v286
    %v1132 = vunpack.c.l.b16 %v287
    %v1133 = vunpack.c.l.b16 %v288
    %v1134 = vunpack.c.l.b16 %v289
    %v1135 = vunpack.c.l.b16 %v290
    %v1136 = vunpack.c.l.b16 %v291
    %v1137 = vunpack.c.l.b16 %v292
    %v1138 = vunpack.c.l.b16 %v293
    %v1139 = vunpack.c.l.b16 %v294
    %v1140 = vunpack.c.l.b16 %v295
    %v1141 = vunpack.c.l.b16 %v296
    %v1142 = vunpack.c.l.b16 %v297
    %v1143 = vunpack.c.l.b16 %v298
    %v1144 = vunpack.c.l.b16 %v299
    %v1145 = vunpack.c.l.b16 %v300
    %v1146 = vunpack.c.l.b16 %v301
    %v1147 = vunpack.c.l.b16 %v302
    %v1148 = vunpack.c.l.b16 %v303
    %v1149 = vunpack.c.l.b16 %v304
    %v1150 = vunpack.c.l.b16 %v305
    %v1151 = vunpack.c.l.b16 %v306
    %v1152 = vunpack.c.l.b16 %v307
    %v1153 = vunpack.c.l.b16 %v308
    %v1154 = vunpack.c.l.b16 %v309
    %v1155 = vunpack.c.l.b16 %v310
    %v1156 = vunpack.c.l.b16 %v311
    %v1157 = vunpack.c.l.b16 %v312
    %v1158 = vunpack.c.l.b16 %v313
    %v1159 = vunpack.c.l.b16 %v314
    %v1160 = vunpack.c.l.b16 %v315
    %v1161 = vunpack.c.l.b16 %v316
    %v1162 = vunpack.c.l.b16 %v317
    %v1163 = vunpack.c.l.b16 %v318
    %v1164 = vunpack.c.l.b16 %v319
    %v1165 = vunpack.c.l.b16 %v320
    %v1166 = vunpack.c.l.b16 %v321
    %v1167 = vunpack.c.l.b16 %v322
    %v1168 = vunpack.c.l.b16 %v323
    %v1169 = vunpack.c.l.b16 %v324
    %v1170 = vunpack.c.l.b16 %v325
    %v1171 = vunpack.c.l.b16 %v326
    %v1172 = vunpack.c.l.b16 %v327
    %v1173 = vunpack.c.l.b16 %v328
    %v1174 = vunpack.c.l.b16 %v329
    %v1175 = vunpack.c.l.b16 %v330
    %v1176 = vunpack.c.l.b16 %v331
    %v1177 = vunpack.c.l.b16 %v332
    %v1178 = vunpack.c.l.b16 %v333
    %v1179 = vunpack.c.l.b16 %v334
    %v1180 = vunpack.c.l.b16 %v335
    %v1181 = vunpack.c.l.b16 %v336
    %v1182 = vunpack.c.l.b16 %v337
    %v1183 = vunpack.c.l.b16 %v338
    %v1184 = vunpack.c.l.b16 %v339
    %v1185 = vunpack.c.l.b16 %v340
    %v1186 = vunpack.c.l.b16 %v341
    %v1187 = vunpack.c.l.b16 %v342
    %v1188 = vunpack.c.l.b16 %v343
    %v1189 = vunpack.c.l.b16 %v344
    %v1190 = vunpack.c.l.b16 %v345
    %v1191 = vunpack.c.l.b16 %v346
    %v1192 = vunpack.c.l.b16 %v347
    %v1193 = vunpack.c.l.b16 %v348
    %v1194 = vunpack.c.l.b16 %v349
    %v1195 = vunpack.c.l.b16 %v350
    %v1196 = vunpack.c.l.b16 %v351
    %v1197 = vunpack.c.l.b16 %v352
    %v1198 = vunpack.c.l.b16 %v353
    %v1199 = vunpack.c.l.b16 %v354
    %v1200 = vunpack.c.l.b16 %v355
    %v1201 = vunpack.c.l.b16 %v356
    %v1202 = vunpack.c.l.b16 %v357
    %v1203 = vunpack.c.l.b16 %v358
    %v1204 = vunpack.c.l.b16 %v359
    %v1205 = vunpack.c.l.b16 %v360
    %v1206 = vunpack.c.l.b16 %v361
    %v1207 = vunpack.c.l.b16 %v362
    %v1208 = vunpack.c.l.b16 %v363
    %v1209 = vunpack.c.l.b16 %v364
    %v1210 = vunpack.c.l.b16 %v365
    %v1211 = vunpack.c.l.b16 %v366
    %v1212 = vunpack.c.l.b16 %v367
    %v1213 = vunpack.c.l.b16 %v368
    %v1214 = vunpack.c.l.b16 %v369
    %v1215 = vunpack.c.l.b16 %v370
    %v1216 = vunpack.c.l.b16 %v371
    %v1217 = vunpack.c.l.b16 %v372
    %v1218 = vunpack.c.l.b16 %v373
    %v1219 = vunpack.c.l.b16 %v374
    %v1220 = vunpack.c.l.b16 %v375
    %v1221 = vunpack.c.l.b16 %v376
    %v1222 = vunpack.c.l.b16 %v377
    %v1223 = vunpack.c.l.b16 %v378
    %v1224 = vunpack.c.l.b16 %v379
    %v1225 = vunpack.c.l.b16 %v380
    %v1226 = vunpack.c.l.b16 %v381
    %v1227 = vunpack.c.l.b16 %v382
    %v1228 = vunpack.c.l.b16 %v383
    %v1229 = vunpack.c.l.b16 %v384
    %v1230 = vunpack.c.l.b16 %v385
    %v1231 = vunpack.c.l.b16 %v386
    %v1232 = vunpack.c.l.b16 %v387
    %v1233 = vunpack.c.l.b16 %v388
    %v1234 = vunpack.c.l.b16 %v389
    %v1235 = vunpack.c.l.b16 %v390
    %v1236 = vunpack.c.l.b16 %v391
    %v1237 = vunpack.c.l.b16 %v392
    %v1238 = vunpack.c.l.b16 %v393
    %v1239 = vunpack.c.l.b16 %v394
    %v1240 = vunpack.c.l.b16 %v395
    %v1241 = vunpack.c.l.b16 %v396
    %v1242 = vunpack.c.l.b16 %v397
    %v1243 = vunpack.c.l.b16 %v398
    %v1244 = vunpack.c.l.b16 %v399
    %v1245 = vunpack.c.l.b16 %v400
    %v1246 = vunpack.c.l.b16 %v401
    %v1247 = vunpack.c.l.b16 %v402
    %v1248 = vunpack.c.l.b16 %v403
    %v1249 = vunpack.c.l.b16 %v404
    %v1250 = vunpack.c.l.b16 %v405
    %v1251 = vunpack.c.l.b16 %v406
    %v1252 = vunpack.c.l.b16 %v407
    %v1253 = vunpack.c.l.b16 %v408
    %v1254 = vunpack.c.l.b16 %v409
    %v1255 = vunpack.c.l.b16 %v410
    %v1256 = vunpack.c.l.b16 %v411
    %v1257 = vunpack.c.l.b16 %v412
    %v1258 = vunpack.c.l.b16 %v413
    %v1259 = vunpack.c.l.b16 %v414
    %v1260 = vunpack.c.l.b16 %v415
    %v1261 = vunpack.c.l.b16 %v416
    %v1262 = vunpack.c.l.b16 %v417
    %v1263 = vunpack.c.l.b16 %v418
    %v1264 = vunpack.c.l.b16 %v419
    %v1265 = vunpack.c.l.b16 %v420
    %v1266 = vunpack.c.l.b16 %v421
    %v1267 = vunpack.c.l.b16 %v422
    %v1268 = vunpack.c.l.b16 %v423
    %v1269 = vpack.c.b16 %v878, %v877
    %v1270 = vpack.c.b16 %v880, %v879
    %v1271 = vpack.c.b16 %v882, %v881
    %v1272 = vpack.c.b16 %v884, %v883
    %v1273 = vpack.c.b16 %v886, %v885
    %v1274 = vpack.c.b16 %v888, %v887
    %v1275 = vpack.c.b16 %v890, %v889
    %v1276 = vpack.c.b16 %v892, %v891
    %v1277 = vpack.c.b16 %v894, %v893
    %v1278 = vpack.c.b16 %v896, %v895
    %v1279 = vpack.c.b16 %v898, %v897
    %v1280 = vpack.c.b16 %v900, %v899
    %v1281 = vpack.c.b16 %v902, %v901
    %v1282 = vpack.c.b16 %v904, %v903
    %v1283 = vpack.c.b16 %v906, %v905
    %v1284 = vpack.c.b16 %v908, %v907
    %v1285 = vpack.c.b16 %v910, %v909
    %v1286 = vpack.c.b16 %v912, %v911
    %v1287 = vpack.c.b16 %v914, %v913
    %v1288 = vpack.c.b16 %v916, %v915
    %v1289 = vpack.c.b16 %v918, %v917
    %v1290 = vpack.c.b16 %v920, %v919
    %v1291 = vpack.c.b16 %v922, %v921
    %v1292 = vpack.c.b16 %v924, %v923
    %v1293 = vpack.c.b16 %v926, %v925
    %v1294 = vpack.c.b16 %v928, %v927
    %v1295 = vpack.c.b16 %v930, %v929
    %v1296 = vpack.c.b16 %v932, %v931
    %v1297 = vpack.c.b16 %v934, %v933
    %v1298 = vpack.c.b16 %v936, %v935
    %v1299 = vpack.c.b16 %v938, %v937
    %v1300 = vpack.c.b16 %v940, %v939
    %v1301 = vpack.c.b16 %v942, %v941
    %v1302 = vpack.c.b16 %v944, %v943
    %v1303 = vpack.c.b16 %v946, %v945
    %v1304 = vpack.c.b16 %v948, %v947
    %v1305 = vpack.c.b16 %v950, %v949
    %v1306 = vpack.c.b16 %v952, %v951
    %v1307 = vpack.c.b16 %v954, %v953
    %v1308 = vpack.c.b16 %v956, %v955
    %v1309 = vpack.c.b16 %v958, %v957
    %v1310 = vpack.c.b16 %v960, %v959
    %v1311 = vpack.c.b16 %v962, %v961
    %v1312 = vpack.c.b16 %v964, %v963
    %v1313 = vpack.c.b16 %v966, %v965
    %v1314 = vpack.c.b16 %v968, %v967
    %v1315 = vpack.c.b16 %v970, %v969
    %v1316 = vpack.c.b16 %v972, %v971
    %v1317 = vpack.c.b16 %v974, %v973
    %v1318 = vpack.c.b16 %v976, %v975
    %v1319 = vpack.c.b16 %v978, %v977
    %v1320 = vpack.c.b16 %v980, %v979
    %v1321 = vpack.c.b16 %v982, %v981
    %v1322 = vpack.c.b16 %v984, %v983
    %v1323 = vpack.c.b16 %v986, %v985
    %v1324 = vpack.c.b16 %v988, %v987
    %v1325 = vpack.c.b16 %v990, %v989
    %v1326 = vpack.c.b16 %v992, %v991
    %v1327 = vpack.c.b16 %v994, %v993
    %v1328 = vpack.c.b16 %v996, %v995
    %v1329 = vpack.c.b16 %v998, %v997
    %v1330 = vpack.c.b16 %v1000, %v999
    %v1331 = vpack.c.b16 %v1002, %v1001
    %v1332 = vpack.c.b16 %v1004, %v1003
    %v1333 = vpack.c.b16 %v1006, %v1005
    %v1334 = vpack.c.b16 %v1008, %v1007
    %v1335 = vpack.c.b16 %v1010, %v1009
    %v1336 = vpack.c.b16 %v1012, %v1011
    %v1337 = vpack.c.b16 %v1014, %v1013
    %v1338 = vpack.c.b16 %v1016, %v1015
    %v1339 = vpack.c.b16 %v1018, %v1017
    %v1340 = vpack.c.b16 %v1020, %v1019
    %v1341 = vpack.c.b16 %v1022, %v1021
    %v1342 = vpack.c.b16 %v1024, %v1023
    %v1343 = vpack.c.b16 %v1026, %v1025
    %v1344 = vpack.c.b16 %v1028, %v1027
    %v1345 = vpack.c.b16 %v1030, %v1029
    %v1346 = vpack.c.b16 %v1032, %v1031
    %v1347 = vpack.c.b16 %v1034, %v1033
    %v1348 = vpack.c.b16 %v1036, %v1035
    %v1349 = vpack.c.b16 %v1038, %v1037
    %v1350 = vpack.c.b16 %v1040, %v1039
    %v1351 = vpack.c.b16 %v1042, %v1041
    %v1352 = vpack.c.b16 %v1044, %v1043
    %v1353 = vpack.c.b16 %v1046, %v1045
    %v1354 = vpack.c.b16 %v1048, %v1047
    %v1355 = vpack.c.b16 %v1050, %v1049
    %v1356 = vpack.c.b16 %v1052, %v1051
    %v1357 = vpack.c.b16 %v1054, %v1053
    %v1358 = vpack.c.b16 %v1056, %v1055
    %v1359 = vpack.c.b16 %v1058, %v1057
    %v1360 = vpack.c.b16 %v1060, %v1059
    %v1361 = vpack.c.b16 %v1062, %v1061
    %v1362 = vpack.c.b16 %v1064, %v1063
    %v1363 = vpack.c.b16 %v1066, %v1065
    %v1364 = vpack.c.b16 %v1068, %v1067
    %v1365 = vpack.c.b16 %v1070, %v1069
    %v1366 = vpack.c.b16 %v1072, %v1071
    %v1367 = vpack.c.b16 %v1074, %v1073
    %v1368 = vpack.c.b16 %v1076, %v1075
    %v1369 = vpack.c.b16 %v1078, %v1077
    %v1370 = vpack.c.b16 %v1080, %v1079
    %v1371 = vpack.c.b16 %v1082, %v1081
    %v1372 = vpack.c.b16 %v1084, %v1083
    %v1373 = vpack.c.b16 %v1086, %v1085
    %v1374 = vpack.c.b16 %v1088, %v1087
    %v1375 = vpack.c.b16 %v1090, %v1089
    %v1376 = vpack.c.b16 %v1092, %v1091
    %v1377 = vpack.c.b16 %v1094, %v1093
    %v1378 = vpack.c.b16 %v1096, %v1095
    %v1379 = vpack.c.b16 %v1098, %v1097
    %v1380 = vpack.c.b16 %v1100, %v1099
    %v1381 = vpack.c.b16 %v1102, %v1101
    %v1382 = vpack.c.b16 %v1104, %v1103
    %v1383 = vpack.c.b16 %v1106, %v1105
    %v1384 = vpack.c.b16 %v1108, %v1107
    %v1385 = vpack.c.b16 %v1110, %v1109
    %v1386 = vpack.c.b16 %v1112, %v1111
    %v1387 = vpack.c.b16 %v1114, %v1113
    %v1388 = vpack.c.b16 %v1116, %v1115
    %v1389 = vpack.c.b16 %v1118, %v1117
    %v1390 = vpack.c.b16 %v1120, %v1119
    %v1391 = vpack.c.b16 %v1122, %v1121
    %v1392 = vpack.c.b16 %v1124, %v1123
    %v1393 = vpack.c.b16 %v1126, %v1125
    %v1394 = vpack.c.b16 %v1128, %v1127
    %v1395 = vpack.c.b16 %v1130, %v1129
    %v1396 = vpack.c.b16 %v1132, %v1131
    %v1397 = vpack.c.b16 %v1134, %v1133
    %v1398 = vpack.c.b16 %v1136, %v1135
    %v1399 = vpack.c.b16 %v1138, %v1137
    %v1400 = vpack.c.b16 %v1140, %v1139
    %v1401 = vpack.c.b16 %v1142, %v1141
    %v1402 = vpack.c.b16 %v1144, %v1143
    %v1403 = vpack.c.b16 %v1146, %v1145
    %v1404 = vpack.c.b16 %v1148, %v1147
    %v1405 = vpack.c.b16 %v1150, %v1149
    %v1406 = vpack.c.b16 %v1152, %v1151
    %v1407 = vpack.c.b16 %v1154, %v1153
    %v1408 = vpack.c.b16 %v1156, %v1155
    %v1409 = vpack.c.b16 %v1158, %v1157
    %v1410 = vpack.c.b16 %v1160, %v1159
    %v1411 = vpack.c.b16 %v1162, %v1161
    %v1412 = vpack.c.b16 %v1164, %v1163
    %v1413 = vpack.c.b16 %v1166, %v1165
    %v1414 = vpack.c.b16 %v1168, %v1167
    %v1415 = vpack.c.b16 %v1170, %v1169
    %v1416 = vpack.c.b16 %v1172, %v1171
    %v1417 = vpack.c.b16 %v1174, %v1173
    %v1418 = vpack.c.b16 %v1176, %v1175
    %v1419 = vpack.c.b16 %v1178, %v1177
    %v1420 = vpack.c.b16 %v1180, %v1179
    %v1421 = vpack.c.b16 %v1182, %v1181
    %v1422 = vpack.c.b16 %v1184, %v1183
    %v1423 = vpack.c.b16 %v1186, %v1185
    %v1424 = vpack.c.b16 %v1188, %v1187
    %v1425 = vpack.c.b16 %v1190, %v1189
    %v1426 = vpack.c.b16 %v1192, %v1191
    %v1427 = vpack.c.b16 %v1194, %v1193
    %v1428 = vpack.c.b16 %v1196, %v1195
    %v1429 = vpack.c.b16 %v1198, %v1197
    %v1430 = vpack.c.b16 %v1200, %v1199
    %v1431 = vpack.c.b16 %v1202, %v1201
    %v1432 = vpack.c.b16 %v1204, %v1203
    %v1433 = vpack.c.b16 %v1206, %v1205
    %v1434 = vpack.c.b16 %v1208, %v1207
    %v1435 = vpack.c.b16 %v1210, %v1209
    %v1436 = vpack.c.b16 %v1212, %v1211
    %v1437 = vpack.c.b16 %v1214, %v1213
    %v1438 = vpack.c.b16 %v1216, %v1215
    %v1439 = vpack.c.b16 %v1218, %v1217
    %v1440 = vpack.c.b16 %v1220, %v1219
    %v1441 = vpack.c.b16 %v1222, %v1221
    %v1442 = vpack.c.b16 %v1224, %v1223
    %v1443 = vpack.c.b16 %v1226, %v1225
    %v1444 = vpack.c.b16 %v1228, %v1227
    %v1445 = vpack.c.b16 %v1230, %v1229
    %v1446 = vpack.c.b16 %v1232, %v1231
    %v1447 = vpack.c.b16 %v1234, %v1233
    %v1448 = vpack.c.b16 %v1236, %v1235
    %v1449 = vpack.c.b16 %v1238, %v1237
    %v1450 = vpack.c.b16 %v1240, %v1239
    %v1451 = vpack.c.b16 %v1242, %v1241
    %v1452 = vpack.c.b16 %v1244, %v1243
    %v1453 = vpack.c.b16 %v1246, %v1245
    %v1454 = vpack.c.b16 %v1248, %v1247
    %v1455 = vpack.c.b16 %v1250, %v1249
    %v1456 = vpack.c.b16 %v1252, %v1251
    %v1457 = vpack.c.b16 %v1254, %v1253
    %v1458 = vpack.c.b16 %v1256, %v1255
    %v1459 = vpack.c.b16 %v1258, %v1257
    %v1460 = vpack.c.b16 %v1260, %v1259
    %v1461 = vpack.c.b16 %v1262, %v1261
    %v1462 = vpack.c.b16 %v1264, %v1263
    %v1463 = vpack.c.b16 %v1266, %v1265
    %v1464 = vpack.c.b16 %v1268, %v1267
    %vm1661 = vcmask 523264
    %v1662 = vsel %vm1661, %v460, 0
    %1664 = vmatpush.bf16.msra.mxu0 %v1276
    %1665 = vmatpush.bf16.msra.mxu0 %v1275
    %1666 = vmatpush.bf16.msra.mxu0 %v1274
    %1667 = vmatpush.bf16.msra.mxu0 %v1273
    %1668 = vmatpush.bf16.msra.mxu0 %v1272
    %1669 = vmatpush.bf16.msra.mxu0 %v1271
    %1670 = vmatpush.bf16.msra.mxu0 %v1270
    %1671 = vmatpush.bf16.msra.mxu0 %v1269
    %1672 = vmatmul.bf16.gmra.mxu0 %v430
    %v1673 = vpop.f32.mrf.mxu0
    %v1674 = vadd.f32 %v426, %v1673
    %v1675 = vpop.f32.mrf.mxu0
    %1676 = vdwg.mxu0
    %1677 = vmatpush.bf16.msra.mxu0 %v1284
    %1678 = vmatpush.bf16.msra.mxu0 %v1283
    %1679 = vmatpush.bf16.msra.mxu0 %v1282
    %1680 = vmatpush.bf16.msra.mxu0 %v1281
    %1681 = vmatpush.bf16.msra.mxu0 %v1280
    %1682 = vmatpush.bf16.msra.mxu0 %v1279
    %1683 = vmatpush.bf16.msra.mxu0 %v1278
    %1684 = vmatpush.bf16.msra.mxu0 %v1277
    %1685 = vmatmul.bf16.gmra.mxu0 %v431
    %v1686 = vpop.f32.mrf.mxu0
    %v1687 = vadd.f32 %v1674, %v1686
    %v1688 = vpop.f32.mrf.mxu0
    %1689 = vdwg.mxu0
    %1690 = vmatpush.bf16.msra.mxu0 %v1292
    %1691 = vmatpush.bf16.msra.mxu0 %v1291
    %1692 = vmatpush.bf16.msra.mxu0 %v1290
    %1693 = vmatpush.bf16.msra.mxu0 %v1289
    %1694 = vmatpush.bf16.msra.mxu0 %v1288
    %1695 = vmatpush.bf16.msra.mxu0 %v1287
    %1696 = vmatpush.bf16.msra.mxu0 %v1286
    %1697 = vmatpush.bf16.msra.mxu0 %v1285
    %1698 = vmatmul.bf16.gmra.mxu0 %v432
    %v1699 = vpop.f32.mrf.mxu0
    %v1700 = vadd.f32 %v1687, %v1699
    %v1701 = vpop.f32.mrf.mxu0
    %1702 = vdwg.mxu0
    %1703 = vmatpush.bf16.msra.mxu0 %v1300
    %1704 = vmatpush.bf16.msra.mxu0 %v1299
    %1705 = vmatpush.bf16.msra.mxu0 %v1298
    %1706 = vmatpush.bf16.msra.mxu0 %v1297
    %1707 = vmatpush.bf16.msra.mxu0 %v1296
    %1708 = vmatpush.bf16.msra.mxu0 %v1295
    %1709 = vmatpush.bf16.msra.mxu0 %v1294
    %1710 = vmatpush.bf16.msra.mxu0 %v1293
    %1711 = vmatmul.bf16.gmra.mxu0 %v433
    %v1712 = vpop.f32.mrf.mxu0
    %v1713 = vadd.f32 %v1700, %v1712
    %v1714 = vpop.f32.mrf.mxu0
    %1715 = vdwg.mxu0
    %1716 = vmatpush.bf16.msra.mxu0 %v1308
    %1717 = vmatpush.bf16.msra.mxu0 %v1307
    %1718 = vmatpush.bf16.msra.mxu0 %v1306
    %1719 = vmatpush.bf16.msra.mxu0 %v1305
    %1720 = vmatpush.bf16.msra.mxu0 %v1304
    %1721 = vmatpush.bf16.msra.mxu0 %v1303
    %1722 = vmatpush.bf16.msra.mxu0 %v1302
    %1723 = vmatpush.bf16.msra.mxu0 %v1301
    %1724 = vmatmul.bf16.gmra.mxu0 %v434
    %v1725 = vpop.f32.mrf.mxu0
    %v1726 = vadd.f32 %v1713, %v1725
    %v1727 = vpop.f32.mrf.mxu0
    %1728 = vdwg.mxu0
    %1729 = vmatpush.bf16.msra.mxu0 %v1316
    %1730 = vmatpush.bf16.msra.mxu0 %v1315
    %1731 = vmatpush.bf16.msra.mxu0 %v1314
    %1732 = vmatpush.bf16.msra.mxu0 %v1313
    %1733 = vmatpush.bf16.msra.mxu0 %v1312
    %1734 = vmatpush.bf16.msra.mxu0 %v1311
    %1735 = vmatpush.bf16.msra.mxu0 %v1310
    %1736 = vmatpush.bf16.msra.mxu0 %v1309
    %1737 = vmatmul.bf16.gmra.mxu0 %v435
    %v1738 = vpop.f32.mrf.mxu0
    %v1739 = vadd.f32 %v1726, %v1738
    %v1740 = vpop.f32.mrf.mxu0
    %1741 = vdwg.mxu0
    %1742 = vmatpush.bf16.msra.mxu0 %v1324
    %1743 = vmatpush.bf16.msra.mxu0 %v1323
    %1744 = vmatpush.bf16.msra.mxu0 %v1322
    %1745 = vmatpush.bf16.msra.mxu0 %v1321
    %1746 = vmatpush.bf16.msra.mxu0 %v1320
    %1747 = vmatpush.bf16.msra.mxu0 %v1319
    %1748 = vmatpush.bf16.msra.mxu0 %v1318
    %1749 = vmatpush.bf16.msra.mxu0 %v1317
    %1750 = vmatmul.bf16.gmra.mxu0 %v436
    %v1751 = vpop.f32.mrf.mxu0
    %v1752 = vadd.f32 %v1739, %v1751
    %v1753 = vpop.f32.mrf.mxu0
    %1754 = vdwg.mxu0
    %1755 = vmatpush.bf16.msra.mxu0 %v1332
    %1756 = vmatpush.bf16.msra.mxu0 %v1331
    %1757 = vmatpush.bf16.msra.mxu0 %v1330
    %1758 = vmatpush.bf16.msra.mxu0 %v1329
    %1759 = vmatpush.bf16.msra.mxu0 %v1328
    %1760 = vmatpush.bf16.msra.mxu0 %v1327
    %1761 = vmatpush.bf16.msra.mxu0 %v1326
    %1762 = vmatpush.bf16.msra.mxu0 %v1325
    %1763 = vmatmul.bf16.gmra.mxu0 %v437
    %v1764 = vpop.f32.mrf.mxu0
    %v1765 = vadd.f32 %v1752, %v1764
    %v1766 = vpop.f32.mrf.mxu0
    %1767 = vdwg.mxu0
    %1768 = vmatpush.bf16.msra.mxu0 %v1340
    %1769 = vmatpush.bf16.msra.mxu0 %v1339
    %1770 = vmatpush.bf16.msra.mxu0 %v1338
    %1771 = vmatpush.bf16.msra.mxu0 %v1337
    %1772 = vmatpush.bf16.msra.mxu0 %v1336
    %1773 = vmatpush.bf16.msra.mxu0 %v1335
    %1774 = vmatpush.bf16.msra.mxu0 %v1334
    %1775 = vmatpush.bf16.msra.mxu0 %v1333
    %1776 = vmatmul.bf16.gmra.mxu0 %v440
    %v1777 = vpop.f32.mrf.mxu0
    %v1778 = vadd.f32 %v1765, %v1777
    %v1779 = vpop.f32.mrf.mxu0
    %1780 = vdwg.mxu0
    %1781 = vmatpush.bf16.msra.mxu0 %v1348
    %1782 = vmatpush.bf16.msra.mxu0 %v1347
    %1783 = vmatpush.bf16.msra.mxu0 %v1346
    %1784 = vmatpush.bf16.msra.mxu0 %v1345
    %1785 = vmatpush.bf16.msra.mxu0 %v1344
    %1786 = vmatpush.bf16.msra.mxu0 %v1343
    %1787 = vmatpush.bf16.msra.mxu0 %v1342
    %1788 = vmatpush.bf16.msra.mxu0 %v1341
    %1789 = vmatmul.bf16.gmra.mxu0 %v441
    %v1790 = vpop.f32.mrf.mxu0
    %v1791 = vadd.f32 %v1778, %v1790
    %v1792 = vpop.f32.mrf.mxu0
    %1793 = vdwg.mxu0
    %1794 = vmatpush.bf16.msra.mxu0 %v1356
    %1795 = vmatpush.bf16.msra.mxu0 %v1355
    %1796 = vmatpush.bf16.msra.mxu0 %v1354
    %1797 = vmatpush.bf16.msra.mxu0 %v1353
    %1798 = vmatpush.bf16.msra.mxu0 %v1352
    %1799 = vmatpush.bf16.msra.mxu0 %v1351
    %1800 = vmatpush.bf16.msra.mxu0 %v1350
    %1801 = vmatpush.bf16.msra.mxu0 %v1349
    %1802 = vmatmul.bf16.gmra.mxu0 %v442
    %v1803 = vpop.f32.mrf.mxu0
    %v1804 = vadd.f32 %v1791, %v1803
    %v1805 = vpop.f32.mrf.mxu0
    %1806 = vdwg.mxu0
    %1807 = vmatpush.bf16.msra.mxu0 %v1364
    %1808 = vmatpush.bf16.msra.mxu0 %v1363
    %1809 = vmatpush.bf16.msra.mxu0 %v1362
    %1810 = vmatpush.bf16.msra.mxu0 %v1361
    %1811 = vmatpush.bf16.msra.mxu0 %v1360
    %1812 = vmatpush.bf16.msra.mxu0 %v1359
    %1813 = vmatpush.bf16.msra.mxu0 %v1358
    %1814 = vmatpush.bf16.msra.mxu0 %v1357
    %1815 = vmatmul.bf16.gmra.mxu0 %v443
    %v1816 = vpop.f32.mrf.mxu0
    %v1817 = vadd.f32 %v1804, %v1816
    %v1818 = vpop.f32.mrf.mxu0
    %1819 = vdwg.mxu0
    %1820 = vmatpush.bf16.msra.mxu0 %v1372
    %1821 = vmatpush.bf16.msra.mxu0 %v1371
    %1822 = vmatpush.bf16.msra.mxu0 %v1370
    %1823 = vmatpush.bf16.msra.mxu0 %v1369
    %1824 = vmatpush.bf16.msra.mxu0 %v1368
    %1825 = vmatpush.bf16.msra.mxu0 %v1367
    %1826 = vmatpush.bf16.msra.mxu0 %v1366
    %1827 = vmatpush.bf16.msra.mxu0 %v1365
    %1828 = vmatmul.bf16.gmra.mxu0 %v444
    %v1829 = vpop.f32.mrf.mxu0
    %v1830 = vadd.f32 %v1817, %v1829
    %v1831 = vpop.f32.mrf.mxu0
    %1832 = vdwg.mxu0
    %1833 = vmatpush.bf16.msra.mxu0 %v1380
    %1834 = vmatpush.bf16.msra.mxu0 %v1379
    %1835 = vmatpush.bf16.msra.mxu0 %v1378
    %1836 = vmatpush.bf16.msra.mxu0 %v1377
    %1837 = vmatpush.bf16.msra.mxu0 %v1376
    %1838 = vmatpush.bf16.msra.mxu0 %v1375
    %1839 = vmatpush.bf16.msra.mxu0 %v1374
    %1840 = vmatpush.bf16.msra.mxu0 %v1373
    %1841 = vmatmul.bf16.gmra.mxu0 %v445
    %v1842 = vpop.f32.mrf.mxu0
    %v1843 = vadd.f32 %v1830, %v1842
    %v1844 = vpop.f32.mrf.mxu0
    %1845 = vdwg.mxu0
    %1846 = vmatpush.bf16.msra.mxu0 %v1388
    %1847 = vmatpush.bf16.msra.mxu0 %v1387
    %1848 = vmatpush.bf16.msra.mxu0 %v1386
    %1849 = vmatpush.bf16.msra.mxu0 %v1385
    %1850 = vmatpush.bf16.msra.mxu0 %v1384
    %1851 = vmatpush.bf16.msra.mxu0 %v1383
    %1852 = vmatpush.bf16.msra.mxu0 %v1382
    %1853 = vmatpush.bf16.msra.mxu0 %v1381
    %1854 = vmatmul.bf16.gmra.mxu0 %v446
    %v1855 = vpop.f32.mrf.mxu0
    %v1856 = vadd.f32 %v1843, %v1855
    %v1857 = vpop.f32.mrf.mxu0
    %1858 = vdwg.mxu0
    %1859 = vmatpush.bf16.msra.mxu0 %v1396
    %1860 = vmatpush.bf16.msra.mxu0 %v1395
    %1861 = vmatpush.bf16.msra.mxu0 %v1394
    %1862 = vmatpush.bf16.msra.mxu0 %v1393
    %1863 = vmatpush.bf16.msra.mxu0 %v1392
    %1864 = vmatpush.bf16.msra.mxu0 %v1391
    %1865 = vmatpush.bf16.msra.mxu0 %v1390
    %1866 = vmatpush.bf16.msra.mxu0 %v1389
    %1867 = vmatmul.bf16.gmra.mxu0 %v447
    %v1868 = vpop.f32.mrf.mxu0
    %v1869 = vadd.f32 %v1856, %v1868
    %v1870 = vpop.f32.mrf.mxu0
    %1871 = vdwg.mxu0
    %1872 = vmatpush.bf16.msra.mxu0 %v1404
    %1873 = vmatpush.bf16.msra.mxu0 %v1403
    %1874 = vmatpush.bf16.msra.mxu0 %v1402
    %1875 = vmatpush.bf16.msra.mxu0 %v1401
    %1876 = vmatpush.bf16.msra.mxu0 %v1400
    %1877 = vmatpush.bf16.msra.mxu0 %v1399
    %1878 = vmatpush.bf16.msra.mxu0 %v1398
    %1879 = vmatpush.bf16.msra.mxu0 %v1397
    %1880 = vmatmul.bf16.gmra.mxu0 %v450
    %v1881 = vpop.f32.mrf.mxu0
    %v1882 = vadd.f32 %v1869, %v1881
    %v1883 = vpop.f32.mrf.mxu0
    %1884 = vdwg.mxu0
    %1885 = vmatpush.bf16.msra.mxu0 %v1412
    %1886 = vmatpush.bf16.msra.mxu0 %v1411
    %1887 = vmatpush.bf16.msra.mxu0 %v1410
    %1888 = vmatpush.bf16.msra.mxu0 %v1409
    %1889 = vmatpush.bf16.msra.mxu0 %v1408
    %1890 = vmatpush.bf16.msra.mxu0 %v1407
    %1891 = vmatpush.bf16.msra.mxu0 %v1406
    %1892 = vmatpush.bf16.msra.mxu0 %v1405
    %1893 = vmatmul.bf16.gmra.mxu0 %v451
    %v1894 = vpop.f32.mrf.mxu0
    %v1895 = vadd.f32 %v1882, %v1894
    %v1896 = vpop.f32.mrf.mxu0
    %1897 = vdwg.mxu0
    %1898 = vmatpush.bf16.msra.mxu0 %v1420
    %1899 = vmatpush.bf16.msra.mxu0 %v1419
    %1900 = vmatpush.bf16.msra.mxu0 %v1418
    %1901 = vmatpush.bf16.msra.mxu0 %v1417
    %1902 = vmatpush.bf16.msra.mxu0 %v1416
    %1903 = vmatpush.bf16.msra.mxu0 %v1415
    %1904 = vmatpush.bf16.msra.mxu0 %v1414
    %1905 = vmatpush.bf16.msra.mxu0 %v1413
    %1906 = vmatmul.bf16.gmra.mxu0 %v452
    %v1907 = vpop.f32.mrf.mxu0
    %v1908 = vadd.f32 %v1895, %v1907
    %v1909 = vpop.f32.mrf.mxu0
    %1910 = vdwg.mxu0
    %1911 = vmatpush.bf16.msra.mxu0 %v1428
    %1912 = vmatpush.bf16.msra.mxu0 %v1427
    %1913 = vmatpush.bf16.msra.mxu0 %v1426
    %1914 = vmatpush.bf16.msra.mxu0 %v1425
    %1915 = vmatpush.bf16.msra.mxu0 %v1424
    %1916 = vmatpush.bf16.msra.mxu0 %v1423
    %1917 = vmatpush.bf16.msra.mxu0 %v1422
    %1918 = vmatpush.bf16.msra.mxu0 %v1421
    %1919 = vmatmul.bf16.gmra.mxu0 %v453
    %v1920 = vpop.f32.mrf.mxu0
    %v1921 = vadd.f32 %v1908, %v1920
    %v1922 = vpop.f32.mrf.mxu0
    %1923 = vdwg.mxu0
    %1924 = vmatpush.bf16.msra.mxu0 %v1436
    %1925 = vmatpush.bf16.msra.mxu0 %v1435
    %1926 = vmatpush.bf16.msra.mxu0 %v1434
    %1927 = vmatpush.bf16.msra.mxu0 %v1433
    %1928 = vmatpush.bf16.msra.mxu0 %v1432
    %1929 = vmatpush.bf16.msra.mxu0 %v1431
    %1930 = vmatpush.bf16.msra.mxu0 %v1430
    %1931 = vmatpush.bf16.msra.mxu0 %v1429
    %1932 = vmatmul.bf16.gmra.mxu0 %v454
    %v1933 = vpop.f32.mrf.mxu0
    %v1934 = vadd.f32 %v1921, %v1933
    %v1935 = vpop.f32.mrf.mxu0
    %1936 = vdwg.mxu0
    %1937 = vmatpush.bf16.msra.mxu0 %v1444
    %1938 = vmatpush.bf16.msra.mxu0 %v1443
    %1939 = vmatpush.bf16.msra.mxu0 %v1442
    %1940 = vmatpush.bf16.msra.mxu0 %v1441
    %1941 = vmatpush.bf16.msra.mxu0 %v1440
    %1942 = vmatpush.bf16.msra.mxu0 %v1439
    %1943 = vmatpush.bf16.msra.mxu0 %v1438
    %1944 = vmatpush.bf16.msra.mxu0 %v1437
    %1945 = vmatmul.bf16.gmra.mxu0 %v455
    %v1946 = vpop.f32.mrf.mxu0
    %v1947 = vadd.f32 %v1934, %v1946
    %v1948 = vpop.f32.mrf.mxu0
    %1949 = vdwg.mxu0
    %1950 = vmatpush.bf16.msra.mxu0 %v1452
    %1951 = vmatpush.bf16.msra.mxu0 %v1451
    %1952 = vmatpush.bf16.msra.mxu0 %v1450
    %1953 = vmatpush.bf16.msra.mxu0 %v1449
    %1954 = vmatpush.bf16.msra.mxu0 %v1448
    %1955 = vmatpush.bf16.msra.mxu0 %v1447
    %1956 = vmatpush.bf16.msra.mxu0 %v1446
    %1957 = vmatpush.bf16.msra.mxu0 %v1445
    %1958 = vmatmul.bf16.gmra.mxu0 %v456
    %v1959 = vpop.f32.mrf.mxu0
    %v1960 = vadd.f32 %v1947, %v1959
    %v1961 = vpop.f32.mrf.mxu0
    %1962 = vdwg.mxu0
    %1963 = vmatpush.bf16.msra.mxu0 %v1460
    %1964 = vmatpush.bf16.msra.mxu0 %v1459
    %1965 = vmatpush.bf16.msra.mxu0 %v1458
    %1966 = vmatpush.bf16.msra.mxu0 %v1457
    %1967 = vmatpush.bf16.msra.mxu0 %v1456
    %1968 = vmatpush.bf16.msra.mxu0 %v1455
    %1969 = vmatpush.bf16.msra.mxu0 %v1454
    %1970 = vmatpush.bf16.msra.mxu0 %v1453
    %1971 = vmatmul.bf16.gmra.mxu0 %v457
    %v1972 = vpop.f32.mrf.mxu0
    %v1973 = vadd.f32 %v1960, %v1972
    %v1974 = vpop.f32.mrf.mxu0
    %1975 = vdwg.mxu0
    %1976 = vmatpush.bf16.msra.mxu0 0
    %1977 = vmatpush.bf16.msra.mxu0 0
    %1978 = vmatpush.bf16.msra.mxu0 0
    %1979 = vmatpush.bf16.msra.mxu0 0
    %1980 = vmatpush.bf16.msra.mxu0 %v1464
    %1981 = vmatpush.bf16.msra.mxu0 %v1463
    %1982 = vmatpush.bf16.msra.mxu0 %v1462
    %1983 = vmatpush.bf16.msra.mxu0 %v1461
    %1984 = vmatmul.bf16.gmra.mxu0 %v1662
    %v1985 = vpop.f32.mrf.mxu0
    %v1986 = vadd.f32 %v1973, %v1985
    %v1987 = vpop.f32.mrf.mxu0
    %1988 = vdwg.mxu0
    %v1989 = vmax.f32 %v1986, 0.0
    %v1990 = vpack.c.bf16 %v1989, %v1989
    %v1991 = vld [vmem:[%s3] sm:$0xf]
    %v1992 = vld [vmem:[%s3 + $0x4] sm:$0xf]
    %v1993 = vld [vmem:[%s3 + $0x8] sm:$0xf]
    %v1994 = vld [vmem:[%s3 + $0xc] sm:$0xf]
    %v1995 = vld [vmem:[%s3 + $0x10] sm:$0xf]
    %v1996 = vld [vmem:[%s3 + $0x14] sm:$0xf]
    %v1997 = vld [vmem:[%s3 + $0x18] sm:$0xf]
    %v1998 = vld [vmem:[%s3 + $0x1c] sm:$0xf]
    %v1999 = vld [vmem:[%s3 + $0x20] sm:$0xf]
    %v2000 = vld [vmem:[%s3 + $0x24] sm:$0xf]
    %v2001 = vld [vmem:[%s3 + $0x28] sm:$0xf]
    %v2002 = vld [vmem:[%s3 + $0x2c] sm:$0xf]
    %v2003 = vld [vmem:[%s3 + $0x30] sm:$0xf]
    %v2004 = vld [vmem:[%s3 + $0x34] sm:$0xf]
    %v2005 = vld [vmem:[%s3 + $0x38] sm:$0xf]
    %v2006 = vld [vmem:[%s4] sm:$0x1]
    %v2008 = vperm.slane %v2006, 0
    %v2025 = vunpack.c.l.b16 %v1991
    %v2026 = vunpack.c.l.b16 %v1992
    %v2027 = vunpack.c.l.b16 %v1993
    %v2028 = vunpack.c.l.b16 %v1994
    %v2029 = vunpack.c.l.b16 %v1995
    %v2030 = vunpack.c.l.b16 %v1996
    %v2031 = vunpack.c.l.b16 %v1997
    %v2032 = vunpack.c.l.b16 %v1998
    %v2033 = vunpack.c.l.b16 %v1999
    %v2034 = vunpack.c.l.b16 %v2000
    %v2035 = vunpack.c.l.b16 %v2001
    %v2036 = vunpack.c.l.b16 %v2002
    %v2037 = vunpack.c.l.b16 %v2003
    %v2038 = vunpack.c.l.b16 %v2004
    %v2039 = vunpack.c.l.b16 %v2005
    %v2040 = vpack.c.b16 %v2026, %v2025
    %v2041 = vpack.c.b16 %v2028, %v2027
    %v2042 = vpack.c.b16 %v2030, %v2029
    %v2043 = vpack.c.b16 %v2032, %v2031
    %v2044 = vpack.c.b16 %v2034, %v2033
    %v2045 = vpack.c.b16 %v2036, %v2035
    %v2046 = vpack.c.b16 %v2038, %v2037
    %v2047 = vpack.c.b16 %v2039, %v2039
    %vm2055 = vcmask 982016
    %v2057 = vsel %vm2055, %v1990, 0
    %vm2059 = vcmask 1043456
    %v2061 = vsel %vm2059, %v2047, 0
    %2063 = vmatpush.bf16.msra.mxu0 %v2061
    %2064 = vmatpush.bf16.msra.mxu0 %v2046
    %2065 = vmatpush.bf16.msra.mxu0 %v2045
    %2066 = vmatpush.bf16.msra.mxu0 %v2044
    %2067 = vmatpush.bf16.msra.mxu0 %v2043
    %2068 = vmatpush.bf16.msra.mxu0 %v2042
    %2069 = vmatpush.bf16.msra.mxu0 %v2041
    %2070 = vmatpush.bf16.msra.mxu0 %v2040
    %2071 = vmatmul.bf16.gmra.mxu0 %v2057
    %v2072 = vpop.f32.mrf.mxu0
    %v2073 = vadd.f32 %v2008, %v2072
    %v2074 = vpop.f32.mrf.mxu0
    %2075 = vdwg.mxu0
    %v2076 = vmax.f32 %v2073, 0.0
    %v2077 = vpack.c.bf16 %v2076, %v2076
    %v2078 = vld [vmem:[%s5] sm:$0xf]
    %v2079 = vld [vmem:[%s5 + $0x4] sm:$0xf]
    %v2080 = vld [vmem:[%s5 + $0x8] sm:$0xf]
    %v2081 = vld [vmem:[%s5 + $0xc] sm:$0xf]
    %v2082 = vld [vmem:[%s5 + $0x10] sm:$0xf]
    %v2083 = vld [vmem:[%s5 + $0x14] sm:$0xf]
    %v2084 = vld [vmem:[%s5 + $0x18] sm:$0xf]
    %v2085 = vld [vmem:[%s5 + $0x1c] sm:$0xf]
    %v2086 = vld [vmem:[%s5 + $0x20] sm:$0xf]
    %v2087 = vld [vmem:[%s5 + $0x24] sm:$0xf]
    %v2088 = vld [vmem:[%s5 + $0x28] sm:$0x3]
    %v2089 = vld [vmem:[%s6] sm:$0x1]
    %v2091 = vperm.slane %v2089, 0
    %v2104 = vunpack.c.l.b16 %v2078
    %v2105 = vunpack.c.l.b16 %v2079
    %v2106 = vunpack.c.l.b16 %v2080
    %v2107 = vunpack.c.l.b16 %v2081
    %v2108 = vunpack.c.l.b16 %v2082
    %v2109 = vunpack.c.l.b16 %v2083
    %v2110 = vunpack.c.l.b16 %v2084
    %v2111 = vunpack.c.l.b16 %v2085
    %v2112 = vunpack.c.l.b16 %v2086
    %v2113 = vunpack.c.l.b16 %v2087
    %v2114 = vunpack.c.l.b16 %v2088
    %v2115 = vpack.c.b16 %v2105, %v2104
    %v2116 = vpack.c.b16 %v2107, %v2106
    %v2117 = vpack.c.b16 %v2109, %v2108
    %v2118 = vpack.c.b16 %v2111, %v2110
    %v2119 = vpack.c.b16 %v2113, %v2112
    %v2120 = vpack.c.b16 %v2114, %v2114
    %vm2126 = vcmask 687104
    %v2128 = vsel %vm2126, %v2077, 0
    %vm2130 = vcmask 1041408
    %v2132 = vsel %vm2130, %v2120, 0
    %2134 = vmatpush.bf16.msra.mxu0 0
    %2135 = vmatpush.bf16.msra.mxu0 0
    %2136 = vmatpush.bf16.msra.mxu0 %v2132
    %2137 = vmatpush.bf16.msra.mxu0 %v2119
    %2138 = vmatpush.bf16.msra.mxu0 %v2118
    %2139 = vmatpush.bf16.msra.mxu0 %v2117
    %2140 = vmatpush.bf16.msra.mxu0 %v2116
    %2141 = vmatpush.bf16.msra.mxu0 %v2115
    %2142 = vmatmul.bf16.gmra.mxu0 %v2128
    %v2143 = vpop.f32.mrf.mxu0
    %v2144 = vadd.f32 %v2091, %v2143
    %v2145 = vpop.f32.mrf.mxu0
    %2146 = vdwg.mxu0
    %vm2147 = vcmask 9216
    %2148 = vst.msk [vmem:[#allocation2] sm:$0x3] %vm2147, %v2144
    // Predicated region
    $region30: #{lenet5_forward.5} parent=1 // pred_check
      _
    $region31: #{lenet5_forward.5} parent=1 // pred_check_branch
      %2150 = sbr.rel (0) target = $region33
    $region32: #{lenet5_forward.5} parent=1 // pred_region
      %2152 = vsyncadd [#allocation3], 0
      %s2154 = sshll.u32 [#allocation2], 4
      %s2155 = int_to_ptr.vmem [resolvable:$true] %s2154
      %s2156 = sshll.u32 %s7, 4
      %s2157 = int_to_ptr.hbm [resolvable:$true] %s2156
      %2159 = dma.vmem_to_hbm [thread:$0]  %s2155, 32, %s2157, [#allocation3]
    $region33: #{lenet5_forward.5} parent=1 // pred_fallthru
      _
    // Predicated region
    $region34: #{lenet5_forward.5} parent=1 // pred_check
      _
    $region35: #{lenet5_forward.5} parent=1 // pred_check_branch
      %2161 = sbr.rel (0) target = $region37
    $region36: #{lenet5_forward.5} parent=1 // pred_region
      %2163 = dma.done [#allocation3], 32
    $region37: #{lenet5_forward.5} parent=1 // pred_fallthru
      _
    %2164 = vsyncpa [#allocation3], 1

</llo_original>
